<compile_context>
chip_gen: v5e
topology: v5e:2x2
jax: 0.10.0
libtpu: 0.0.40
codegen_flags: <defaults>
</compile_context>

<pallas_src>
import math
import jax
import jax.numpy as jnp
from jax.experimental import pallas as pl
from jax.experimental.pallas import tpu as pltpu


def fcn_kernel(x_ref, w1_ref, b1_ref, w2_ref, b2_ref, w3_ref, b3_ref,
               w4_ref, b4_ref, o_ref):
    # In-kernel bf16 cast of the input tile (a few VPU ops hidden under the
    # MXU) instead of a separate XLA astype pass over x in the wrapper.
    x = x_ref[...].astype(jnp.bfloat16)
    # fc1 + relu   (bf16 operands -> MXU, f32 accumulate, f32 epilogue)
    h = jnp.dot(x, w1_ref[...], preferred_element_type=jnp.float32)
    h = jnp.maximum(h + b1_ref[...], 0.0)
    # drop1 == identity (eval mode)
    # fc2 + relu
    h = jnp.dot(h.astype(jnp.bfloat16), w2_ref[...],
                preferred_element_type=jnp.float32)
    h = jnp.maximum(h + b2_ref[...], 0.0)
    # drop2 == identity (eval mode)
    # fc3 + relu
    h = jnp.dot(h.astype(jnp.bfloat16), w3_ref[...],
                preferred_element_type=jnp.float32)
    h = jnp.maximum(h + b3_ref[...], 0.0)
    # fc4: (tile_b, 64) @ (64, 1) is a matvec; N=1 wastes the MXU columns and
    # costs a full push/drain, so do it as a VPU multiply + lane reduction.
    y = jnp.sum(h * w4_ref[...], axis=-1, keepdims=True) + b4_ref[...]
    o_ref[...] = y.astype(o_ref.dtype)


def _auto_tile_b(B, max_tile=1024):
    """Pick the batch tile.

    Per-grid-step overhead (~0.35 us) dwarfs a small tile's compute, so go as
    large as VMEM comfortably allows (<= max_tile; ~2 MB footprint at 1024).
    Prefer a multiple-of-8 tile that divides B (no padding), and keep >= 2
    grid steps when B is large enough so v7x's two TensorCores both get work.
    """
    if B <= 8:
        return B                       # block == full array; no alignment issue
    start = min(B, max_tile)
    start -= start % 8
    tile = None
    for t in range(start, 0, -8):      # largest multiple-of-8 divisor of B
        if B % t == 0:
            tile = t
            break
    if tile is None:
        tile = max(start, 8)           # no aligned divisor: batch gets padded
    if tile == B and B >= 256 and (B // 2) % 8 == 0:
        tile = B // 2                  # keep num_tiles >= 2 for v7x megacore
    return tile


def _pallas_forward(x, w1, b1, w2, b2, w3, b3, w4, b4, *, tile_b, num_tiles,
                    single_buffer_weights):
    b_pad, F = x.shape

    def resident(arr):
        # Full-array block with a constant block index: DMA'd to VMEM once and
        # resident across all batch tiles. Single-buffered when supported — a
        # block whose index never changes gains nothing from double-buffering.
        if single_buffer_weights:
            return pl.BlockSpec(arr.shape, lambda i: (0, 0),
                                pipeline_mode=pl.Buffered(1))
        return pl.BlockSpec(arr.shape, lambda i: (0, 0))

    in_specs = [
        pl.BlockSpec((tile_b, F), lambda i: (i, 0)),   # x: tiled over batch
        resident(w1), resident(b1),
        resident(w2), resident(b2),
        resident(w3), resident(b3),
        resident(w4), resident(b4),
    ]
    # NOTE: (tile_b, 1) output is a narrow (masked) store; output bytes are
    # tiny here so a lane-dense (1, tile_b) relayout is not worth the extra
    # transpose — revisit only at very large B.
    out_spec = pl.BlockSpec((tile_b, 1), lambda i: (i, 0))

    h1, h2, h3 = w1.shape[1], w2.shape[1], w3.shape[1]
    flops = 2 * b_pad * (F * h1 + h1 * h2 + h2 * h3 + h3)
    bytes_accessed = (
        (w1.size + w2.size + w3.size) * 2                        # bf16 weights
        + (w4.size + b1.size + b2.size + b3.size + b4.size) * 4  # f32 vecs
        + b_pad * F * 4                                          # f32 input
        + b_pad * 1 * 4)                                         # f32 output

    return pl.pallas_call(
        fcn_kernel,
        out_shape=jax.ShapeDtypeStruct((b_pad, 1), jnp.float32),
        grid=(num_tiles,),
        in_specs=in_specs,
        out_specs=out_spec,
        compiler_params=pltpu.CompilerParams(
            dimension_semantics=(pltpu.PARALLEL,)),
        cost_estimate=pl.CostEstimate(
            flops=flops, transcendentals=0, bytes_accessed=bytes_accessed),
    )(x, w1, b1, w2, b2, w3, b3, w4, b4)


def fcn_forward(x, params, *, tile_b=None, max_tile=1024):
    """x: (B, F) float32. params: dict of w1..w4 (in,out) and b1..b4 (1,out)."""
    B, F = x.shape
    if tile_b is None:
        tile_b = _auto_tile_b(B, max_tile)
    num_tiles = pl.cdiv(B, tile_b)
    b_pad = num_tiles * tile_b

    # The three big weight matrices go bf16 (halves their DMA, native MXU
    # dtype). x stays f32 and is cast inside the kernel. The tiny fc4 vector
    # and all biases stay f32.
    w1 = params["w1"].astype(jnp.bfloat16)
    w2 = params["w2"].astype(jnp.bfloat16)
    w3 = params["w3"].astype(jnp.bfloat16)
    w4 = params["w4"].reshape(1, -1).astype(jnp.float32)   # (1, 64) VPU reduce
    b1 = params["b1"].astype(jnp.float32)
    b2 = params["b2"].astype(jnp.float32)
    b3 = params["b3"].astype(jnp.float32)
    b4 = params["b4"].reshape(1, 1).astype(jnp.float32)

    x_in = x.astype(jnp.float32)
    if b_pad != B:
        # Padded rows are zero-filled, run through the MLP on the last tile
        # (benign wasted compute) and sliced off below.
        x_in = jnp.pad(x_in, ((0, b_pad - B), (0, 0)))

    args = (x_in, w1, b1, w2, b2, w3, b3, w4, b4)
    try:
        out = _pallas_forward(*args, tile_b=tile_b, num_tiles=num_tiles,
                              single_buffer_weights=True)
    except Exception:
        # Fallback if pipeline_mode=pl.Buffered(1) is rejected by the
        # installed jax/Mosaic; default double-buffering only costs ~200 KB.
        out = _pallas_forward(*args, tile_b=tile_b, num_tiles=num_tiles,
                              single_buffer_weights=False)
    return out[:B]


def init_params(key, in_features=64):
    """Deterministic init mimicking nn.Linear (uniform +-1/sqrt(fan_in))."""
    dims = [(in_features, 256), (256, 256), (256, 64), (64, 1)]
    params = {}
    for i, (fan_in, fan_out) in enumerate(dims, start=1):
        key, kw, kb = jax.random.split(key, 3)
        bound = 1.0 / math.sqrt(fan_in)
        params[f"w{i}"] = jax.random.uniform(
            kw, (fan_in, fan_out), jnp.float32, -bound, bound)
        params[f"b{i}"] = jax.random.uniform(
            kb, (1, fan_out), jnp.float32, -bound, bound)
    return params


if __name__ == "__main__":
    key = jax.random.PRNGKey(0)
    key, kx = jax.random.split(key)

    # dataset == 20  =>  fc1 = nn.Linear(64, 256)
    B, F = 512, 64          # auto-tiler picks tile_b=256 -> 2 grid steps
    x = jax.random.normal(kx, (B, F), jnp.float32)
    params = init_params(key, in_features=F)

    out = fcn_forward(x, params)
    out = jax.block_until_ready(out)

    # Pure-JAX reference mirroring the kernel's math (bf16 matmul operands,
    # f32 accumulation / epilogues, fc4 as an f32 reduction).
    xb = x.astype(jnp.bfloat16)
    h = jnp.dot(xb, params["w1"].astype(jnp.bfloat16),
                preferred_element_type=jnp.float32)
    h = jnp.maximum(h + params["b1"], 0.0)
    h = jnp.dot(h.astype(jnp.bfloat16), params["w2"].astype(jnp.bfloat16),
                preferred_element_type=jnp.float32)
    h = jnp.maximum(h + params["b2"], 0.0)
    h = jnp.dot(h.astype(jnp.bfloat16), params["w3"].astype(jnp.bfloat16),
                preferred_element_type=jnp.float32)
    h = jnp.maximum(h + params["b3"], 0.0)
    ref = jnp.sum(h * params["w4"].reshape(1, -1), axis=-1, keepdims=True)
    ref = ref + params["b4"].reshape(1, 1)

    assert out.shape == (B, 1)
    assert jnp.allclose(out, ref, atol=2e-3, rtol=2e-3), \
        float(jnp.max(jnp.abs(out - ref)))

    print("KERNEL_OK")
</pallas_src>

<mosaic_0001>
module attributes {stable_mosaic.version = 11 : i64} {
  func.func @fcn_kernel(%arg0: i32, %arg1: memref<256x64xf32, #tpu.memory_space<vmem>>, %arg2: memref<64x256xbf16, #tpu.memory_space<vmem>>, %arg3: memref<1x256xf32, #tpu.memory_space<vmem>>, %arg4: memref<256x256xbf16, #tpu.memory_space<vmem>>, %arg5: memref<1x256xf32, #tpu.memory_space<vmem>>, %arg6: memref<256x64xbf16, #tpu.memory_space<vmem>>, %arg7: memref<1x64xf32, #tpu.memory_space<vmem>>, %arg8: memref<1x64xf32, #tpu.memory_space<vmem>>, %arg9: memref<1x1xf32, #tpu.memory_space<vmem>>, %arg10: memref<256x1xf32, #tpu.memory_space<vmem>>) attributes {dimension_semantics = [#tpu.dimension_semantics<parallel>], iteration_bounds = array<i64: 2>, scalar_prefetch = 0 : i64, scratch_operands = 0 : i64, tpu.core_type = #tpu.core_type<tc>, window_params = [{transform_indices = @transform_0, window_bounds = array<i64: 256, 64>}, {pipeline_mode = #tpu.pipeline_mode<synchronous>, transform_indices = @transform_1, window_bounds = array<i64: 64, 256>}, {pipeline_mode = #tpu.pipeline_mode<synchronous>, transform_indices = @transform_2, window_bounds = array<i64: 1, 256>}, {pipeline_mode = #tpu.pipeline_mode<synchronous>, transform_indices = @transform_3, window_bounds = array<i64: 256, 256>}, {pipeline_mode = #tpu.pipeline_mode<synchronous>, transform_indices = @transform_4, window_bounds = array<i64: 1, 256>}, {pipeline_mode = #tpu.pipeline_mode<synchronous>, transform_indices = @transform_5, window_bounds = array<i64: 256, 64>}, {pipeline_mode = #tpu.pipeline_mode<synchronous>, transform_indices = @transform_6, window_bounds = array<i64: 1, 64>}, {pipeline_mode = #tpu.pipeline_mode<synchronous>, transform_indices = @transform_7, window_bounds = array<i64: 1, 64>}, {pipeline_mode = #tpu.pipeline_mode<synchronous>, transform_indices = @transform_8, window_bounds = array<i64: 1, 1>}, {transform_indices = @transform_9, window_bounds = array<i64: 256, 1>}]} {
    %c0 = arith.constant 0 : index
    %c0_0 = arith.constant 0 : index
    %0 = vector.load %arg1[%c0, %c0_0] : memref<256x64xf32, #tpu.memory_space<vmem>>, vector<256x64xf32>
    %1 = arith.truncf %0 : vector<256x64xf32> to vector<256x64xbf16>
    %c0_1 = arith.constant 0 : index
    %c0_2 = arith.constant 0 : index
    %2 = vector.load %arg2[%c0_1, %c0_2] : memref<64x256xbf16, #tpu.memory_space<vmem>>, vector<64x256xbf16>
    %cst = arith.constant dense<0.000000e+00> : vector<256x256xf32>
    %3 = tpu.matmul %1, %2, %cst {dimension_numbers = #tpu.dot_dimension_numbers<[1], [0], [0], [1], [0, 0, 1, 1], [], []>} : vector<256x64xbf16>, vector<64x256xbf16>, vector<256x256xf32> -> vector<256x256xf32>
    %c0_3 = arith.constant 0 : index
    %c0_4 = arith.constant 0 : index
    %4 = vector.load %arg3[%c0_3, %c0_4] : memref<1x256xf32, #tpu.memory_space<vmem>>, vector<1x256xf32>
    %5 = vector.broadcast %4 : vector<1x256xf32> to vector<256x256xf32>
    %6 = arith.addf %3, %5 : vector<256x256xf32>
    %cst_5 = arith.constant 0.000000e+00 : f32
    %7 = vector.broadcast %cst_5 : f32 to vector<256x256xf32>
    %8 = arith.maximumf %6, %7 : vector<256x256xf32>
    %9 = arith.truncf %8 : vector<256x256xf32> to vector<256x256xbf16>
    %c0_6 = arith.constant 0 : index
    %c0_7 = arith.constant 0 : index
    %10 = vector.load %arg4[%c0_6, %c0_7] : memref<256x256xbf16, #tpu.memory_space<vmem>>, vector<256x256xbf16>
    %cst_8 = arith.constant dense<0.000000e+00> : vector<256x256xf32>
    %11 = tpu.matmul %9, %10, %cst_8 {dimension_numbers = #tpu.dot_dimension_numbers<[1], [0], [0], [1], [0, 0, 1, 1], [], []>} : vector<256x256xbf16>, vector<256x256xbf16>, vector<256x256xf32> -> vector<256x256xf32>
    %c0_9 = arith.constant 0 : index
    %c0_10 = arith.constant 0 : index
    %12 = vector.load %arg5[%c0_9, %c0_10] : memref<1x256xf32, #tpu.memory_space<vmem>>, vector<1x256xf32>
    %13 = vector.broadcast %12 : vector<1x256xf32> to vector<256x256xf32>
    %14 = arith.addf %11, %13 : vector<256x256xf32>
    %cst_11 = arith.constant 0.000000e+00 : f32
    %15 = vector.broadcast %cst_11 : f32 to vector<256x256xf32>
    %16 = arith.maximumf %14, %15 : vector<256x256xf32>
    %17 = arith.truncf %16 : vector<256x256xf32> to vector<256x256xbf16>
    %c0_12 = arith.constant 0 : index
    %c0_13 = arith.constant 0 : index
    %18 = vector.load %arg6[%c0_12, %c0_13] : memref<256x64xbf16, #tpu.memory_space<vmem>>, vector<256x64xbf16>
    %cst_14 = arith.constant dense<0.000000e+00> : vector<256x64xf32>
    %19 = tpu.matmul %17, %18, %cst_14 {dimension_numbers = #tpu.dot_dimension_numbers<[1], [0], [0], [1], [0, 0, 1, 1], [], []>} : vector<256x256xbf16>, vector<256x64xbf16>, vector<256x64xf32> -> vector<256x64xf32>
    %c0_15 = arith.constant 0 : index
    %c0_16 = arith.constant 0 : index
    %20 = vector.load %arg7[%c0_15, %c0_16] : memref<1x64xf32, #tpu.memory_space<vmem>>, vector<1x64xf32>
    %21 = vector.broadcast %20 : vector<1x64xf32> to vector<256x64xf32>
    %22 = arith.addf %19, %21 : vector<256x64xf32>
    %cst_17 = arith.constant 0.000000e+00 : f32
    %23 = vector.broadcast %cst_17 : f32 to vector<256x64xf32>
    %24 = arith.maximumf %22, %23 : vector<256x64xf32>
    %c0_18 = arith.constant 0 : index
    %c0_19 = arith.constant 0 : index
    %25 = vector.load %arg8[%c0_18, %c0_19] : memref<1x64xf32, #tpu.memory_space<vmem>>, vector<1x64xf32>
    %26 = vector.broadcast %25 : vector<1x64xf32> to vector<256x64xf32>
    %27 = arith.mulf %24, %26 : vector<256x64xf32>
    %cst_20 = arith.constant dense<0.000000e+00> : vector<256xf32>
    %28 = vector.multi_reduction <add>, %27, %cst_20 [1] : vector<256x64xf32> to vector<256xf32>
    %29 = vector.shape_cast %28 : vector<256xf32> to vector<256x1xf32>
    %c0_21 = arith.constant 0 : index
    %c0_22 = arith.constant 0 : index
    %30 = vector.load %arg9[%c0_21, %c0_22] : memref<1x1xf32, #tpu.memory_space<vmem>>, vector<1x1xf32>
    %31 = vector.broadcast %30 : vector<1x1xf32> to vector<256x1xf32>
    %32 = arith.addf %29, %31 : vector<256x1xf32>
    %c0_23 = arith.constant 0 : index
    %c0_24 = arith.constant 0 : index
    %33 = vector.load %arg10[%c0_23, %c0_24] : memref<256x1xf32, #tpu.memory_space<vmem>>, vector<256x1xf32>
    tpu.vector_store %arg10[%c0_23, %c0_24], %32 {strides = array<i32>} : memref<256x1xf32, #tpu.memory_space<vmem>>, vector<256x1xf32>,
    return
  }
  func.func @transform_0(%arg0: i32) -> (i32, i32) {
    %c0_i32 = arith.constant 0 : i32
    %c0_i32_0 = arith.constant 0 : i32
    return %arg0, %c0_i32 : i32, i32
  }
  func.func @transform_1(%arg0: i32) -> (i32, i32) {
    %c0_i32 = arith.constant 0 : i32
    %c0_i32_0 = arith.constant 0 : i32
    %c0_i32_1 = arith.constant 0 : i32
    return %c0_i32, %c0_i32_0 : i32, i32
  }
  func.func @transform_2(%arg0: i32) -> (i32, i32) {
    %c0_i32 = arith.constant 0 : i32
    %c0_i32_0 = arith.constant 0 : i32
    %c0_i32_1 = arith.constant 0 : i32
    return %c0_i32, %c0_i32_0 : i32, i32
  }
  func.func @transform_3(%arg0: i32) -> (i32, i32) {
    %c0_i32 = arith.constant 0 : i32
    %c0_i32_0 = arith.constant 0 : i32
    %c0_i32_1 = arith.constant 0 : i32
    return %c0_i32, %c0_i32_0 : i32, i32
  }
  func.func @transform_4(%arg0: i32) -> (i32, i32) {
    %c0_i32 = arith.constant 0 : i32
    %c0_i32_0 = arith.constant 0 : i32
    %c0_i32_1 = arith.constant 0 : i32
    return %c0_i32, %c0_i32_0 : i32, i32
  }
  func.func @transform_5(%arg0: i32) -> (i32, i32) {
    %c0_i32 = arith.constant 0 : i32
    %c0_i32_0 = arith.constant 0 : i32
    %c0_i32_1 = arith.constant 0 : i32
    return %c0_i32, %c0_i32_0 : i32, i32
  }
  func.func @transform_6(%arg0: i32) -> (i32, i32) {
    %c0_i32 = arith.constant 0 : i32
    %c0_i32_0 = arith.constant 0 : i32
    %c0_i32_1 = arith.constant 0 : i32
    return %c0_i32, %c0_i32_0 : i32, i32
  }
  func.func @transform_7(%arg0: i32) -> (i32, i32) {
    %c0_i32 = arith.constant 0 : i32
    %c0_i32_0 = arith.constant 0 : i32
    %c0_i32_1 = arith.constant 0 : i32
    return %c0_i32, %c0_i32_0 : i32, i32
  }
  func.func @transform_8(%arg0: i32) -> (i32, i32) {
    %c0_i32 = arith.constant 0 : i32
    %c0_i32_0 = arith.constant 0 : i32
    %c0_i32_1 = arith.constant 0 : i32
    return %c0_i32, %c0_i32_0 : i32, i32
  }
  func.func @transform_9(%arg0: i32) -> (i32, i32) {
    %c0_i32 = arith.constant 0 : i32
    %c0_i32_0 = arith.constant 0 : i32
    return %arg0, %c0_i32 : i32, i32
  }
}

module attributes {stable_mosaic.version = 11 : i64} {
  func.func @fcn_kernel(%arg0: i32, %arg1: memref<256x64xf32, #tpu.memory_space<vmem>>, %arg2: memref<64x256xbf16, #tpu.memory_space<vmem>>, %arg3: memref<1x256xf32, #tpu.memory_space<vmem>>, %arg4: memref<256x256xbf16, #tpu.memory_space<vmem>>, %arg5: memref<1x256xf32, #tpu.memory_space<vmem>>, %arg6: memref<256x64xbf16, #tpu.memory_space<vmem>>, %arg7: memref<1x64xf32, #tpu.memory_space<vmem>>, %arg8: memref<1x64xf32, #tpu.memory_space<vmem>>, %arg9: memref<1x1xf32, #tpu.memory_space<vmem>>, %arg10: memref<256x1xf32, #tpu.memory_space<vmem>>) attributes {dimension_semantics = [#tpu.dimension_semantics<parallel>], iteration_bounds = array<i64: 2>, scalar_prefetch = 0 : i64, scratch_operands = 0 : i64, tpu.core_type = #tpu.core_type<tc>, window_params = [{transform_indices = @transform_0, window_bounds = array<i64: 256, 64>}, {pipeline_mode = #tpu.pipeline_mode<synchronous>, transform_indices = @transform_1, window_bounds = array<i64: 64, 256>}, {pipeline_mode = #tpu.pipeline_mode<synchronous>, transform_indices = @transform_2, window_bounds = array<i64: 1, 256>}, {pipeline_mode = #tpu.pipeline_mode<synchronous>, transform_indices = @transform_3, window_bounds = array<i64: 256, 256>}, {pipeline_mode = #tpu.pipeline_mode<synchronous>, transform_indices = @transform_4, window_bounds = array<i64: 1, 256>}, {pipeline_mode = #tpu.pipeline_mode<synchronous>, transform_indices = @transform_5, window_bounds = array<i64: 256, 64>}, {pipeline_mode = #tpu.pipeline_mode<synchronous>, transform_indices = @transform_6, window_bounds = array<i64: 1, 64>}, {pipeline_mode = #tpu.pipeline_mode<synchronous>, transform_indices = @transform_7, window_bounds = array<i64: 1, 64>}, {pipeline_mode = #tpu.pipeline_mode<synchronous>, transform_indices = @transform_8, window_bounds = array<i64: 1, 1>}, {transform_indices = @transform_9, window_bounds = array<i64: 256, 1>}]} {
    %c0 = arith.constant 0 : index
    %c0_0 = arith.constant 0 : index
    %0 = vector.load %arg1[%c0, %c0_0] : memref<256x64xf32, #tpu.memory_space<vmem>>, vector<256x64xf32>
    %1 = arith.truncf %0 : vector<256x64xf32> to vector<256x64xbf16>
    %c0_1 = arith.constant 0 : index
    %c0_2 = arith.constant 0 : index
    %2 = vector.load %arg2[%c0_1, %c0_2] : memref<64x256xbf16, #tpu.memory_space<vmem>>, vector<64x256xbf16>
    %cst = arith.constant dense<0.000000e+00> : vector<256x256xf32>
    %3 = tpu.matmul %1, %2, %cst {dimension_numbers = #tpu.dot_dimension_numbers<[1], [0], [0], [1], [0, 0, 1, 1], [], []>} : vector<256x64xbf16>, vector<64x256xbf16>, vector<256x256xf32> -> vector<256x256xf32>
    %c0_3 = arith.constant 0 : index
    %c0_4 = arith.constant 0 : index
    %4 = vector.load %arg3[%c0_3, %c0_4] : memref<1x256xf32, #tpu.memory_space<vmem>>, vector<1x256xf32>
    %5 = vector.broadcast %4 : vector<1x256xf32> to vector<256x256xf32>
    %6 = arith.addf %3, %5 : vector<256x256xf32>
    %cst_5 = arith.constant 0.000000e+00 : f32
    %7 = vector.broadcast %cst_5 : f32 to vector<256x256xf32>
    %8 = arith.maximumf %6, %7 : vector<256x256xf32>
    %9 = arith.truncf %8 : vector<256x256xf32> to vector<256x256xbf16>
    %c0_6 = arith.constant 0 : index
    %c0_7 = arith.constant 0 : index
    %10 = vector.load %arg4[%c0_6, %c0_7] : memref<256x256xbf16, #tpu.memory_space<vmem>>, vector<256x256xbf16>
    %cst_8 = arith.constant dense<0.000000e+00> : vector<256x256xf32>
    %11 = tpu.matmul %9, %10, %cst_8 {dimension_numbers = #tpu.dot_dimension_numbers<[1], [0], [0], [1], [0, 0, 1, 1], [], []>} : vector<256x256xbf16>, vector<256x256xbf16>, vector<256x256xf32> -> vector<256x256xf32>
    %c0_9 = arith.constant 0 : index
    %c0_10 = arith.constant 0 : index
    %12 = vector.load %arg5[%c0_9, %c0_10] : memref<1x256xf32, #tpu.memory_space<vmem>>, vector<1x256xf32>
    %13 = vector.broadcast %12 : vector<1x256xf32> to vector<256x256xf32>
    %14 = arith.addf %11, %13 : vector<256x256xf32>
    %cst_11 = arith.constant 0.000000e+00 : f32
    %15 = vector.broadcast %cst_11 : f32 to vector<256x256xf32>
    %16 = arith.maximumf %14, %15 : vector<256x256xf32>
    %17 = arith.truncf %16 : vector<256x256xf32> to vector<256x256xbf16>
    %c0_12 = arith.constant 0 : index
    %c0_13 = arith.constant 0 : index
    %18 = vector.load %arg6[%c0_12, %c0_13] : memref<256x64xbf16, #tpu.memory_space<vmem>>, vector<256x64xbf16>
    %cst_14 = arith.constant dense<0.000000e+00> : vector<256x64xf32>
    %19 = tpu.matmul %17, %18, %cst_14 {dimension_numbers = #tpu.dot_dimension_numbers<[1], [0], [0], [1], [0, 0, 1, 1], [], []>} : vector<256x256xbf16>, vector<256x64xbf16>, vector<256x64xf32> -> vector<256x64xf32>
    %c0_15 = arith.constant 0 : index
    %c0_16 = arith.constant 0 : index
    %20 = vector.load %arg7[%c0_15, %c0_16] : memref<1x64xf32, #tpu.memory_space<vmem>>, vector<1x64xf32>
    %21 = vector.broadcast %20 : vector<1x64xf32> to vector<256x64xf32>
    %22 = arith.addf %19, %21 : vector<256x64xf32>
    %cst_17 = arith.constant 0.000000e+00 : f32
    %23 = vector.broadcast %cst_17 : f32 to vector<256x64xf32>
    %24 = arith.maximumf %22, %23 : vector<256x64xf32>
    %c0_18 = arith.constant 0 : index
    %c0_19 = arith.constant 0 : index
    %25 = vector.load %arg8[%c0_18, %c0_19] : memref<1x64xf32, #tpu.memory_space<vmem>>, vector<1x64xf32>
    %26 = vector.broadcast %25 : vector<1x64xf32> to vector<256x64xf32>
    %27 = arith.mulf %24, %26 : vector<256x64xf32>
    %cst_20 = arith.constant dense<0.000000e+00> : vector<256xf32>
    %28 = vector.multi_reduction <add>, %27, %cst_20 [1] : vector<256x64xf32> to vector<256xf32>
    %29 = vector.shape_cast %28 : vector<256xf32> to vector<256x1xf32>
    %c0_21 = arith.constant 0 : index
    %c0_22 = arith.constant 0 : index
    %30 = vector.load %arg9[%c0_21, %c0_22] : memref<1x1xf32, #tpu.memory_space<vmem>>, vector<1x1xf32>
    %31 = vector.broadcast %30 : vector<1x1xf32> to vector<256x1xf32>
    %32 = arith.addf %29, %31 : vector<256x1xf32>
    %c0_23 = arith.constant 0 : index
    %c0_24 = arith.constant 0 : index
    %33 = vector.load %arg10[%c0_23, %c0_24] : memref<256x1xf32, #tpu.memory_space<vmem>>, vector<256x1xf32>
    tpu.vector_store %arg10[%c0_23, %c0_24], %32 {strides = array<i32>} : memref<256x1xf32, #tpu.memory_space<vmem>>, vector<256x1xf32>,
    return
  }
  func.func @transform_0(%arg0: i32) -> (i32, i32) {
    %c0_i32 = arith.constant 0 : i32
    %c0_i32_0 = arith.constant 0 : i32
    return %arg0, %c0_i32 : i32, i32
  }
  func.func @transform_1(%arg0: i32) -> (i32, i32) {
    %c0_i32 = arith.constant 0 : i32
    %c0_i32_0 = arith.constant 0 : i32
    %c0_i32_1 = arith.constant 0 : i32
    return %c0_i32, %c0_i32_0 : i32, i32
  }
  func.func @transform_2(%arg0: i32) -> (i32, i32) {
    %c0_i32 = arith.constant 0 : i32
    %c0_i32_0 = arith.constant 0 : i32
    %c0_i32_1 = arith.constant 0 : i32
    return %c0_i32, %c0_i32_0 : i32, i32
  }
  func.func @transform_3(%arg0: i32) -> (i32, i32) {
    %c0_i32 = arith.constant 0 : i32
    %c0_i32_0 = arith.constant 0 : i32
    %c0_i32_1 = arith.constant 0 : i32
    return %c0_i32, %c0_i32_0 : i32, i32
  }
  func.func @transform_4(%arg0: i32) -> (i32, i32) {
    %c0_i32 = arith.constant 0 : i32
    %c0_i32_0 = arith.constant 0 : i32
    %c0_i32_1 = arith.constant 0 : i32
    return %c0_i32, %c0_i32_0 : i32, i32
  }
  func.func @transform_5(%arg0: i32) -> (i32, i32) {
    %c0_i32 = arith.constant 0 : i32
    %c0_i32_0 = arith.constant 0 : i32
    %c0_i32_1 = arith.constant 0 : i32
    return %c0_i32, %c0_i32_0 : i32, i32
  }
  func.func @transform_6(%arg0: i32) -> (i32, i32) {
    %c0_i32 = arith.constant 0 : i32
    %c0_i32_0 = arith.constant 0 : i32
    %c0_i32_1 = arith.constant 0 : i32
    return %c0_i32, %c0_i32_0 : i32, i32
  }
  func.func @transform_7(%arg0: i32) -> (i32, i32) {
    %c0_i32 = arith.constant 0 : i32
    %c0_i32_0 = arith.constant 0 : i32
    %c0_i32_1 = arith.constant 0 : i32
    return %c0_i32, %c0_i32_0 : i32, i32
  }
  func.func @transform_8(%arg0: i32) -> (i32, i32) {
    %c0_i32 = arith.constant 0 : i32
    %c0_i32_0 = arith.constant 0 : i32
    %c0_i32_1 = arith.constant 0 : i32
    return %c0_i32, %c0_i32_0 : i32, i32
  }
  func.func @transform_9(%arg0: i32) -> (i32, i32) {
    %c0_i32 = arith.constant 0 : i32
    %c0_i32_0 = arith.constant 0 : i32
    return %arg0, %c0_i32 : i32, i32
  }
}

</mosaic_0001>

<llo_original>
// kernel: tpu_custom_call.1
$region0: #{tpu_custom_call.1}
  #allocation0 [shape = 'u32[]', space=smem, size = 0x4, offset = 0x4, fixed_abs, tag = 'smem constant byte address 0x4 - core index']
  #allocation1 [shape = 'u32[72,128]{1,0:T(1,128)}', space=vmem, size = 0x9000, scoped, tag = 'internal scratch']
  #allocation2 [shape = 'f32[1,1]{1,0:T(1,128)S(1)}', space=vmem, size = 0x200, scoped, tag = 'scoped memory for tpu_custom_call.1']
  %s0 = inlined_call_operand.vmem [shape: f32[512,64], index: 0, kind: input, shape index: {}]
  %s1 = inlined_call_operand.vmem [shape: bf16[64,256], index: 1, kind: input, shape index: {}]
  %s2 = inlined_call_operand.vmem [shape: f32[1,256], index: 2, kind: input, shape index: {}]
  %s3 = inlined_call_operand.vmem [shape: bf16[256,256], index: 3, kind: input, shape index: {}]
  %s4 = inlined_call_operand.vmem [shape: f32[1,256], index: 4, kind: input, shape index: {}]
  %s5 = inlined_call_operand.vmem [shape: bf16[256,64], index: 5, kind: input, shape index: {}]
  %s6 = inlined_call_operand.vmem [shape: f32[1,64], index: 6, kind: input, shape index: {}]
  %s7 = inlined_call_operand.vmem [shape: f32[1,64], index: 7, kind: input, shape index: {}]
  %s8 = inlined_call_operand.<no memory space> [shape: f32[1,1], index: 8, kind: input, shape index: {}]
  %s9 = inlined_call_operand.vmem [shape: f32[512,1], index: 9, kind: output, shape index: {}]
  %s10 = sld [smem:[#allocation0]]
  $region69: #{tpu_custom_call.1} parent=0
    _
  %s12 = ssub.s32 1, %s10
  %s13 = scalar_select 0, %s12, %s10
  %v14 = vstv %s8
  %15 = vst [vmem:[#allocation2] sm:$0x1] %v14
  loop: start=0, step=1, limit=4
  $region2: #{tpu_custom_call.1} parent=0 // loop_pre_header
    _
  $region3: #{tpu_custom_call.1} parent=0 // loop_header
    %s17 = sphi 0, %s21
    %p18 = scmp.ge.s32.totalorder %s17, 4
    %s27 = sphi 0, %s29
    %s30 = sphi 0, %s27
    %s31 = sphi 0, %s30
    %s47 = sphi 0, %s31
    %s51 = sphi 0, %s51
    %s53 = sphi 0, %s51
    %s54 = sphi 0, %s53
    %s68 = sphi 0, %s54
    %s72 = sphi 0, %s72
    %s74 = sphi 0, %s72
    %s75 = sphi 0, %s74
    %s89 = sphi 0, %s75
    %s93 = sphi 0, %s93
    %s95 = sphi 0, %s93
    %s96 = sphi 0, %s95
    %s110 = sphi 0, %s96
    %s114 = sphi 0, %s114
    %s116 = sphi 0, %s114
    %s117 = sphi 0, %s116
    %s131 = sphi 0, %s117
    %s135 = sphi 0, %s135
    %s137 = sphi 0, %s135
    %s138 = sphi 0, %s137
    %s152 = sphi 0, %s138
    %s156 = sphi 0, %s156
    %s158 = sphi 0, %s156
    %s159 = sphi 0, %s158
    %s173 = sphi 0, %s159
    %s177 = sphi 0, %s177
    %s179 = sphi 0, %s177
    %s180 = sphi 0, %s179
    %s194 = sphi 0, %s180
    %s198 = sphi 0, %s198
    %s200 = sphi 0, %s198
    %s201 = sphi 0, %s200
    %s215 = sphi 0, %s201
    %s221 = sphi 0, %s223
    %s224 = sphi 0, %s221
    %s225 = sphi 0, %s224
    %s241 = sphi 0, %s225
  $region4: #{tpu_custom_call.1} parent=0 // loop_header_branch
    %20 = sbr.rel (%p18) target = $region8
  $region5: #{tpu_custom_call.1} parent=0 // loop_body
    %s22 = ssub.s32 %s17, 1
    %s23 = ssub.s32 %s17, 2
    %s24 = sadd.s32 %s17, 1
    %s25 = ssub.s32 %s17, %s24
    %p26 = scmp.eq.s32.totalorder %s25, 0
    %s28 = sadd.s32 %s27, 1
    %s29 = scalar_select %p26, %s27, %s28
    %p32 = pneg %p26
    %p33 = scmp.eq.s32.totalorder %s17, 1
    %p34 = por %p32, %p33
    %p35 = scmp.ne.s32.totalorder %s27, %s30
    %p36 = scmp.eq.s32.totalorder %s17, 0
    %p37 = por %p35, %p36
    %p38 = scmp.ne.s32.totalorder %s27, %s30
    %p39 = scmp.eq.s32.totalorder %s22, 1
    %p40 = por %p38, %p39
    %p41 = scmp.ne.s32.totalorder %s30, %s31
    %p42 = scmp.eq.s32.totalorder %s22, 0
    %p43 = por %p41, %p42
    %p44 = scmp.ne.s32.totalorder %s30, %s31
    %p45 = scmp.eq.s32.totalorder %s23, 1
    %p46 = por %p44, %p45
    %p48 = scmp.ne.s32.totalorder %s31, %s47
    %p49 = scmp.eq.s32.totalorder %s23, 0
    %p50 = por %p48, %p49
    %s52 = sadd.s32 %s51, 1
    %p55 = scmp.eq.s32.totalorder %s17, 1
    %p56 = scmp.ne.s32.totalorder %s51, %s53
    %p57 = scmp.eq.s32.totalorder %s17, 0
    %p58 = por %p56, %p57
    %p59 = scmp.ne.s32.totalorder %s51, %s53
    %p60 = scmp.eq.s32.totalorder %s22, 1
    %p61 = por %p59, %p60
    %p62 = scmp.ne.s32.totalorder %s53, %s54
    %p63 = scmp.eq.s32.totalorder %s22, 0
    %p64 = por %p62, %p63
    %p65 = scmp.ne.s32.totalorder %s53, %s54
    %p66 = scmp.eq.s32.totalorder %s23, 1
    %p67 = por %p65, %p66
    %p69 = scmp.ne.s32.totalorder %s54, %s68
    %p70 = scmp.eq.s32.totalorder %s23, 0
    %p71 = por %p69, %p70
    %s73 = sadd.s32 %s72, 1
    %p76 = scmp.eq.s32.totalorder %s17, 1
    %p77 = scmp.ne.s32.totalorder %s72, %s74
    %p78 = scmp.eq.s32.totalorder %s17, 0
    %p79 = por %p77, %p78
    %p80 = scmp.ne.s32.totalorder %s72, %s74
    %p81 = scmp.eq.s32.totalorder %s22, 1
    %p82 = por %p80, %p81
    %p83 = scmp.ne.s32.totalorder %s74, %s75
    %p84 = scmp.eq.s32.totalorder %s22, 0
    %p85 = por %p83, %p84
    %p86 = scmp.ne.s32.totalorder %s74, %s75
    %p87 = scmp.eq.s32.totalorder %s23, 1
    %p88 = por %p86, %p87
    %p90 = scmp.ne.s32.totalorder %s75, %s89
    %p91 = scmp.eq.s32.totalorder %s23, 0
    %p92 = por %p90, %p91
    %s94 = sadd.s32 %s93, 1
    %p97 = scmp.eq.s32.totalorder %s17, 1
    %p98 = scmp.ne.s32.totalorder %s93, %s95
    %p99 = scmp.eq.s32.totalorder %s17, 0
    %p100 = por %p98, %p99
    %p101 = scmp.ne.s32.totalorder %s93, %s95
    %p102 = scmp.eq.s32.totalorder %s22, 1
    %p103 = por %p101, %p102
    %p104 = scmp.ne.s32.totalorder %s95, %s96
    %p105 = scmp.eq.s32.totalorder %s22, 0
    %p106 = por %p104, %p105
    %p107 = scmp.ne.s32.totalorder %s95, %s96
    %p108 = scmp.eq.s32.totalorder %s23, 1
    %p109 = por %p107, %p108
    %p111 = scmp.ne.s32.totalorder %s96, %s110
    %p112 = scmp.eq.s32.totalorder %s23, 0
    %p113 = por %p111, %p112
    %s115 = sadd.s32 %s114, 1
    %p118 = scmp.eq.s32.totalorder %s17, 1
    %p119 = scmp.ne.s32.totalorder %s114, %s116
    %p120 = scmp.eq.s32.totalorder %s17, 0
    %p121 = por %p119, %p120
    %p122 = scmp.ne.s32.totalorder %s114, %s116
    %p123 = scmp.eq.s32.totalorder %s22, 1
    %p124 = por %p122, %p123
    %p125 = scmp.ne.s32.totalorder %s116, %s117
    %p126 = scmp.eq.s32.totalorder %s22, 0
    %p127 = por %p125, %p126
    %p128 = scmp.ne.s32.totalorder %s116, %s117
    %p129 = scmp.eq.s32.totalorder %s23, 1
    %p130 = por %p128, %p129
    %p132 = scmp.ne.s32.totalorder %s117, %s131
    %p133 = scmp.eq.s32.totalorder %s23, 0
    %p134 = por %p132, %p133
    %s136 = sadd.s32 %s135, 1
    %p139 = scmp.eq.s32.totalorder %s17, 1
    %p140 = scmp.ne.s32.totalorder %s135, %s137
    %p141 = scmp.eq.s32.totalorder %s17, 0
    %p142 = por %p140, %p141
    %p143 = scmp.ne.s32.totalorder %s135, %s137
    %p144 = scmp.eq.s32.totalorder %s22, 1
    %p145 = por %p143, %p144
    %p146 = scmp.ne.s32.totalorder %s137, %s138
    %p147 = scmp.eq.s32.totalorder %s22, 0
    %p148 = por %p146, %p147
    %p149 = scmp.ne.s32.totalorder %s137, %s138
    %p150 = scmp.eq.s32.totalorder %s23, 1
    %p151 = por %p149, %p150
    %p153 = scmp.ne.s32.totalorder %s138, %s152
    %p154 = scmp.eq.s32.totalorder %s23, 0
    %p155 = por %p153, %p154
    %s157 = sadd.s32 %s156, 1
    %p160 = scmp.eq.s32.totalorder %s17, 1
    %p161 = scmp.ne.s32.totalorder %s156, %s158
    %p162 = scmp.eq.s32.totalorder %s17, 0
    %p163 = por %p161, %p162
    %p164 = scmp.ne.s32.totalorder %s156, %s158
    %p165 = scmp.eq.s32.totalorder %s22, 1
    %p166 = por %p164, %p165
    %p167 = scmp.ne.s32.totalorder %s158, %s159
    %p168 = scmp.eq.s32.totalorder %s22, 0
    %p169 = por %p167, %p168
    %p170 = scmp.ne.s32.totalorder %s158, %s159
    %p171 = scmp.eq.s32.totalorder %s23, 1
    %p172 = por %p170, %p171
    %p174 = scmp.ne.s32.totalorder %s159, %s173
    %p175 = scmp.eq.s32.totalorder %s23, 0
    %p176 = por %p174, %p175
    %s178 = sadd.s32 %s177, 1
    %p181 = scmp.eq.s32.totalorder %s17, 1
    %p182 = scmp.ne.s32.totalorder %s177, %s179
    %p183 = scmp.eq.s32.totalorder %s17, 0
    %p184 = por %p182, %p183
    %p185 = scmp.ne.s32.totalorder %s177, %s179
    %p186 = scmp.eq.s32.totalorder %s22, 1
    %p187 = por %p185, %p186
    %p188 = scmp.ne.s32.totalorder %s179, %s180
    %p189 = scmp.eq.s32.totalorder %s22, 0
    %p190 = por %p188, %p189
    %p191 = scmp.ne.s32.totalorder %s179, %s180
    %p192 = scmp.eq.s32.totalorder %s23, 1
    %p193 = por %p191, %p192
    %p195 = scmp.ne.s32.totalorder %s180, %s194
    %p196 = scmp.eq.s32.totalorder %s23, 0
    %p197 = por %p195, %p196
    %s199 = sadd.s32 %s198, 1
    %p202 = scmp.eq.s32.totalorder %s17, 1
    %p203 = scmp.ne.s32.totalorder %s198, %s200
    %p204 = scmp.eq.s32.totalorder %s17, 0
    %p205 = por %p203, %p204
    %p206 = scmp.ne.s32.totalorder %s198, %s200
    %p207 = scmp.eq.s32.totalorder %s22, 1
    %p208 = por %p206, %p207
    %p209 = scmp.ne.s32.totalorder %s200, %s201
    %p210 = scmp.eq.s32.totalorder %s22, 0
    %p211 = por %p209, %p210
    %p212 = scmp.ne.s32.totalorder %s200, %s201
    %p213 = scmp.eq.s32.totalorder %s23, 1
    %p214 = por %p212, %p213
    %p216 = scmp.ne.s32.totalorder %s201, %s215
    %p217 = scmp.eq.s32.totalorder %s23, 0
    %p218 = por %p216, %p217
    %s219 = ssub.s32 %s17, %s24
    %p220 = scmp.eq.s32.totalorder %s219, 0
    %s222 = sadd.s32 %s221, 1
    %s223 = scalar_select %p220, %s221, %s222
    %p226 = pneg %p220
    %p227 = scmp.eq.s32.totalorder %s17, 1
    %p228 = por %p226, %p227
    %p229 = scmp.ne.s32.totalorder %s221, %s224
    %p230 = scmp.eq.s32.totalorder %s17, 0
    %p231 = por %p229, %p230
    %p232 = scmp.ne.s32.totalorder %s221, %s224
    %p233 = scmp.eq.s32.totalorder %s22, 1
    %p234 = por %p232, %p233
    %p235 = scmp.ne.s32.totalorder %s224, %s225
    %p236 = scmp.eq.s32.totalorder %s22, 0
    %p237 = por %p235, %p236
    %p238 = scmp.ne.s32.totalorder %s224, %s225
    %p239 = scmp.eq.s32.totalorder %s23, 1
    %p240 = por %p238, %p239
    %p242 = scmp.ne.s32.totalorder %s225, %s241
    %p243 = scmp.eq.s32.totalorder %s23, 0
    %p244 = por %p242, %p243
    %p245 = scmp.le.s32.totalorder 1, %s17
    %p246 = scmp.lt.s32.totalorder %s17, 3
    %p247 = pnand %p245, %p246
    %p248 = pneg %p247
    // Predicated region
    $region9: #{tpu_custom_call.1} parent=5 // pred_check
      _
    $region10: #{tpu_custom_call.1} parent=5 // pred_check_branch
      %250 = sbr.rel (%p247) target = $region12
    $region11: #{tpu_custom_call.1} parent=5 // pred_region
      %s251 = ssub.s32 %s17, 1
      // Predicated region
      $region13: #{tpu_custom_call.1} parent=11 // pred_check
        %p252 = pneg %p64
      $region14: #{tpu_custom_call.1} parent=11 // pred_check_branch
        %254 = sbr.rel (%p252) target = $region16
      $region15: #{tpu_custom_call.1} parent=11 // pred_region
        _
      $region16: #{tpu_custom_call.1} parent=11 // pred_fallthru
        _
      // Predicated region
      $region17: #{tpu_custom_call.1} parent=11 // pred_check
        %p255 = pneg %p85
      $region18: #{tpu_custom_call.1} parent=11 // pred_check_branch
        %257 = sbr.rel (%p255) target = $region20
      $region19: #{tpu_custom_call.1} parent=11 // pred_region
        _
      $region20: #{tpu_custom_call.1} parent=11 // pred_fallthru
        _
      // Predicated region
      $region21: #{tpu_custom_call.1} parent=11 // pred_check
        %p258 = pneg %p106
      $region22: #{tpu_custom_call.1} parent=11 // pred_check_branch
        %260 = sbr.rel (%p258) target = $region24
      $region23: #{tpu_custom_call.1} parent=11 // pred_region
        _
      $region24: #{tpu_custom_call.1} parent=11 // pred_fallthru
        _
      // Predicated region
      $region25: #{tpu_custom_call.1} parent=11 // pred_check
        %p261 = pneg %p127
      $region26: #{tpu_custom_call.1} parent=11 // pred_check_branch
        %263 = sbr.rel (%p261) target = $region28
      $region27: #{tpu_custom_call.1} parent=11 // pred_region
        _
      $region28: #{tpu_custom_call.1} parent=11 // pred_fallthru
        _
      // Predicated region
      $region29: #{tpu_custom_call.1} parent=11 // pred_check
        %p264 = pneg %p148
      $region30: #{tpu_custom_call.1} parent=11 // pred_check_branch
        %266 = sbr.rel (%p264) target = $region32
      $region31: #{tpu_custom_call.1} parent=11 // pred_region
        _
      $region32: #{tpu_custom_call.1} parent=11 // pred_fallthru
        _
      // Predicated region
      $region33: #{tpu_custom_call.1} parent=11 // pred_check
        %p267 = pneg %p169
      $region34: #{tpu_custom_call.1} parent=11 // pred_check_branch
        %269 = sbr.rel (%p267) target = $region36
      $region35: #{tpu_custom_call.1} parent=11 // pred_region
        _
      $region36: #{tpu_custom_call.1} parent=11 // pred_fallthru
        _
      // Predicated region
      $region37: #{tpu_custom_call.1} parent=11 // pred_check
        %p270 = pneg %p190
      $region38: #{tpu_custom_call.1} parent=11 // pred_check_branch
        %272 = sbr.rel (%p270) target = $region40
      $region39: #{tpu_custom_call.1} parent=11 // pred_region
        _
      $region40: #{tpu_custom_call.1} parent=11 // pred_fallthru
        _
      // Predicated region
      $region41: #{tpu_custom_call.1} parent=11 // pred_check
        %p273 = pneg %p211
      $region42: #{tpu_custom_call.1} parent=11 // pred_check_branch
        %275 = sbr.rel (%p273) target = $region44
      $region43: #{tpu_custom_call.1} parent=11 // pred_region
        _
      $region44: #{tpu_custom_call.1} parent=11 // pred_fallthru
        _
    $region12: #{tpu_custom_call.1} parent=5 // pred_fallthru
      _
    %p276 = scmp.lt.s32.totalorder %s17, 2
    // Predicated region
    $region45: #{tpu_custom_call.1} parent=5 // pred_check
      %p277 = pneg %p276
    $region46: #{tpu_custom_call.1} parent=5 // pred_check_branch
      %279 = sbr.rel (%p277) target = $region48
    $region47: #{tpu_custom_call.1} parent=5 // pred_region
      // Predicated region
      $region49: #{tpu_custom_call.1} parent=47 // pred_check
        %p280 = pneg %p37
      $region50: #{tpu_custom_call.1} parent=47 // pred_check_branch
        %282 = sbr.rel (%p280) target = $region52
      $region51: #{tpu_custom_call.1} parent=47 // pred_region
        %s283 = smul.u32 32, %s17
        %p284 = scmp.lt.s32.totalorder %s283, 63
        %s285 = scalar_select %p284, %s283, 63
        %s286 = smul.addr %s285, 8
        %s287 = scalar_lea.vmem %s0, %s286
        %s288 = smul.u32 32, %s17
      $region52: #{tpu_custom_call.1} parent=47 // pred_fallthru
        _
    $region48: #{tpu_custom_call.1} parent=5 // pred_fallthru
      _
    %p289 = scmp.le.s32.totalorder 1, %s17
    %p290 = scmp.lt.s32.totalorder %s17, 3
    %p291 = pnand %p289, %p290
    %p292 = pneg %p291
    // Predicated region
    $region53: #{tpu_custom_call.1} parent=5 // pred_check
      _
    $region54: #{tpu_custom_call.1} parent=5 // pred_check_branch
      %294 = sbr.rel (%p291) target = $region56
    $region55: #{tpu_custom_call.1} parent=5 // pred_region
      %s295 = ssub.s32 %s17, 1
      %s296 = smul.u32 32, %s22
      %p297 = scmp.lt.s32.totalorder %s296, 63
      %s298 = scalar_select %p297, %s296, 63
      %s299 = smul.addr %s298, 8
      %s300 = scalar_lea.vmem %s0, %s299
      %p301 = pneg %p43
      %p302 = pneg %p40
      %p303 = pneg %p64
      %p304 = pneg %p61
      %p305 = pneg %p85
      %p306 = pneg %p82
      %p307 = pneg %p106
      %p308 = pneg %p103
      %p309 = pneg %p127
      %p310 = pneg %p124
      %p311 = pneg %p148
      %p312 = pneg %p145
      %p313 = pneg %p169
      %p314 = pneg %p166
      %p315 = pneg %p190
      %p316 = pneg %p187
      %p317 = pneg %p211
      %p318 = pneg %p208
      %p319 = pneg %p237
      %p320 = pneg %p234
      %s321 = smul.u32 32, %s22
      %p322 = scmp.lt.s32.totalorder %s321, 63
      %s323 = scalar_select %p322, %s321, 63
      %s324 = smul.addr %s323, 8
      %s325 = scalar_lea.vmem %s9, %s324
      %s326 = smul.u32 32, %s22
      %p327 = scmp.lt.s32.totalorder %s326, 63
      %s328 = scalar_select %p327, %s326, 63
      %s329 = smul.addr %s328, 8
      %s330 = scalar_lea.vmem %s0, %s329
      %s331 = smul.u32 32, %s22
      %s332 = smul.u32 32, %s22
      %p333 = scmp.lt.s32.totalorder %s332, 63
      %s334 = scalar_select %p333, %s332, 63
      %s335 = smul.addr %s334, 8
      %s336 = scalar_lea.vmem %s9, %s335
      %s337 = smul.u32 32, %s22
      %v339 = vld [vmem:[%s330] sm:$0xff]
      %v340 = vld [vmem:[%s330 + $0x8] sm:$0xff]
      %v341 = vld [vmem:[%s330 + $0x10] sm:$0xff]
      %v342 = vld [vmem:[%s330 + $0x18] sm:$0xff]
      %v343 = vld [vmem:[%s330 + $0x20] sm:$0xff]
      %v344 = vld [vmem:[%s330 + $0x28] sm:$0xff]
      %v345 = vld [vmem:[%s330 + $0x30] sm:$0xff]
      %v346 = vld [vmem:[%s330 + $0x38] sm:$0xff]
      %v347 = vld [vmem:[%s330 + $0x40] sm:$0xff]
      %v348 = vld [vmem:[%s330 + $0x48] sm:$0xff]
      %v349 = vld [vmem:[%s330 + $0x50] sm:$0xff]
      %v350 = vld [vmem:[%s330 + $0x58] sm:$0xff]
      %v351 = vld [vmem:[%s330 + $0x60] sm:$0xff]
      %v352 = vld [vmem:[%s330 + $0x68] sm:$0xff]
      %v353 = vld [vmem:[%s330 + $0x70] sm:$0xff]
      %v354 = vld [vmem:[%s330 + $0x78] sm:$0xff]
      %v355 = vld [vmem:[%s330 + $0x80] sm:$0xff]
      %v356 = vld [vmem:[%s330 + $0x88] sm:$0xff]
      %v357 = vld [vmem:[%s330 + $0x90] sm:$0xff]
      %v358 = vld [vmem:[%s330 + $0x98] sm:$0xff]
      %v359 = vld [vmem:[%s330 + $0xa0] sm:$0xff]
      %v360 = vld [vmem:[%s330 + $0xa8] sm:$0xff]
      %v361 = vld [vmem:[%s330 + $0xb0] sm:$0xff]
      %v362 = vld [vmem:[%s330 + $0xb8] sm:$0xff]
      %v363 = vld [vmem:[%s330 + $0xc0] sm:$0xff]
      %v364 = vld [vmem:[%s330 + $0xc8] sm:$0xff]
      %v365 = vld [vmem:[%s330 + $0xd0] sm:$0xff]
      %v366 = vld [vmem:[%s330 + $0xd8] sm:$0xff]
      %v367 = vld [vmem:[%s330 + $0xe0] sm:$0xff]
      %v368 = vld [vmem:[%s330 + $0xe8] sm:$0xff]
      %v369 = vld [vmem:[%s330 + $0xf0] sm:$0xff]
      %v370 = vld [vmem:[%s330 + $0xf8] sm:$0xff]
      %v371 = vpack.c.bf16 %v340, %v339
      %v372 = vpack.c.bf16 %v342, %v341
      %v373 = vpack.c.bf16 %v344, %v343
      %v374 = vpack.c.bf16 %v346, %v345
      %v375 = vpack.c.bf16 %v348, %v347
      %v376 = vpack.c.bf16 %v350, %v349
      %v377 = vpack.c.bf16 %v352, %v351
      %v378 = vpack.c.bf16 %v354, %v353
      %v379 = vpack.c.bf16 %v356, %v355
      %v380 = vpack.c.bf16 %v358, %v357
      %v381 = vpack.c.bf16 %v360, %v359
      %v382 = vpack.c.bf16 %v362, %v361
      %v383 = vpack.c.bf16 %v364, %v363
      %v384 = vpack.c.bf16 %v366, %v365
      %v385 = vpack.c.bf16 %v368, %v367
      %v386 = vpack.c.bf16 %v370, %v369
      %v387 = vld [vmem:[%s1] sm:$0xff]
      %v388 = vld [vmem:[%s1 + $0x8] sm:$0xff]
      %v389 = vld [vmem:[%s1 + $0x10] sm:$0xff]
      %v390 = vld [vmem:[%s1 + $0x18] sm:$0xff]
      %v391 = vld [vmem:[%s1 + $0x20] sm:$0xff]
      %v392 = vld [vmem:[%s1 + $0x28] sm:$0xff]
      %v393 = vld [vmem:[%s1 + $0x30] sm:$0xff]
      %v394 = vld [vmem:[%s1 + $0x38] sm:$0xff]
      %v395 = vld [vmem:[%s2] sm:$0x3]
      %v397 = vperm.slane %v395, 0
      %v398 = vperm.slane %v395, 1
      %v409 = vunpack.c.l.b16 %v387
      %v410 = vunpack.c.h.b16 %v387
      %v411 = vunpack.c.l.b16 %v388
      %v412 = vunpack.c.h.b16 %v388
      %v413 = vunpack.c.l.b16 %v389
      %v414 = vunpack.c.h.b16 %v389
      %v415 = vunpack.c.l.b16 %v390
      %v416 = vunpack.c.h.b16 %v390
      %v417 = vunpack.c.l.b16 %v391
      %v418 = vunpack.c.h.b16 %v391
      %v419 = vunpack.c.l.b16 %v392
      %v420 = vunpack.c.h.b16 %v392
      %v421 = vunpack.c.l.b16 %v393
      %v422 = vunpack.c.h.b16 %v393
      %v423 = vunpack.c.l.b16 %v394
      %v424 = vunpack.c.h.b16 %v394
      %v425 = vpack.c.b16 %v411, %v409
      %v426 = vpack.c.b16 %v412, %v410
      %v427 = vpack.c.b16 %v415, %v413
      %v428 = vpack.c.b16 %v416, %v414
      %v429 = vpack.c.b16 %v419, %v417
      %v430 = vpack.c.b16 %v420, %v418
      %v431 = vpack.c.b16 %v423, %v421
      %v432 = vpack.c.b16 %v424, %v422
      %vm441 = vcmask 523264
      %v443 = vsel %vm441, %v371, 0
      %v446 = vsel %vm441, %v372, 0
      %v449 = vsel %vm441, %v373, 0
      %v452 = vsel %vm441, %v374, 0
      %v455 = vsel %vm441, %v375, 0
      %v458 = vsel %vm441, %v376, 0
      %v461 = vsel %vm441, %v377, 0
      %v464 = vsel %vm441, %v378, 0
      %v467 = vsel %vm441, %v379, 0
      %v470 = vsel %vm441, %v380, 0
      %v473 = vsel %vm441, %v381, 0
      %v476 = vsel %vm441, %v382, 0
      %v479 = vsel %vm441, %v383, 0
      %v482 = vsel %vm441, %v384, 0
      %v485 = vsel %vm441, %v385, 0
      %v488 = vsel %vm441, %v386, 0
      %490 = vmatpush.bf16.msra.mxu0 0
      %491 = vmatpush.bf16.msra.mxu0 0
      %492 = vmatpush.bf16.msra.mxu0 0
      %493 = vmatpush.bf16.msra.mxu0 0
      %494 = vmatpush.bf16.msra.mxu0 %v431
      %495 = vmatpush.bf16.msra.mxu0 %v429
      %496 = vmatpush.bf16.msra.mxu0 %v427
      %497 = vmatpush.bf16.msra.mxu0 %v425
      %498 = vmatmul.bf16.gmra.mxu0 %v443
      %v499 = vpop.f32.mrf.mxu0
      %v500 = vadd.f32 %v397, %v499
      %v501 = vpop.f32.mrf.mxu0
      %v502 = vadd.f32 %v397, %v501
      %503 = vmatmul.bf16.gmra.mxu0 %v446
      %v504 = vpop.f32.mrf.mxu0
      %v505 = vadd.f32 %v397, %v504
      %v506 = vpop.f32.mrf.mxu0
      %v507 = vadd.f32 %v397, %v506
      %508 = vmatmul.bf16.gmra.mxu0 %v449
      %v509 = vpop.f32.mrf.mxu0
      %v510 = vadd.f32 %v397, %v509
      %v511 = vpop.f32.mrf.mxu0
      %v512 = vadd.f32 %v397, %v511
      %513 = vmatmul.bf16.gmra.mxu0 %v452
      %v514 = vpop.f32.mrf.mxu0
      %v515 = vadd.f32 %v397, %v514
      %v516 = vpop.f32.mrf.mxu0
      %v517 = vadd.f32 %v397, %v516
      %518 = vmatmul.bf16.gmra.mxu0 %v455
      %v519 = vpop.f32.mrf.mxu0
      %v520 = vadd.f32 %v397, %v519
      %v521 = vpop.f32.mrf.mxu0
      %v522 = vadd.f32 %v397, %v521
      %523 = vmatmul.bf16.gmra.mxu0 %v458
      %v524 = vpop.f32.mrf.mxu0
      %v525 = vadd.f32 %v397, %v524
      %v526 = vpop.f32.mrf.mxu0
      %v527 = vadd.f32 %v397, %v526
      %528 = vmatmul.bf16.gmra.mxu0 %v461
      %v529 = vpop.f32.mrf.mxu0
      %v530 = vadd.f32 %v397, %v529
      %v531 = vpop.f32.mrf.mxu0
      %v532 = vadd.f32 %v397, %v531
      %533 = vmatmul.bf16.gmra.mxu0 %v464
      %v534 = vpop.f32.mrf.mxu0
      %v535 = vadd.f32 %v397, %v534
      %v536 = vpop.f32.mrf.mxu0
      %v537 = vadd.f32 %v397, %v536
      %538 = vmatmul.bf16.gmra.mxu0 %v467
      %v539 = vpop.f32.mrf.mxu0
      %v540 = vadd.f32 %v397, %v539
      %v541 = vpop.f32.mrf.mxu0
      %v542 = vadd.f32 %v397, %v541
      %543 = vmatmul.bf16.gmra.mxu0 %v470
      %v544 = vpop.f32.mrf.mxu0
      %v545 = vadd.f32 %v397, %v544
      %v546 = vpop.f32.mrf.mxu0
      %v547 = vadd.f32 %v397, %v546
      %548 = vmatmul.bf16.gmra.mxu0 %v473
      %v549 = vpop.f32.mrf.mxu0
      %v550 = vadd.f32 %v397, %v549
      %v551 = vpop.f32.mrf.mxu0
      %v552 = vadd.f32 %v397, %v551
      %553 = vmatmul.bf16.gmra.mxu0 %v476
      %v554 = vpop.f32.mrf.mxu0
      %v555 = vadd.f32 %v397, %v554
      %v556 = vpop.f32.mrf.mxu0
      %v557 = vadd.f32 %v397, %v556
      %558 = vmatmul.bf16.gmra.mxu0 %v479
      %v559 = vpop.f32.mrf.mxu0
      %v560 = vadd.f32 %v397, %v559
      %v561 = vpop.f32.mrf.mxu0
      %v562 = vadd.f32 %v397, %v561
      %563 = vmatmul.bf16.gmra.mxu0 %v482
      %v564 = vpop.f32.mrf.mxu0
      %v565 = vadd.f32 %v397, %v564
      %v566 = vpop.f32.mrf.mxu0
      %v567 = vadd.f32 %v397, %v566
      %568 = vmatmul.bf16.gmra.mxu0 %v485
      %v569 = vpop.f32.mrf.mxu0
      %v570 = vadd.f32 %v397, %v569
      %v571 = vpop.f32.mrf.mxu0
      %v572 = vadd.f32 %v397, %v571
      %573 = vmatmul.bf16.gmra.mxu0 %v488
      %v574 = vpop.f32.mrf.mxu0
      %v575 = vadd.f32 %v397, %v574
      %v576 = vpop.f32.mrf.mxu0
      %v577 = vadd.f32 %v397, %v576
      %578 = vdwg.mxu0
      %579 = vmatpush.bf16.msra.mxu0 0
      %580 = vmatpush.bf16.msra.mxu0 0
      %581 = vmatpush.bf16.msra.mxu0 0
      %582 = vmatpush.bf16.msra.mxu0 0
      %583 = vmatpush.bf16.msra.mxu0 %v432
      %584 = vmatpush.bf16.msra.mxu0 %v430
      %585 = vmatpush.bf16.msra.mxu0 %v428
      %586 = vmatpush.bf16.msra.mxu0 %v426
      %587 = vmatmul.bf16.gmra.mxu0 %v443
      %v588 = vpop.f32.mrf.mxu0
      %v589 = vadd.f32 %v398, %v588
      %v590 = vpop.f32.mrf.mxu0
      %v591 = vadd.f32 %v398, %v590
      %592 = vmatmul.bf16.gmra.mxu0 %v446
      %v593 = vpop.f32.mrf.mxu0
      %v594 = vadd.f32 %v398, %v593
      %v595 = vpop.f32.mrf.mxu0
      %v596 = vadd.f32 %v398, %v595
      %597 = vmatmul.bf16.gmra.mxu0 %v449
      %v598 = vpop.f32.mrf.mxu0
      %v599 = vadd.f32 %v398, %v598
      %v600 = vpop.f32.mrf.mxu0
      %v601 = vadd.f32 %v398, %v600
      %602 = vmatmul.bf16.gmra.mxu0 %v452
      %v603 = vpop.f32.mrf.mxu0
      %v604 = vadd.f32 %v398, %v603
      %v605 = vpop.f32.mrf.mxu0
      %v606 = vadd.f32 %v398, %v605
      %607 = vmatmul.bf16.gmra.mxu0 %v455
      %v608 = vpop.f32.mrf.mxu0
      %v609 = vadd.f32 %v398, %v608
      %v610 = vpop.f32.mrf.mxu0
      %v611 = vadd.f32 %v398, %v610
      %612 = vmatmul.bf16.gmra.mxu0 %v458
      %v613 = vpop.f32.mrf.mxu0
      %v614 = vadd.f32 %v398, %v613
      %v615 = vpop.f32.mrf.mxu0
      %v616 = vadd.f32 %v398, %v615
      %617 = vmatmul.bf16.gmra.mxu0 %v461
      %v618 = vpop.f32.mrf.mxu0
      %v619 = vadd.f32 %v398, %v618
      %v620 = vpop.f32.mrf.mxu0
      %v621 = vadd.f32 %v398, %v620
      %622 = vmatmul.bf16.gmra.mxu0 %v464
      %v623 = vpop.f32.mrf.mxu0
      %v624 = vadd.f32 %v398, %v623
      %v625 = vpop.f32.mrf.mxu0
      %v626 = vadd.f32 %v398, %v625
      %627 = vmatmul.bf16.gmra.mxu0 %v467
      %v628 = vpop.f32.mrf.mxu0
      %v629 = vadd.f32 %v398, %v628
      %v630 = vpop.f32.mrf.mxu0
      %v631 = vadd.f32 %v398, %v630
      %632 = vmatmul.bf16.gmra.mxu0 %v470
      %v633 = vpop.f32.mrf.mxu0
      %v634 = vadd.f32 %v398, %v633
      %v635 = vpop.f32.mrf.mxu0
      %v636 = vadd.f32 %v398, %v635
      %637 = vmatmul.bf16.gmra.mxu0 %v473
      %v638 = vpop.f32.mrf.mxu0
      %v639 = vadd.f32 %v398, %v638
      %v640 = vpop.f32.mrf.mxu0
      %v641 = vadd.f32 %v398, %v640
      %642 = vmatmul.bf16.gmra.mxu0 %v476
      %v643 = vpop.f32.mrf.mxu0
      %v644 = vadd.f32 %v398, %v643
      %v645 = vpop.f32.mrf.mxu0
      %v646 = vadd.f32 %v398, %v645
      %647 = vmatmul.bf16.gmra.mxu0 %v479
      %v648 = vpop.f32.mrf.mxu0
      %v649 = vadd.f32 %v398, %v648
      %v650 = vpop.f32.mrf.mxu0
      %v651 = vadd.f32 %v398, %v650
      %652 = vmatmul.bf16.gmra.mxu0 %v482
      %v653 = vpop.f32.mrf.mxu0
      %v654 = vadd.f32 %v398, %v653
      %v655 = vpop.f32.mrf.mxu0
      %v656 = vadd.f32 %v398, %v655
      %657 = vmatmul.bf16.gmra.mxu0 %v485
      %v658 = vpop.f32.mrf.mxu0
      %v659 = vadd.f32 %v398, %v658
      %v660 = vpop.f32.mrf.mxu0
      %v661 = vadd.f32 %v398, %v660
      %662 = vmatmul.bf16.gmra.mxu0 %v488
      %v663 = vpop.f32.mrf.mxu0
      %v664 = vadd.f32 %v398, %v663
      %v665 = vpop.f32.mrf.mxu0
      %v666 = vadd.f32 %v398, %v665
      %667 = vdwg.mxu0
      %v668 = vmax.f32 %v500, 0.0
      %v669 = vmax.f32 %v589, 0.0
      %v670 = vmax.f32 %v502, 0.0
      %v671 = vmax.f32 %v591, 0.0
      %v672 = vmax.f32 %v505, 0.0
      %v673 = vmax.f32 %v594, 0.0
      %v674 = vmax.f32 %v507, 0.0
      %v675 = vmax.f32 %v596, 0.0
      %v676 = vmax.f32 %v510, 0.0
      %v677 = vmax.f32 %v599, 0.0
      %v678 = vmax.f32 %v512, 0.0
      %v679 = vmax.f32 %v601, 0.0
      %v680 = vmax.f32 %v515, 0.0
      %v681 = vmax.f32 %v604, 0.0
      %v682 = vmax.f32 %v517, 0.0
      %v683 = vmax.f32 %v606, 0.0
      %v684 = vmax.f32 %v520, 0.0
      %v685 = vmax.f32 %v609, 0.0
      %v686 = vmax.f32 %v522, 0.0
      %v687 = vmax.f32 %v611, 0.0
      %v688 = vmax.f32 %v525, 0.0
      %v689 = vmax.f32 %v614, 0.0
      %v690 = vmax.f32 %v527, 0.0
      %v691 = vmax.f32 %v616, 0.0
      %v692 = vmax.f32 %v530, 0.0
      %v693 = vmax.f32 %v619, 0.0
      %v694 = vmax.f32 %v532, 0.0
      %v695 = vmax.f32 %v621, 0.0
      %v696 = vmax.f32 %v535, 0.0
      %v697 = vmax.f32 %v624, 0.0
      %v698 = vmax.f32 %v537, 0.0
      %v699 = vmax.f32 %v626, 0.0
      %v700 = vmax.f32 %v540, 0.0
      %v701 = vmax.f32 %v629, 0.0
      %v702 = vmax.f32 %v542, 0.0
      %v703 = vmax.f32 %v631, 0.0
      %v704 = vmax.f32 %v545, 0.0
      %v705 = vmax.f32 %v634, 0.0
      %v706 = vmax.f32 %v547, 0.0
      %v707 = vmax.f32 %v636, 0.0
      %v708 = vmax.f32 %v550, 0.0
      %v709 = vmax.f32 %v639, 0.0
      %v710 = vmax.f32 %v552, 0.0
      %v711 = vmax.f32 %v641, 0.0
      %v712 = vmax.f32 %v555, 0.0
      %v713 = vmax.f32 %v644, 0.0
      %v714 = vmax.f32 %v557, 0.0
      %v715 = vmax.f32 %v646, 0.0
      %v716 = vmax.f32 %v560, 0.0
      %v717 = vmax.f32 %v649, 0.0
      %v718 = vmax.f32 %v562, 0.0
      %v719 = vmax.f32 %v651, 0.0
      %v720 = vmax.f32 %v565, 0.0
      %v721 = vmax.f32 %v654, 0.0
      %v722 = vmax.f32 %v567, 0.0
      %v723 = vmax.f32 %v656, 0.0
      %v724 = vmax.f32 %v570, 0.0
      %v725 = vmax.f32 %v659, 0.0
      %v726 = vmax.f32 %v572, 0.0
      %v727 = vmax.f32 %v661, 0.0
      %v728 = vmax.f32 %v575, 0.0
      %v729 = vmax.f32 %v664, 0.0
      %v730 = vmax.f32 %v577, 0.0
      %v731 = vmax.f32 %v666, 0.0
      %v732 = vpack.c.bf16 %v670, %v668
      %v733 = vpack.c.bf16 %v671, %v669
      %v734 = vpack.c.bf16 %v674, %v672
      %v735 = vpack.c.bf16 %v675, %v673
      %v736 = vpack.c.bf16 %v678, %v676
      %v737 = vpack.c.bf16 %v679, %v677
      %v738 = vpack.c.bf16 %v682, %v680
      %v739 = vpack.c.bf16 %v683, %v681
      %v740 = vpack.c.bf16 %v686, %v684
      %v741 = vpack.c.bf16 %v687, %v685
      %v742 = vpack.c.bf16 %v690, %v688
      %v743 = vpack.c.bf16 %v691, %v689
      %v744 = vpack.c.bf16 %v694, %v692
      %v745 = vpack.c.bf16 %v695, %v693
      %v746 = vpack.c.bf16 %v698, %v696
      %v747 = vpack.c.bf16 %v699, %v697
      %v748 = vpack.c.bf16 %v702, %v700
      %v749 = vpack.c.bf16 %v703, %v701
      %v750 = vpack.c.bf16 %v706, %v704
      %v751 = vpack.c.bf16 %v707, %v705
      %v752 = vpack.c.bf16 %v710, %v708
      %v753 = vpack.c.bf16 %v711, %v709
      %v754 = vpack.c.bf16 %v714, %v712
      %v755 = vpack.c.bf16 %v715, %v713
      %v756 = vpack.c.bf16 %v718, %v716
      %v757 = vpack.c.bf16 %v719, %v717
      %v758 = vpack.c.bf16 %v722, %v720
      %v759 = vpack.c.bf16 %v723, %v721
      %v760 = vpack.c.bf16 %v726, %v724
      %v761 = vpack.c.bf16 %v727, %v725
      %v762 = vpack.c.bf16 %v730, %v728
      %v763 = vpack.c.bf16 %v731, %v729
      %v764 = vld [vmem:[%s3] sm:$0xff]
      %v765 = vld [vmem:[%s3 + $0x8] sm:$0xff]
      %v766 = vld [vmem:[%s3 + $0x10] sm:$0xff]
      %v767 = vld [vmem:[%s3 + $0x18] sm:$0xff]
      %v768 = vld [vmem:[%s3 + $0x20] sm:$0xff]
      %v769 = vld [vmem:[%s3 + $0x28] sm:$0xff]
      %v770 = vld [vmem:[%s3 + $0x30] sm:$0xff]
      %v771 = vld [vmem:[%s3 + $0x38] sm:$0xff]
      %v772 = vld [vmem:[%s3 + $0x40] sm:$0xff]
      %v773 = vld [vmem:[%s3 + $0x48] sm:$0xff]
      %v774 = vld [vmem:[%s3 + $0x50] sm:$0xff]
      %v775 = vld [vmem:[%s3 + $0x58] sm:$0xff]
      %v776 = vld [vmem:[%s3 + $0x60] sm:$0xff]
      %v777 = vld [vmem:[%s3 + $0x68] sm:$0xff]
      %v778 = vld [vmem:[%s3 + $0x70] sm:$0xff]
      %v779 = vld [vmem:[%s3 + $0x78] sm:$0xff]
      %v780 = vld [vmem:[%s3 + $0x80] sm:$0xff]
      %v781 = vld [vmem:[%s3 + $0x88] sm:$0xff]
      %v782 = vld [vmem:[%s3 + $0x90] sm:$0xff]
      %v783 = vld [vmem:[%s3 + $0x98] sm:$0xff]
      %v784 = vld [vmem:[%s3 + $0xa0] sm:$0xff]
      %v785 = vld [vmem:[%s3 + $0xa8] sm:$0xff]
      %v786 = vld [vmem:[%s3 + $0xb0] sm:$0xff]
      %v787 = vld [vmem:[%s3 + $0xb8] sm:$0xff]
      %v788 = vld [vmem:[%s3 + $0xc0] sm:$0xff]
      %v789 = vld [vmem:[%s3 + $0xc8] sm:$0xff]
      %v790 = vld [vmem:[%s3 + $0xd0] sm:$0xff]
      %v791 = vld [vmem:[%s3 + $0xd8] sm:$0xff]
      %v792 = vld [vmem:[%s3 + $0xe0] sm:$0xff]
      %v793 = vld [vmem:[%s3 + $0xe8] sm:$0xff]
      %v794 = vld [vmem:[%s3 + $0xf0] sm:$0xff]
      %v795 = vld [vmem:[%s3 + $0xf8] sm:$0xff]
      %v796 = vld [vmem:[%s4] sm:$0x3]
      %v798 = vperm.slane %v796, 0
      %v799 = vperm.slane %v796, 1
      %v834 = vunpack.c.l.b16 %v764
      %v835 = vunpack.c.h.b16 %v764
      %v836 = vunpack.c.l.b16 %v765
      %v837 = vunpack.c.h.b16 %v765
      %v838 = vunpack.c.l.b16 %v766
      %v839 = vunpack.c.h.b16 %v766
      %v840 = vunpack.c.l.b16 %v767
      %v841 = vunpack.c.h.b16 %v767
      %v842 = vunpack.c.l.b16 %v768
      %v843 = vunpack.c.h.b16 %v768
      %v844 = vunpack.c.l.b16 %v769
      %v845 = vunpack.c.h.b16 %v769
      %v846 = vunpack.c.l.b16 %v770
      %v847 = vunpack.c.h.b16 %v770
      %v848 = vunpack.c.l.b16 %v771
      %v849 = vunpack.c.h.b16 %v771
      %v850 = vunpack.c.l.b16 %v772
      %v851 = vunpack.c.h.b16 %v772
      %v852 = vunpack.c.l.b16 %v773
      %v853 = vunpack.c.h.b16 %v773
      %v854 = vunpack.c.l.b16 %v774
      %v855 = vunpack.c.h.b16 %v774
      %v856 = vunpack.c.l.b16 %v775
      %v857 = vunpack.c.h.b16 %v775
      %v858 = vunpack.c.l.b16 %v776
      %v859 = vunpack.c.h.b16 %v776
      %v860 = vunpack.c.l.b16 %v777
      %v861 = vunpack.c.h.b16 %v777
      %v862 = vunpack.c.l.b16 %v778
      %v863 = vunpack.c.h.b16 %v778
      %v864 = vunpack.c.l.b16 %v779
      %v865 = vunpack.c.h.b16 %v779
      %v866 = vunpack.c.l.b16 %v780
      %v867 = vunpack.c.h.b16 %v780
      %v868 = vunpack.c.l.b16 %v781
      %v869 = vunpack.c.h.b16 %v781
      %v870 = vunpack.c.l.b16 %v782
      %v871 = vunpack.c.h.b16 %v782
      %v872 = vunpack.c.l.b16 %v783
      %v873 = vunpack.c.h.b16 %v783
      %v874 = vunpack.c.l.b16 %v784
      %v875 = vunpack.c.h.b16 %v784
      %v876 = vunpack.c.l.b16 %v785
      %v877 = vunpack.c.h.b16 %v785
      %v878 = vunpack.c.l.b16 %v786
      %v879 = vunpack.c.h.b16 %v786
      %v880 = vunpack.c.l.b16 %v787
      %v881 = vunpack.c.h.b16 %v787
      %v882 = vunpack.c.l.b16 %v788
      %v883 = vunpack.c.h.b16 %v788
      %v884 = vunpack.c.l.b16 %v789
      %v885 = vunpack.c.h.b16 %v789
      %v886 = vunpack.c.l.b16 %v790
      %v887 = vunpack.c.h.b16 %v790
      %v888 = vunpack.c.l.b16 %v791
      %v889 = vunpack.c.h.b16 %v791
      %v890 = vunpack.c.l.b16 %v792
      %v891 = vunpack.c.h.b16 %v792
      %v892 = vunpack.c.l.b16 %v793
      %v893 = vunpack.c.h.b16 %v793
      %v894 = vunpack.c.l.b16 %v794
      %v895 = vunpack.c.h.b16 %v794
      %v896 = vunpack.c.l.b16 %v795
      %v897 = vunpack.c.h.b16 %v795
      %v898 = vpack.c.b16 %v836, %v834
      %v899 = vpack.c.b16 %v837, %v835
      %v900 = vpack.c.b16 %v840, %v838
      %v901 = vpack.c.b16 %v841, %v839
      %v902 = vpack.c.b16 %v844, %v842
      %v903 = vpack.c.b16 %v845, %v843
      %v904 = vpack.c.b16 %v848, %v846
      %v905 = vpack.c.b16 %v849, %v847
      %v906 = vpack.c.b16 %v852, %v850
      %v907 = vpack.c.b16 %v853, %v851
      %v908 = vpack.c.b16 %v856, %v854
      %v909 = vpack.c.b16 %v857, %v855
      %v910 = vpack.c.b16 %v860, %v858
      %v911 = vpack.c.b16 %v861, %v859
      %v912 = vpack.c.b16 %v864, %v862
      %v913 = vpack.c.b16 %v865, %v863
      %v914 = vpack.c.b16 %v868, %v866
      %v915 = vpack.c.b16 %v869, %v867
      %v916 = vpack.c.b16 %v872, %v870
      %v917 = vpack.c.b16 %v873, %v871
      %v918 = vpack.c.b16 %v876, %v874
      %v919 = vpack.c.b16 %v877, %v875
      %v920 = vpack.c.b16 %v880, %v878
      %v921 = vpack.c.b16 %v881, %v879
      %v922 = vpack.c.b16 %v884, %v882
      %v923 = vpack.c.b16 %v885, %v883
      %v924 = vpack.c.b16 %v888, %v886
      %v925 = vpack.c.b16 %v889, %v887
      %v926 = vpack.c.b16 %v892, %v890
      %v927 = vpack.c.b16 %v893, %v891
      %v928 = vpack.c.b16 %v896, %v894
      %v929 = vpack.c.b16 %v897, %v895
      %962 = vmatpush.bf16.msra.mxu0 %v912
      %963 = vmatpush.bf16.msra.mxu0 %v910
      %964 = vmatpush.bf16.msra.mxu0 %v908
      %965 = vmatpush.bf16.msra.mxu0 %v906
      %966 = vmatpush.bf16.msra.mxu0 %v904
      %967 = vmatpush.bf16.msra.mxu0 %v902
      %968 = vmatpush.bf16.msra.mxu0 %v900
      %969 = vmatpush.bf16.msra.mxu0 %v898
      %970 = vmatmul.bf16.gmra.mxu0 %v732
      %v971 = vpop.f32.mrf.mxu0
      %v972 = vadd.f32 %v798, %v971
      %v973 = vpop.f32.mrf.mxu0
      %v974 = vadd.f32 %v798, %v973
      %975 = vmatmul.bf16.gmra.mxu0 %v734
      %v976 = vpop.f32.mrf.mxu0
      %v977 = vadd.f32 %v798, %v976
      %v978 = vpop.f32.mrf.mxu0
      %v979 = vadd.f32 %v798, %v978
      %980 = vmatmul.bf16.gmra.mxu0 %v736
      %v981 = vpop.f32.mrf.mxu0
      %v982 = vadd.f32 %v798, %v981
      %v983 = vpop.f32.mrf.mxu0
      %v984 = vadd.f32 %v798, %v983
      %985 = vmatmul.bf16.gmra.mxu0 %v738
      %v986 = vpop.f32.mrf.mxu0
      %v987 = vadd.f32 %v798, %v986
      %v988 = vpop.f32.mrf.mxu0
      %v989 = vadd.f32 %v798, %v988
      %990 = vmatmul.bf16.gmra.mxu0 %v740
      %v991 = vpop.f32.mrf.mxu0
      %v992 = vadd.f32 %v798, %v991
      %v993 = vpop.f32.mrf.mxu0
      %v994 = vadd.f32 %v798, %v993
      %995 = vmatmul.bf16.gmra.mxu0 %v742
      %v996 = vpop.f32.mrf.mxu0
      %v997 = vadd.f32 %v798, %v996
      %v998 = vpop.f32.mrf.mxu0
      %v999 = vadd.f32 %v798, %v998
      %1000 = vmatmul.bf16.gmra.mxu0 %v744
      %v1001 = vpop.f32.mrf.mxu0
      %v1002 = vadd.f32 %v798, %v1001
      %v1003 = vpop.f32.mrf.mxu0
      %v1004 = vadd.f32 %v798, %v1003
      %1005 = vmatmul.bf16.gmra.mxu0 %v746
      %v1006 = vpop.f32.mrf.mxu0
      %v1007 = vadd.f32 %v798, %v1006
      %v1008 = vpop.f32.mrf.mxu0
      %v1009 = vadd.f32 %v798, %v1008
      %1010 = vmatmul.bf16.gmra.mxu0 %v748
      %v1011 = vpop.f32.mrf.mxu0
      %v1012 = vadd.f32 %v798, %v1011
      %v1013 = vpop.f32.mrf.mxu0
      %v1014 = vadd.f32 %v798, %v1013
      %1015 = vmatmul.bf16.gmra.mxu0 %v750
      %v1016 = vpop.f32.mrf.mxu0
      %v1017 = vadd.f32 %v798, %v1016
      %v1018 = vpop.f32.mrf.mxu0
      %v1019 = vadd.f32 %v798, %v1018
      %1020 = vmatmul.bf16.gmra.mxu0 %v752
      %v1021 = vpop.f32.mrf.mxu0
      %v1022 = vadd.f32 %v798, %v1021
      %v1023 = vpop.f32.mrf.mxu0
      %v1024 = vadd.f32 %v798, %v1023
      %1025 = vmatmul.bf16.gmra.mxu0 %v754
      %v1026 = vpop.f32.mrf.mxu0
      %v1027 = vadd.f32 %v798, %v1026
      %v1028 = vpop.f32.mrf.mxu0
      %v1029 = vadd.f32 %v798, %v1028
      %1030 = vmatmul.bf16.gmra.mxu0 %v756
      %v1031 = vpop.f32.mrf.mxu0
      %v1032 = vadd.f32 %v798, %v1031
      %v1033 = vpop.f32.mrf.mxu0
      %v1034 = vadd.f32 %v798, %v1033
      %1035 = vmatmul.bf16.gmra.mxu0 %v758
      %v1036 = vpop.f32.mrf.mxu0
      %v1037 = vadd.f32 %v798, %v1036
      %v1038 = vpop.f32.mrf.mxu0
      %v1039 = vadd.f32 %v798, %v1038
      %1040 = vmatmul.bf16.gmra.mxu0 %v760
      %v1041 = vpop.f32.mrf.mxu0
      %v1042 = vadd.f32 %v798, %v1041
      %v1043 = vpop.f32.mrf.mxu0
      %v1044 = vadd.f32 %v798, %v1043
      %1045 = vmatmul.bf16.gmra.mxu0 %v762
      %v1046 = vpop.f32.mrf.mxu0
      %v1047 = vadd.f32 %v798, %v1046
      %v1048 = vpop.f32.mrf.mxu0
      %v1049 = vadd.f32 %v798, %v1048
      %1050 = vdwg.mxu0
      %1051 = vmatpush.bf16.msra.mxu0 %v928
      %1052 = vmatpush.bf16.msra.mxu0 %v926
      %1053 = vmatpush.bf16.msra.mxu0 %v924
      %1054 = vmatpush.bf16.msra.mxu0 %v922
      %1055 = vmatpush.bf16.msra.mxu0 %v920
      %1056 = vmatpush.bf16.msra.mxu0 %v918
      %1057 = vmatpush.bf16.msra.mxu0 %v916
      %1058 = vmatpush.bf16.msra.mxu0 %v914
      %1059 = vmatmul.bf16.gmra.mxu0 %v733
      %v1060 = vpop.f32.mrf.mxu0
      %v1061 = vadd.f32 %v972, %v1060
      %v1062 = vpop.f32.mrf.mxu0
      %v1063 = vadd.f32 %v974, %v1062
      %1064 = vmatmul.bf16.gmra.mxu0 %v735
      %v1065 = vpop.f32.mrf.mxu0
      %v1066 = vadd.f32 %v977, %v1065
      %v1067 = vpop.f32.mrf.mxu0
      %v1068 = vadd.f32 %v979, %v1067
      %1069 = vmatmul.bf16.gmra.mxu0 %v737
      %v1070 = vpop.f32.mrf.mxu0
      %v1071 = vadd.f32 %v982, %v1070
      %v1072 = vpop.f32.mrf.mxu0
      %v1073 = vadd.f32 %v984, %v1072
      %1074 = vmatmul.bf16.gmra.mxu0 %v739
      %v1075 = vpop.f32.mrf.mxu0
      %v1076 = vadd.f32 %v987, %v1075
      %v1077 = vpop.f32.mrf.mxu0
      %v1078 = vadd.f32 %v989, %v1077
      %1079 = vmatmul.bf16.gmra.mxu0 %v741
      %v1080 = vpop.f32.mrf.mxu0
      %v1081 = vadd.f32 %v992, %v1080
      %v1082 = vpop.f32.mrf.mxu0
      %v1083 = vadd.f32 %v994, %v1082
      %1084 = vmatmul.bf16.gmra.mxu0 %v743
      %v1085 = vpop.f32.mrf.mxu0
      %v1086 = vadd.f32 %v997, %v1085
      %v1087 = vpop.f32.mrf.mxu0
      %v1088 = vadd.f32 %v999, %v1087
      %1089 = vmatmul.bf16.gmra.mxu0 %v745
      %v1090 = vpop.f32.mrf.mxu0
      %v1091 = vadd.f32 %v1002, %v1090
      %v1092 = vpop.f32.mrf.mxu0
      %v1093 = vadd.f32 %v1004, %v1092
      %1094 = vmatmul.bf16.gmra.mxu0 %v747
      %v1095 = vpop.f32.mrf.mxu0
      %v1096 = vadd.f32 %v1007, %v1095
      %v1097 = vpop.f32.mrf.mxu0
      %v1098 = vadd.f32 %v1009, %v1097
      %1099 = vmatmul.bf16.gmra.mxu0 %v749
      %v1100 = vpop.f32.mrf.mxu0
      %v1101 = vadd.f32 %v1012, %v1100
      %v1102 = vpop.f32.mrf.mxu0
      %v1103 = vadd.f32 %v1014, %v1102
      %1104 = vmatmul.bf16.gmra.mxu0 %v751
      %v1105 = vpop.f32.mrf.mxu0
      %v1106 = vadd.f32 %v1017, %v1105
      %v1107 = vpop.f32.mrf.mxu0
      %v1108 = vadd.f32 %v1019, %v1107
      %1109 = vmatmul.bf16.gmra.mxu0 %v753
      %v1110 = vpop.f32.mrf.mxu0
      %v1111 = vadd.f32 %v1022, %v1110
      %v1112 = vpop.f32.mrf.mxu0
      %v1113 = vadd.f32 %v1024, %v1112
      %1114 = vmatmul.bf16.gmra.mxu0 %v755
      %v1115 = vpop.f32.mrf.mxu0
      %v1116 = vadd.f32 %v1027, %v1115
      %v1117 = vpop.f32.mrf.mxu0
      %v1118 = vadd.f32 %v1029, %v1117
      %1119 = vmatmul.bf16.gmra.mxu0 %v757
      %v1120 = vpop.f32.mrf.mxu0
      %v1121 = vadd.f32 %v1032, %v1120
      %v1122 = vpop.f32.mrf.mxu0
      %v1123 = vadd.f32 %v1034, %v1122
      %1124 = vmatmul.bf16.gmra.mxu0 %v759
      %v1125 = vpop.f32.mrf.mxu0
      %v1126 = vadd.f32 %v1037, %v1125
      %v1127 = vpop.f32.mrf.mxu0
      %v1128 = vadd.f32 %v1039, %v1127
      %1129 = vmatmul.bf16.gmra.mxu0 %v761
      %v1130 = vpop.f32.mrf.mxu0
      %v1131 = vadd.f32 %v1042, %v1130
      %v1132 = vpop.f32.mrf.mxu0
      %v1133 = vadd.f32 %v1044, %v1132
      %1134 = vmatmul.bf16.gmra.mxu0 %v763
      %v1135 = vpop.f32.mrf.mxu0
      %v1136 = vadd.f32 %v1047, %v1135
      %v1137 = vpop.f32.mrf.mxu0
      %v1138 = vadd.f32 %v1049, %v1137
      %1139 = vdwg.mxu0
      %1140 = vmatpush.bf16.msra.mxu0 %v913
      %1141 = vmatpush.bf16.msra.mxu0 %v911
      %1142 = vmatpush.bf16.msra.mxu0 %v909
      %1143 = vmatpush.bf16.msra.mxu0 %v907
      %1144 = vmatpush.bf16.msra.mxu0 %v905
      %1145 = vmatpush.bf16.msra.mxu0 %v903
      %1146 = vmatpush.bf16.msra.mxu0 %v901
      %1147 = vmatpush.bf16.msra.mxu0 %v899
      %1148 = vmatmul.bf16.gmra.mxu0 %v732
      %v1149 = vpop.f32.mrf.mxu0
      %v1150 = vadd.f32 %v799, %v1149
      %v1151 = vpop.f32.mrf.mxu0
      %v1152 = vadd.f32 %v799, %v1151
      %1153 = vmatmul.bf16.gmra.mxu0 %v734
      %v1154 = vpop.f32.mrf.mxu0
      %v1155 = vadd.f32 %v799, %v1154
      %v1156 = vpop.f32.mrf.mxu0
      %v1157 = vadd.f32 %v799, %v1156
      %1158 = vmatmul.bf16.gmra.mxu0 %v736
      %v1159 = vpop.f32.mrf.mxu0
      %v1160 = vadd.f32 %v799, %v1159
      %v1161 = vpop.f32.mrf.mxu0
      %v1162 = vadd.f32 %v799, %v1161
      %1163 = vmatmul.bf16.gmra.mxu0 %v738
      %v1164 = vpop.f32.mrf.mxu0
      %v1165 = vadd.f32 %v799, %v1164
      %v1166 = vpop.f32.mrf.mxu0
      %v1167 = vadd.f32 %v799, %v1166
      %1168 = vmatmul.bf16.gmra.mxu0 %v740
      %v1169 = vpop.f32.mrf.mxu0
      %v1170 = vadd.f32 %v799, %v1169
      %v1171 = vpop.f32.mrf.mxu0
      %v1172 = vadd.f32 %v799, %v1171
      %1173 = vmatmul.bf16.gmra.mxu0 %v742
      %v1174 = vpop.f32.mrf.mxu0
      %v1175 = vadd.f32 %v799, %v1174
      %v1176 = vpop.f32.mrf.mxu0
      %v1177 = vadd.f32 %v799, %v1176
      %1178 = vmatmul.bf16.gmra.mxu0 %v744
      %v1179 = vpop.f32.mrf.mxu0
      %v1180 = vadd.f32 %v799, %v1179
      %v1181 = vpop.f32.mrf.mxu0
      %v1182 = vadd.f32 %v799, %v1181
      %1183 = vmatmul.bf16.gmra.mxu0 %v746
      %v1184 = vpop.f32.mrf.mxu0
      %v1185 = vadd.f32 %v799, %v1184
      %v1186 = vpop.f32.mrf.mxu0
      %v1187 = vadd.f32 %v799, %v1186
      %1188 = vmatmul.bf16.gmra.mxu0 %v748
      %v1189 = vpop.f32.mrf.mxu0
      %v1190 = vadd.f32 %v799, %v1189
      %v1191 = vpop.f32.mrf.mxu0
      %v1192 = vadd.f32 %v799, %v1191
      %1193 = vmatmul.bf16.gmra.mxu0 %v750
      %v1194 = vpop.f32.mrf.mxu0
      %v1195 = vadd.f32 %v799, %v1194
      %v1196 = vpop.f32.mrf.mxu0
      %v1197 = vadd.f32 %v799, %v1196
      %1198 = vmatmul.bf16.gmra.mxu0 %v752
      %v1199 = vpop.f32.mrf.mxu0
      %v1200 = vadd.f32 %v799, %v1199
      %v1201 = vpop.f32.mrf.mxu0
      %v1202 = vadd.f32 %v799, %v1201
      %1203 = vmatmul.bf16.gmra.mxu0 %v754
      %v1204 = vpop.f32.mrf.mxu0
      %v1205 = vadd.f32 %v799, %v1204
      %v1206 = vpop.f32.mrf.mxu0
      %v1207 = vadd.f32 %v799, %v1206
      %1208 = vmatmul.bf16.gmra.mxu0 %v756
      %v1209 = vpop.f32.mrf.mxu0
      %v1210 = vadd.f32 %v799, %v1209
      %v1211 = vpop.f32.mrf.mxu0
      %v1212 = vadd.f32 %v799, %v1211
      %1213 = vmatmul.bf16.gmra.mxu0 %v758
      %v1214 = vpop.f32.mrf.mxu0
      %v1215 = vadd.f32 %v799, %v1214
      %v1216 = vpop.f32.mrf.mxu0
      %v1217 = vadd.f32 %v799, %v1216
      %1218 = vmatmul.bf16.gmra.mxu0 %v760
      %v1219 = vpop.f32.mrf.mxu0
      %v1220 = vadd.f32 %v799, %v1219
      %v1221 = vpop.f32.mrf.mxu0
      %v1222 = vadd.f32 %v799, %v1221
      %1223 = vmatmul.bf16.gmra.mxu0 %v762
      %v1224 = vpop.f32.mrf.mxu0
      %v1225 = vadd.f32 %v799, %v1224
      %v1226 = vpop.f32.mrf.mxu0
      %v1227 = vadd.f32 %v799, %v1226
      %1228 = vdwg.mxu0
      %1229 = vmatpush.bf16.msra.mxu0 %v929
      %1230 = vmatpush.bf16.msra.mxu0 %v927
      %1231 = vmatpush.bf16.msra.mxu0 %v925
      %1232 = vmatpush.bf16.msra.mxu0 %v923
      %1233 = vmatpush.bf16.msra.mxu0 %v921
      %1234 = vmatpush.bf16.msra.mxu0 %v919
      %1235 = vmatpush.bf16.msra.mxu0 %v917
      %1236 = vmatpush.bf16.msra.mxu0 %v915
      %1237 = vmatmul.bf16.gmra.mxu0 %v733
      %v1238 = vpop.f32.mrf.mxu0
      %v1239 = vadd.f32 %v1150, %v1238
      %v1240 = vpop.f32.mrf.mxu0
      %v1241 = vadd.f32 %v1152, %v1240
      %1242 = vmatmul.bf16.gmra.mxu0 %v735
      %v1243 = vpop.f32.mrf.mxu0
      %v1244 = vadd.f32 %v1155, %v1243
      %v1245 = vpop.f32.mrf.mxu0
      %v1246 = vadd.f32 %v1157, %v1245
      %1247 = vmatmul.bf16.gmra.mxu0 %v737
      %v1248 = vpop.f32.mrf.mxu0
      %v1249 = vadd.f32 %v1160, %v1248
      %v1250 = vpop.f32.mrf.mxu0
      %v1251 = vadd.f32 %v1162, %v1250
      %1252 = vmatmul.bf16.gmra.mxu0 %v739
      %v1253 = vpop.f32.mrf.mxu0
      %v1254 = vadd.f32 %v1165, %v1253
      %v1255 = vpop.f32.mrf.mxu0
      %v1256 = vadd.f32 %v1167, %v1255
      %1257 = vmatmul.bf16.gmra.mxu0 %v741
      %v1258 = vpop.f32.mrf.mxu0
      %v1259 = vadd.f32 %v1170, %v1258
      %v1260 = vpop.f32.mrf.mxu0
      %v1261 = vadd.f32 %v1172, %v1260
      %1262 = vmatmul.bf16.gmra.mxu0 %v743
      %v1263 = vpop.f32.mrf.mxu0
      %v1264 = vadd.f32 %v1175, %v1263
      %v1265 = vpop.f32.mrf.mxu0
      %v1266 = vadd.f32 %v1177, %v1265
      %1267 = vmatmul.bf16.gmra.mxu0 %v745
      %v1268 = vpop.f32.mrf.mxu0
      %v1269 = vadd.f32 %v1180, %v1268
      %v1270 = vpop.f32.mrf.mxu0
      %v1271 = vadd.f32 %v1182, %v1270
      %1272 = vmatmul.bf16.gmra.mxu0 %v747
      %v1273 = vpop.f32.mrf.mxu0
      %v1274 = vadd.f32 %v1185, %v1273
      %v1275 = vpop.f32.mrf.mxu0
      %v1276 = vadd.f32 %v1187, %v1275
      %1277 = vmatmul.bf16.gmra.mxu0 %v749
      %v1278 = vpop.f32.mrf.mxu0
      %v1279 = vadd.f32 %v1190, %v1278
      %v1280 = vpop.f32.mrf.mxu0
      %v1281 = vadd.f32 %v1192, %v1280
      %1282 = vmatmul.bf16.gmra.mxu0 %v751
      %v1283 = vpop.f32.mrf.mxu0
      %v1284 = vadd.f32 %v1195, %v1283
      %v1285 = vpop.f32.mrf.mxu0
      %v1286 = vadd.f32 %v1197, %v1285
      %1287 = vmatmul.bf16.gmra.mxu0 %v753
      %v1288 = vpop.f32.mrf.mxu0
      %v1289 = vadd.f32 %v1200, %v1288
      %v1290 = vpop.f32.mrf.mxu0
      %v1291 = vadd.f32 %v1202, %v1290
      %1292 = vmatmul.bf16.gmra.mxu0 %v755
      %v1293 = vpop.f32.mrf.mxu0
      %v1294 = vadd.f32 %v1205, %v1293
      %v1295 = vpop.f32.mrf.mxu0
      %v1296 = vadd.f32 %v1207, %v1295
      %1297 = vmatmul.bf16.gmra.mxu0 %v757
      %v1298 = vpop.f32.mrf.mxu0
      %v1299 = vadd.f32 %v1210, %v1298
      %v1300 = vpop.f32.mrf.mxu0
      %v1301 = vadd.f32 %v1212, %v1300
      %1302 = vmatmul.bf16.gmra.mxu0 %v759
      %v1303 = vpop.f32.mrf.mxu0
      %v1304 = vadd.f32 %v1215, %v1303
      %v1305 = vpop.f32.mrf.mxu0
      %v1306 = vadd.f32 %v1217, %v1305
      %1307 = vmatmul.bf16.gmra.mxu0 %v761
      %v1308 = vpop.f32.mrf.mxu0
      %v1309 = vadd.f32 %v1220, %v1308
      %v1310 = vpop.f32.mrf.mxu0
      %v1311 = vadd.f32 %v1222, %v1310
      %1312 = vmatmul.bf16.gmra.mxu0 %v763
      %v1313 = vpop.f32.mrf.mxu0
      %v1314 = vadd.f32 %v1225, %v1313
      %v1315 = vpop.f32.mrf.mxu0
      %v1316 = vadd.f32 %v1227, %v1315
      %1317 = vdwg.mxu0
      %v1318 = vmax.f32 %v1061, 0.0
      %v1319 = vmax.f32 %v1239, 0.0
      %v1320 = vmax.f32 %v1063, 0.0
      %v1321 = vmax.f32 %v1241, 0.0
      %v1322 = vmax.f32 %v1066, 0.0
      %v1323 = vmax.f32 %v1244, 0.0
      %v1324 = vmax.f32 %v1068, 0.0
      %v1325 = vmax.f32 %v1246, 0.0
      %v1326 = vmax.f32 %v1071, 0.0
      %v1327 = vmax.f32 %v1249, 0.0
      %v1328 = vmax.f32 %v1073, 0.0
      %v1329 = vmax.f32 %v1251, 0.0
      %v1330 = vmax.f32 %v1076, 0.0
      %v1331 = vmax.f32 %v1254, 0.0
      %v1332 = vmax.f32 %v1078, 0.0
      %v1333 = vmax.f32 %v1256, 0.0
      %v1334 = vmax.f32 %v1081, 0.0
      %v1335 = vmax.f32 %v1259, 0.0
      %v1336 = vmax.f32 %v1083, 0.0
      %v1337 = vmax.f32 %v1261, 0.0
      %v1338 = vmax.f32 %v1086, 0.0
      %v1339 = vmax.f32 %v1264, 0.0
      %v1340 = vmax.f32 %v1088, 0.0
      %v1341 = vmax.f32 %v1266, 0.0
      %v1342 = vmax.f32 %v1091, 0.0
      %v1343 = vmax.f32 %v1269, 0.0
      %v1344 = vmax.f32 %v1093, 0.0
      %v1345 = vmax.f32 %v1271, 0.0
      %v1346 = vmax.f32 %v1096, 0.0
      %v1347 = vmax.f32 %v1274, 0.0
      %v1348 = vmax.f32 %v1098, 0.0
      %v1349 = vmax.f32 %v1276, 0.0
      %v1350 = vmax.f32 %v1101, 0.0
      %v1351 = vmax.f32 %v1279, 0.0
      %v1352 = vmax.f32 %v1103, 0.0
      %v1353 = vmax.f32 %v1281, 0.0
      %v1354 = vmax.f32 %v1106, 0.0
      %v1355 = vmax.f32 %v1284, 0.0
      %v1356 = vmax.f32 %v1108, 0.0
      %v1357 = vmax.f32 %v1286, 0.0
      %v1358 = vmax.f32 %v1111, 0.0
      %v1359 = vmax.f32 %v1289, 0.0
      %v1360 = vmax.f32 %v1113, 0.0
      %v1361 = vmax.f32 %v1291, 0.0
      %v1362 = vmax.f32 %v1116, 0.0
      %v1363 = vmax.f32 %v1294, 0.0
      %v1364 = vmax.f32 %v1118, 0.0
      %v1365 = vmax.f32 %v1296, 0.0
      %v1366 = vmax.f32 %v1121, 0.0
      %v1367 = vmax.f32 %v1299, 0.0
      %v1368 = vmax.f32 %v1123, 0.0
      %v1369 = vmax.f32 %v1301, 0.0
      %v1370 = vmax.f32 %v1126, 0.0
      %v1371 = vmax.f32 %v1304, 0.0
      %v1372 = vmax.f32 %v1128, 0.0
      %v1373 = vmax.f32 %v1306, 0.0
      %v1374 = vmax.f32 %v1131, 0.0
      %v1375 = vmax.f32 %v1309, 0.0
      %v1376 = vmax.f32 %v1133, 0.0
      %v1377 = vmax.f32 %v1311, 0.0
      %v1378 = vmax.f32 %v1136, 0.0
      %v1379 = vmax.f32 %v1314, 0.0
      %v1380 = vmax.f32 %v1138, 0.0
      %v1381 = vmax.f32 %v1316, 0.0
      %v1382 = vpack.c.bf16 %v1320, %v1318
      %v1383 = vpack.c.bf16 %v1321, %v1319
      %v1384 = vpack.c.bf16 %v1324, %v1322
      %v1385 = vpack.c.bf16 %v1325, %v1323
      %v1386 = vpack.c.bf16 %v1328, %v1326
      %v1387 = vpack.c.bf16 %v1329, %v1327
      %v1388 = vpack.c.bf16 %v1332, %v1330
      %v1389 = vpack.c.bf16 %v1333, %v1331
      %v1390 = vpack.c.bf16 %v1336, %v1334
      %v1391 = vpack.c.bf16 %v1337, %v1335
      %v1392 = vpack.c.bf16 %v1340, %v1338
      %v1393 = vpack.c.bf16 %v1341, %v1339
      %v1394 = vpack.c.bf16 %v1344, %v1342
      %v1395 = vpack.c.bf16 %v1345, %v1343
      %v1396 = vpack.c.bf16 %v1348, %v1346
      %v1397 = vpack.c.bf16 %v1349, %v1347
      %v1398 = vpack.c.bf16 %v1352, %v1350
      %v1399 = vpack.c.bf16 %v1353, %v1351
      %v1400 = vpack.c.bf16 %v1356, %v1354
      %v1401 = vpack.c.bf16 %v1357, %v1355
      %v1402 = vpack.c.bf16 %v1360, %v1358
      %v1403 = vpack.c.bf16 %v1361, %v1359
      %v1404 = vpack.c.bf16 %v1364, %v1362
      %v1405 = vpack.c.bf16 %v1365, %v1363
      %v1406 = vpack.c.bf16 %v1368, %v1366
      %v1407 = vpack.c.bf16 %v1369, %v1367
      %v1408 = vpack.c.bf16 %v1372, %v1370
      %v1409 = vpack.c.bf16 %v1373, %v1371
      %v1410 = vpack.c.bf16 %v1376, %v1374
      %v1411 = vpack.c.bf16 %v1377, %v1375
      %v1412 = vpack.c.bf16 %v1380, %v1378
      %v1413 = vpack.c.bf16 %v1381, %v1379
      %v1414 = vld [vmem:[%s5] sm:$0xf]
      %v1415 = vld [vmem:[%s5 + $0x4] sm:$0xf]
      %v1416 = vld [vmem:[%s5 + $0x8] sm:$0xf]
      %v1417 = vld [vmem:[%s5 + $0xc] sm:$0xf]
      %v1418 = vld [vmem:[%s5 + $0x10] sm:$0xf]
      %v1419 = vld [vmem:[%s5 + $0x14] sm:$0xf]
      %v1420 = vld [vmem:[%s5 + $0x18] sm:$0xf]
      %v1421 = vld [vmem:[%s5 + $0x1c] sm:$0xf]
      %v1422 = vld [vmem:[%s5 + $0x20] sm:$0xf]
      %v1423 = vld [vmem:[%s5 + $0x24] sm:$0xf]
      %v1424 = vld [vmem:[%s5 + $0x28] sm:$0xf]
      %v1425 = vld [vmem:[%s5 + $0x2c] sm:$0xf]
      %v1426 = vld [vmem:[%s5 + $0x30] sm:$0xf]
      %v1427 = vld [vmem:[%s5 + $0x34] sm:$0xf]
      %v1428 = vld [vmem:[%s5 + $0x38] sm:$0xf]
      %v1429 = vld [vmem:[%s5 + $0x3c] sm:$0xf]
      %v1430 = vld [vmem:[%s5 + $0x40] sm:$0xf]
      %v1431 = vld [vmem:[%s5 + $0x44] sm:$0xf]
      %v1432 = vld [vmem:[%s5 + $0x48] sm:$0xf]
      %v1433 = vld [vmem:[%s5 + $0x4c] sm:$0xf]
      %v1434 = vld [vmem:[%s5 + $0x50] sm:$0xf]
      %v1435 = vld [vmem:[%s5 + $0x54] sm:$0xf]
      %v1436 = vld [vmem:[%s5 + $0x58] sm:$0xf]
      %v1437 = vld [vmem:[%s5 + $0x5c] sm:$0xf]
      %v1438 = vld [vmem:[%s5 + $0x60] sm:$0xf]
      %v1439 = vld [vmem:[%s5 + $0x64] sm:$0xf]
      %v1440 = vld [vmem:[%s5 + $0x68] sm:$0xf]
      %v1441 = vld [vmem:[%s5 + $0x6c] sm:$0xf]
      %v1442 = vld [vmem:[%s5 + $0x70] sm:$0xf]
      %v1443 = vld [vmem:[%s5 + $0x74] sm:$0xf]
      %v1444 = vld [vmem:[%s5 + $0x78] sm:$0xf]
      %v1445 = vld [vmem:[%s5 + $0x7c] sm:$0xf]
      %v1446 = vld [vmem:[%s6] sm:$0x1]
      %v1448 = vperm.slane %v1446, 0
      %v1482 = vunpack.c.l.b16 %v1414
      %v1483 = vunpack.c.l.b16 %v1415
      %v1484 = vunpack.c.l.b16 %v1416
      %v1485 = vunpack.c.l.b16 %v1417
      %v1486 = vunpack.c.l.b16 %v1418
      %v1487 = vunpack.c.l.b16 %v1419
      %v1488 = vunpack.c.l.b16 %v1420
      %v1489 = vunpack.c.l.b16 %v1421
      %v1490 = vunpack.c.l.b16 %v1422
      %v1491 = vunpack.c.l.b16 %v1423
      %v1492 = vunpack.c.l.b16 %v1424
      %v1493 = vunpack.c.l.b16 %v1425
      %v1494 = vunpack.c.l.b16 %v1426
      %v1495 = vunpack.c.l.b16 %v1427
      %v1496 = vunpack.c.l.b16 %v1428
      %v1497 = vunpack.c.l.b16 %v1429
      %v1498 = vunpack.c.l.b16 %v1430
      %v1499 = vunpack.c.l.b16 %v1431
      %v1500 = vunpack.c.l.b16 %v1432
      %v1501 = vunpack.c.l.b16 %v1433
      %v1502 = vunpack.c.l.b16 %v1434
      %v1503 = vunpack.c.l.b16 %v1435
      %v1504 = vunpack.c.l.b16 %v1436
      %v1505 = vunpack.c.l.b16 %v1437
      %v1506 = vunpack.c.l.b16 %v1438
      %v1507 = vunpack.c.l.b16 %v1439
      %v1508 = vunpack.c.l.b16 %v1440
      %v1509 = vunpack.c.l.b16 %v1441
      %v1510 = vunpack.c.l.b16 %v1442
      %v1511 = vunpack.c.l.b16 %v1443
      %v1512 = vunpack.c.l.b16 %v1444
      %v1513 = vunpack.c.l.b16 %v1445
      %v1514 = vpack.c.b16 %v1483, %v1482
      %v1515 = vpack.c.b16 %v1485, %v1484
      %v1516 = vpack.c.b16 %v1487, %v1486
      %v1517 = vpack.c.b16 %v1489, %v1488
      %v1518 = vpack.c.b16 %v1491, %v1490
      %v1519 = vpack.c.b16 %v1493, %v1492
      %v1520 = vpack.c.b16 %v1495, %v1494
      %v1521 = vpack.c.b16 %v1497, %v1496
      %v1522 = vpack.c.b16 %v1499, %v1498
      %v1523 = vpack.c.b16 %v1501, %v1500
      %v1524 = vpack.c.b16 %v1503, %v1502
      %v1525 = vpack.c.b16 %v1505, %v1504
      %v1526 = vpack.c.b16 %v1507, %v1506
      %v1527 = vpack.c.b16 %v1509, %v1508
      %v1528 = vpack.c.b16 %v1511, %v1510
      %v1529 = vpack.c.b16 %v1513, %v1512
      %1546 = vmatpush.bf16.msra.mxu0 %v1521
      %1547 = vmatpush.bf16.msra.mxu0 %v1520
      %1548 = vmatpush.bf16.msra.mxu0 %v1519
      %1549 = vmatpush.bf16.msra.mxu0 %v1518
      %1550 = vmatpush.bf16.msra.mxu0 %v1517
      %1551 = vmatpush.bf16.msra.mxu0 %v1516
      %1552 = vmatpush.bf16.msra.mxu0 %v1515
      %1553 = vmatpush.bf16.msra.mxu0 %v1514
      %1554 = vmatmul.bf16.gmra.mxu0 %v1382
      %v1555 = vpop.f32.mrf.mxu0
      %v1556 = vadd.f32 %v1448, %v1555
      %v1557 = vpop.f32.mrf.mxu0
      %v1558 = vadd.f32 %v1448, %v1557
      %1559 = vmatmul.bf16.gmra.mxu0 %v1384
      %v1560 = vpop.f32.mrf.mxu0
      %v1561 = vadd.f32 %v1448, %v1560
      %v1562 = vpop.f32.mrf.mxu0
      %v1563 = vadd.f32 %v1448, %v1562
      %1564 = vmatmul.bf16.gmra.mxu0 %v1386
      %v1565 = vpop.f32.mrf.mxu0
      %v1566 = vadd.f32 %v1448, %v1565
      %v1567 = vpop.f32.mrf.mxu0
      %v1568 = vadd.f32 %v1448, %v1567
      %1569 = vmatmul.bf16.gmra.mxu0 %v1388
      %v1570 = vpop.f32.mrf.mxu0
      %v1571 = vadd.f32 %v1448, %v1570
      %v1572 = vpop.f32.mrf.mxu0
      %v1573 = vadd.f32 %v1448, %v1572
      %1574 = vmatmul.bf16.gmra.mxu0 %v1390
      %v1575 = vpop.f32.mrf.mxu0
      %v1576 = vadd.f32 %v1448, %v1575
      %v1577 = vpop.f32.mrf.mxu0
      %v1578 = vadd.f32 %v1448, %v1577
      %1579 = vmatmul.bf16.gmra.mxu0 %v1392
      %v1580 = vpop.f32.mrf.mxu0
      %v1581 = vadd.f32 %v1448, %v1580
      %v1582 = vpop.f32.mrf.mxu0
      %v1583 = vadd.f32 %v1448, %v1582
      %1584 = vmatmul.bf16.gmra.mxu0 %v1394
      %v1585 = vpop.f32.mrf.mxu0
      %v1586 = vadd.f32 %v1448, %v1585
      %v1587 = vpop.f32.mrf.mxu0
      %v1588 = vadd.f32 %v1448, %v1587
      %1589 = vmatmul.bf16.gmra.mxu0 %v1396
      %v1590 = vpop.f32.mrf.mxu0
      %v1591 = vadd.f32 %v1448, %v1590
      %v1592 = vpop.f32.mrf.mxu0
      %v1593 = vadd.f32 %v1448, %v1592
      %1594 = vmatmul.bf16.gmra.mxu0 %v1398
      %v1595 = vpop.f32.mrf.mxu0
      %v1596 = vadd.f32 %v1448, %v1595
      %v1597 = vpop.f32.mrf.mxu0
      %v1598 = vadd.f32 %v1448, %v1597
      %1599 = vmatmul.bf16.gmra.mxu0 %v1400
      %v1600 = vpop.f32.mrf.mxu0
      %v1601 = vadd.f32 %v1448, %v1600
      %v1602 = vpop.f32.mrf.mxu0
      %v1603 = vadd.f32 %v1448, %v1602
      %1604 = vmatmul.bf16.gmra.mxu0 %v1402
      %v1605 = vpop.f32.mrf.mxu0
      %v1606 = vadd.f32 %v1448, %v1605
      %v1607 = vpop.f32.mrf.mxu0
      %v1608 = vadd.f32 %v1448, %v1607
      %1609 = vmatmul.bf16.gmra.mxu0 %v1404
      %v1610 = vpop.f32.mrf.mxu0
      %v1611 = vadd.f32 %v1448, %v1610
      %v1612 = vpop.f32.mrf.mxu0
      %v1613 = vadd.f32 %v1448, %v1612
      %1614 = vmatmul.bf16.gmra.mxu0 %v1406
      %v1615 = vpop.f32.mrf.mxu0
      %v1616 = vadd.f32 %v1448, %v1615
      %v1617 = vpop.f32.mrf.mxu0
      %v1618 = vadd.f32 %v1448, %v1617
      %1619 = vmatmul.bf16.gmra.mxu0 %v1408
      %v1620 = vpop.f32.mrf.mxu0
      %v1621 = vadd.f32 %v1448, %v1620
      %v1622 = vpop.f32.mrf.mxu0
      %v1623 = vadd.f32 %v1448, %v1622
      %1624 = vmatmul.bf16.gmra.mxu0 %v1410
      %v1625 = vpop.f32.mrf.mxu0
      %v1626 = vadd.f32 %v1448, %v1625
      %v1627 = vpop.f32.mrf.mxu0
      %v1628 = vadd.f32 %v1448, %v1627
      %1629 = vmatmul.bf16.gmra.mxu0 %v1412
      %v1630 = vpop.f32.mrf.mxu0
      %v1631 = vadd.f32 %v1448, %v1630
      %v1632 = vpop.f32.mrf.mxu0
      %v1633 = vadd.f32 %v1448, %v1632
      %1634 = vdwg.mxu0
      %1635 = vmatpush.bf16.msra.mxu0 %v1529
      %1636 = vmatpush.bf16.msra.mxu0 %v1528
      %1637 = vmatpush.bf16.msra.mxu0 %v1527
      %1638 = vmatpush.bf16.msra.mxu0 %v1526
      %1639 = vmatpush.bf16.msra.mxu0 %v1525
      %1640 = vmatpush.bf16.msra.mxu0 %v1524
      %1641 = vmatpush.bf16.msra.mxu0 %v1523
      %1642 = vmatpush.bf16.msra.mxu0 %v1522
      %1643 = vmatmul.bf16.gmra.mxu0 %v1383
      %v1644 = vpop.f32.mrf.mxu0
      %v1645 = vadd.f32 %v1556, %v1644
      %v1646 = vpop.f32.mrf.mxu0
      %v1647 = vadd.f32 %v1558, %v1646
      %1648 = vmatmul.bf16.gmra.mxu0 %v1385
      %v1649 = vpop.f32.mrf.mxu0
      %v1650 = vadd.f32 %v1561, %v1649
      %v1651 = vpop.f32.mrf.mxu0
      %v1652 = vadd.f32 %v1563, %v1651
      %1653 = vmatmul.bf16.gmra.mxu0 %v1387
      %v1654 = vpop.f32.mrf.mxu0
      %v1655 = vadd.f32 %v1566, %v1654
      %v1656 = vpop.f32.mrf.mxu0
      %v1657 = vadd.f32 %v1568, %v1656
      %1658 = vmatmul.bf16.gmra.mxu0 %v1389
      %v1659 = vpop.f32.mrf.mxu0
      %v1660 = vadd.f32 %v1571, %v1659
      %v1661 = vpop.f32.mrf.mxu0
      %v1662 = vadd.f32 %v1573, %v1661
      %1663 = vmatmul.bf16.gmra.mxu0 %v1391
      %v1664 = vpop.f32.mrf.mxu0
      %v1665 = vadd.f32 %v1576, %v1664
      %v1666 = vpop.f32.mrf.mxu0
      %v1667 = vadd.f32 %v1578, %v1666
      %1668 = vmatmul.bf16.gmra.mxu0 %v1393
      %v1669 = vpop.f32.mrf.mxu0
      %v1670 = vadd.f32 %v1581, %v1669
      %v1671 = vpop.f32.mrf.mxu0
      %v1672 = vadd.f32 %v1583, %v1671
      %1673 = vmatmul.bf16.gmra.mxu0 %v1395
      %v1674 = vpop.f32.mrf.mxu0
      %v1675 = vadd.f32 %v1586, %v1674
      %v1676 = vpop.f32.mrf.mxu0
      %v1677 = vadd.f32 %v1588, %v1676
      %1678 = vmatmul.bf16.gmra.mxu0 %v1397
      %v1679 = vpop.f32.mrf.mxu0
      %v1680 = vadd.f32 %v1591, %v1679
      %v1681 = vpop.f32.mrf.mxu0
      %v1682 = vadd.f32 %v1593, %v1681
      %1683 = vmatmul.bf16.gmra.mxu0 %v1399
      %v1684 = vpop.f32.mrf.mxu0
      %v1685 = vadd.f32 %v1596, %v1684
      %v1686 = vpop.f32.mrf.mxu0
      %v1687 = vadd.f32 %v1598, %v1686
      %1688 = vmatmul.bf16.gmra.mxu0 %v1401
      %v1689 = vpop.f32.mrf.mxu0
      %v1690 = vadd.f32 %v1601, %v1689
      %v1691 = vpop.f32.mrf.mxu0
      %v1692 = vadd.f32 %v1603, %v1691
      %1693 = vmatmul.bf16.gmra.mxu0 %v1403
      %v1694 = vpop.f32.mrf.mxu0
      %v1695 = vadd.f32 %v1606, %v1694
      %v1696 = vpop.f32.mrf.mxu0
      %v1697 = vadd.f32 %v1608, %v1696
      %1698 = vmatmul.bf16.gmra.mxu0 %v1405
      %v1699 = vpop.f32.mrf.mxu0
      %v1700 = vadd.f32 %v1611, %v1699
      %v1701 = vpop.f32.mrf.mxu0
      %v1702 = vadd.f32 %v1613, %v1701
      %1703 = vmatmul.bf16.gmra.mxu0 %v1407
      %v1704 = vpop.f32.mrf.mxu0
      %v1705 = vadd.f32 %v1616, %v1704
      %v1706 = vpop.f32.mrf.mxu0
      %v1707 = vadd.f32 %v1618, %v1706
      %1708 = vmatmul.bf16.gmra.mxu0 %v1409
      %v1709 = vpop.f32.mrf.mxu0
      %v1710 = vadd.f32 %v1621, %v1709
      %v1711 = vpop.f32.mrf.mxu0
      %v1712 = vadd.f32 %v1623, %v1711
      %1713 = vmatmul.bf16.gmra.mxu0 %v1411
      %v1714 = vpop.f32.mrf.mxu0
      %v1715 = vadd.f32 %v1626, %v1714
      %v1716 = vpop.f32.mrf.mxu0
      %v1717 = vadd.f32 %v1628, %v1716
      %1718 = vmatmul.bf16.gmra.mxu0 %v1413
      %v1719 = vpop.f32.mrf.mxu0
      %v1720 = vadd.f32 %v1631, %v1719
      %v1721 = vpop.f32.mrf.mxu0
      %v1722 = vadd.f32 %v1633, %v1721
      %1723 = vdwg.mxu0
      %v1724 = vmax.f32 %v1645, 0.0
      %v1725 = vmax.f32 %v1647, 0.0
      %v1726 = vmax.f32 %v1650, 0.0
      %v1727 = vmax.f32 %v1652, 0.0
      %v1728 = vmax.f32 %v1655, 0.0
      %v1729 = vmax.f32 %v1657, 0.0
      %v1730 = vmax.f32 %v1660, 0.0
      %v1731 = vmax.f32 %v1662, 0.0
      %v1732 = vmax.f32 %v1665, 0.0
      %v1733 = vmax.f32 %v1667, 0.0
      %v1734 = vmax.f32 %v1670, 0.0
      %v1735 = vmax.f32 %v1672, 0.0
      %v1736 = vmax.f32 %v1675, 0.0
      %v1737 = vmax.f32 %v1677, 0.0
      %v1738 = vmax.f32 %v1680, 0.0
      %v1739 = vmax.f32 %v1682, 0.0
      %v1740 = vmax.f32 %v1685, 0.0
      %v1741 = vmax.f32 %v1687, 0.0
      %v1742 = vmax.f32 %v1690, 0.0
      %v1743 = vmax.f32 %v1692, 0.0
      %v1744 = vmax.f32 %v1695, 0.0
      %v1745 = vmax.f32 %v1697, 0.0
      %v1746 = vmax.f32 %v1700, 0.0
      %v1747 = vmax.f32 %v1702, 0.0
      %v1748 = vmax.f32 %v1705, 0.0
      %v1749 = vmax.f32 %v1707, 0.0
      %v1750 = vmax.f32 %v1710, 0.0
      %v1751 = vmax.f32 %v1712, 0.0
      %v1752 = vmax.f32 %v1715, 0.0
      %v1753 = vmax.f32 %v1717, 0.0
      %v1754 = vmax.f32 %v1720, 0.0
      %v1755 = vmax.f32 %v1722, 0.0
      %v1756 = vld [vmem:[%s7] sm:$0x1]
      %v1758 = vperm.slane %v1756, 0
      %v1760 = vmul.f32 %v1724, %v1758
      %v1761 = vmul.f32 %v1725, %v1758
      %v1762 = vmul.f32 %v1726, %v1758
      %v1763 = vmul.f32 %v1727, %v1758
      %v1764 = vmul.f32 %v1728, %v1758
      %v1765 = vmul.f32 %v1729, %v1758
      %v1766 = vmul.f32 %v1730, %v1758
      %v1767 = vmul.f32 %v1731, %v1758
      %v1768 = vmul.f32 %v1732, %v1758
      %v1769 = vmul.f32 %v1733, %v1758
      %v1770 = vmul.f32 %v1734, %v1758
      %v1771 = vmul.f32 %v1735, %v1758
      %v1772 = vmul.f32 %v1736, %v1758
      %v1773 = vmul.f32 %v1737, %v1758
      %v1774 = vmul.f32 %v1738, %v1758
      %v1775 = vmul.f32 %v1739, %v1758
      %v1776 = vmul.f32 %v1740, %v1758
      %v1777 = vmul.f32 %v1741, %v1758
      %v1778 = vmul.f32 %v1742, %v1758
      %v1779 = vmul.f32 %v1743, %v1758
      %v1780 = vmul.f32 %v1744, %v1758
      %v1781 = vmul.f32 %v1745, %v1758
      %v1782 = vmul.f32 %v1746, %v1758
      %v1783 = vmul.f32 %v1747, %v1758
      %v1784 = vmul.f32 %v1748, %v1758
      %v1785 = vmul.f32 %v1749, %v1758
      %v1786 = vmul.f32 %v1750, %v1758
      %v1787 = vmul.f32 %v1751, %v1758
      %v1788 = vmul.f32 %v1752, %v1758
      %v1789 = vmul.f32 %v1753, %v1758
      %v1790 = vmul.f32 %v1754, %v1758
      %v1791 = vmul.f32 %v1755, %v1758
      %v1792 = vsel %vm441, %v1760, 0.0
      %1793 = vadd.xlane.f32.xlu0 %v1792
      %v1794 = vpop.xlane.xlu0 %1793
      %v1795 = vsel %vm441, %v1761, 0.0
      %1796 = vadd.xlane.f32.xlu0 %v1795
      %v1797 = vpop.xlane.xlu0 %1796
      %v1798 = vsel %vm441, %v1762, 0.0
      %1799 = vadd.xlane.f32.xlu0 %v1798
      %v1800 = vpop.xlane.xlu0 %1799
      %v1801 = vsel %vm441, %v1763, 0.0
      %1802 = vadd.xlane.f32.xlu0 %v1801
      %v1803 = vpop.xlane.xlu0 %1802
      %v1804 = vsel %vm441, %v1764, 0.0
      %1805 = vadd.xlane.f32.xlu0 %v1804
      %v1806 = vpop.xlane.xlu0 %1805
      %v1807 = vsel %vm441, %v1765, 0.0
      %1808 = vadd.xlane.f32.xlu0 %v1807
      %v1809 = vpop.xlane.xlu0 %1808
      %v1810 = vsel %vm441, %v1766, 0.0
      %1811 = vadd.xlane.f32.xlu0 %v1810
      %v1812 = vpop.xlane.xlu0 %1811
      %v1813 = vsel %vm441, %v1767, 0.0
      %1814 = vadd.xlane.f32.xlu0 %v1813
      %v1815 = vpop.xlane.xlu0 %1814
      %v1816 = vsel %vm441, %v1768, 0.0
      %1817 = vadd.xlane.f32.xlu0 %v1816
      %v1818 = vpop.xlane.xlu0 %1817
      %v1819 = vsel %vm441, %v1769, 0.0
      %1820 = vadd.xlane.f32.xlu0 %v1819
      %v1821 = vpop.xlane.xlu0 %1820
      %v1822 = vsel %vm441, %v1770, 0.0
      %1823 = vadd.xlane.f32.xlu0 %v1822
      %v1824 = vpop.xlane.xlu0 %1823
      %v1825 = vsel %vm441, %v1771, 0.0
      %1826 = vadd.xlane.f32.xlu0 %v1825
      %v1827 = vpop.xlane.xlu0 %1826
      %v1828 = vsel %vm441, %v1772, 0.0
      %1829 = vadd.xlane.f32.xlu0 %v1828
      %v1830 = vpop.xlane.xlu0 %1829
      %v1831 = vsel %vm441, %v1773, 0.0
      %1832 = vadd.xlane.f32.xlu0 %v1831
      %v1833 = vpop.xlane.xlu0 %1832
      %v1834 = vsel %vm441, %v1774, 0.0
      %1835 = vadd.xlane.f32.xlu0 %v1834
      %v1836 = vpop.xlane.xlu0 %1835
      %v1837 = vsel %vm441, %v1775, 0.0
      %1838 = vadd.xlane.f32.xlu0 %v1837
      %v1839 = vpop.xlane.xlu0 %1838
      %v1840 = vsel %vm441, %v1776, 0.0
      %1841 = vadd.xlane.f32.xlu0 %v1840
      %v1842 = vpop.xlane.xlu0 %1841
      %v1843 = vsel %vm441, %v1777, 0.0
      %1844 = vadd.xlane.f32.xlu0 %v1843
      %v1845 = vpop.xlane.xlu0 %1844
      %v1846 = vsel %vm441, %v1778, 0.0
      %1847 = vadd.xlane.f32.xlu0 %v1846
      %v1848 = vpop.xlane.xlu0 %1847
      %v1849 = vsel %vm441, %v1779, 0.0
      %1850 = vadd.xlane.f32.xlu0 %v1849
      %v1851 = vpop.xlane.xlu0 %1850
      %v1852 = vsel %vm441, %v1780, 0.0
      %1853 = vadd.xlane.f32.xlu0 %v1852
      %v1854 = vpop.xlane.xlu0 %1853
      %v1855 = vsel %vm441, %v1781, 0.0
      %1856 = vadd.xlane.f32.xlu0 %v1855
      %v1857 = vpop.xlane.xlu0 %1856
      %v1858 = vsel %vm441, %v1782, 0.0
      %1859 = vadd.xlane.f32.xlu0 %v1858
      %v1860 = vpop.xlane.xlu0 %1859
      %v1861 = vsel %vm441, %v1783, 0.0
      %1862 = vadd.xlane.f32.xlu0 %v1861
      %v1863 = vpop.xlane.xlu0 %1862
      %v1864 = vsel %vm441, %v1784, 0.0
      %1865 = vadd.xlane.f32.xlu0 %v1864
      %v1866 = vpop.xlane.xlu0 %1865
      %v1867 = vsel %vm441, %v1785, 0.0
      %1868 = vadd.xlane.f32.xlu0 %v1867
      %v1869 = vpop.xlane.xlu0 %1868
      %v1870 = vsel %vm441, %v1786, 0.0
      %1871 = vadd.xlane.f32.xlu0 %v1870
      %v1872 = vpop.xlane.xlu0 %1871
      %v1873 = vsel %vm441, %v1787, 0.0
      %1874 = vadd.xlane.f32.xlu0 %v1873
      %v1875 = vpop.xlane.xlu0 %1874
      %v1876 = vsel %vm441, %v1788, 0.0
      %1877 = vadd.xlane.f32.xlu0 %v1876
      %v1878 = vpop.xlane.xlu0 %1877
      %v1879 = vsel %vm441, %v1789, 0.0
      %1880 = vadd.xlane.f32.xlu0 %v1879
      %v1881 = vpop.xlane.xlu0 %1880
      %v1882 = vsel %vm441, %v1790, 0.0
      %1883 = vadd.xlane.f32.xlu0 %v1882
      %v1884 = vpop.xlane.xlu0 %1883
      %v1885 = vsel %vm441, %v1791, 0.0
      %1886 = vadd.xlane.f32.xlu0 %v1885
      %v1887 = vpop.xlane.xlu0 %1886
      %v1888 = vld [vmem:[#allocation2] sm:$0x1]
      %v1890 = vperm.slane %v1888, 0
      %v1892 = vadd.f32 %v1794, %v1890
      %v1893 = vadd.f32 %v1797, %v1890
      %v1894 = vadd.f32 %v1800, %v1890
      %v1895 = vadd.f32 %v1803, %v1890
      %v1896 = vadd.f32 %v1806, %v1890
      %v1897 = vadd.f32 %v1809, %v1890
      %v1898 = vadd.f32 %v1812, %v1890
      %v1899 = vadd.f32 %v1815, %v1890
      %v1900 = vadd.f32 %v1818, %v1890
      %v1901 = vadd.f32 %v1821, %v1890
      %v1902 = vadd.f32 %v1824, %v1890
      %v1903 = vadd.f32 %v1827, %v1890
      %v1904 = vadd.f32 %v1830, %v1890
      %v1905 = vadd.f32 %v1833, %v1890
      %v1906 = vadd.f32 %v1836, %v1890
      %v1907 = vadd.f32 %v1839, %v1890
      %v1908 = vadd.f32 %v1842, %v1890
      %v1909 = vadd.f32 %v1845, %v1890
      %v1910 = vadd.f32 %v1848, %v1890
      %v1911 = vadd.f32 %v1851, %v1890
      %v1912 = vadd.f32 %v1854, %v1890
      %v1913 = vadd.f32 %v1857, %v1890
      %v1914 = vadd.f32 %v1860, %v1890
      %v1915 = vadd.f32 %v1863, %v1890
      %v1916 = vadd.f32 %v1866, %v1890
      %v1917 = vadd.f32 %v1869, %v1890
      %v1918 = vadd.f32 %v1872, %v1890
      %v1919 = vadd.f32 %v1875, %v1890
      %v1920 = vadd.f32 %v1878, %v1890
      %v1921 = vadd.f32 %v1881, %v1890
      %v1922 = vadd.f32 %v1884, %v1890
      %v1923 = vadd.f32 %v1887, %v1890
      %vm1924 = vcmask 7168
      %1925 = vst.msk [vmem:[%s336] sm:$0xff] %vm1924, %v1892
      %1926 = vst.msk [vmem:[%s336 + $0x8] sm:$0xff] %vm1924, %v1893
      %1927 = vst.msk [vmem:[%s336 + $0x10] sm:$0xff] %vm1924, %v1894
      %1928 = vst.msk [vmem:[%s336 + $0x18] sm:$0xff] %vm1924, %v1895
      %1929 = vst.msk [vmem:[%s336 + $0x20] sm:$0xff] %vm1924, %v1896
      %1930 = vst.msk [vmem:[%s336 + $0x28] sm:$0xff] %vm1924, %v1897
      %1931 = vst.msk [vmem:[%s336 + $0x30] sm:$0xff] %vm1924, %v1898
      %1932 = vst.msk [vmem:[%s336 + $0x38] sm:$0xff] %vm1924, %v1899
      %1933 = vst.msk [vmem:[%s336 + $0x40] sm:$0xff] %vm1924, %v1900
      %1934 = vst.msk [vmem:[%s336 + $0x48] sm:$0xff] %vm1924, %v1901
      %1935 = vst.msk [vmem:[%s336 + $0x50] sm:$0xff] %vm1924, %v1902
      %1936 = vst.msk [vmem:[%s336 + $0x58] sm:$0xff] %vm1924, %v1903
      %1937 = vst.msk [vmem:[%s336 + $0x60] sm:$0xff] %vm1924, %v1904
      %1938 = vst.msk [vmem:[%s336 + $0x68] sm:$0xff] %vm1924, %v1905
      %1939 = vst.msk [vmem:[%s336 + $0x70] sm:$0xff] %vm1924, %v1906
      %1940 = vst.msk [vmem:[%s336 + $0x78] sm:$0xff] %vm1924, %v1907
      %1941 = vst.msk [vmem:[%s336 + $0x80] sm:$0xff] %vm1924, %v1908
      %1942 = vst.msk [vmem:[%s336 + $0x88] sm:$0xff] %vm1924, %v1909
      %1943 = vst.msk [vmem:[%s336 + $0x90] sm:$0xff] %vm1924, %v1910
      %1944 = vst.msk [vmem:[%s336 + $0x98] sm:$0xff] %vm1924, %v1911
      %1945 = vst.msk [vmem:[%s336 + $0xa0] sm:$0xff] %vm1924, %v1912
      %1946 = vst.msk [vmem:[%s336 + $0xa8] sm:$0xff] %vm1924, %v1913
      %1947 = vst.msk [vmem:[%s336 + $0xb0] sm:$0xff] %vm1924, %v1914
      %1948 = vst.msk [vmem:[%s336 + $0xb8] sm:$0xff] %vm1924, %v1915
      %1949 = vst.msk [vmem:[%s336 + $0xc0] sm:$0xff] %vm1924, %v1916
      %1950 = vst.msk [vmem:[%s336 + $0xc8] sm:$0xff] %vm1924, %v1917
      %1951 = vst.msk [vmem:[%s336 + $0xd0] sm:$0xff] %vm1924, %v1918
      %1952 = vst.msk [vmem:[%s336 + $0xd8] sm:$0xff] %vm1924, %v1919
      %1953 = vst.msk [vmem:[%s336 + $0xe0] sm:$0xff] %vm1924, %v1920
      %1954 = vst.msk [vmem:[%s336 + $0xe8] sm:$0xff] %vm1924, %v1921
      %1955 = vst.msk [vmem:[%s336 + $0xf0] sm:$0xff] %vm1924, %v1922
      %1956 = vst.msk [vmem:[%s336 + $0xf8] sm:$0xff] %vm1924, %v1923
      %s1957 = smul.u32 32, %s22
      %p1958 = scmp.lt.s32.totalorder %s1957, 63
      %s1959 = scalar_select %p1958, %s1957, 63
      %s1960 = smul.addr %s1959, 8
      %s1961 = scalar_lea.vmem %s9, %s1960
      // Predicated region
      $region57: #{tpu_custom_call.1} parent=55 // pred_check
        %p1962 = pneg %p234
      $region58: #{tpu_custom_call.1} parent=55 // pred_check_branch
        %1964 = sbr.rel (%p1962) target = $region60
      $region59: #{tpu_custom_call.1} parent=55 // pred_region
        %s1965 = smul.u32 32, %s22
      $region60: #{tpu_custom_call.1} parent=55 // pred_fallthru
        _
    $region56: #{tpu_custom_call.1} parent=5 // pred_fallthru
      _
    %p1966 = scmp.le.s32.totalorder 2, %s17
    // Predicated region
    $region61: #{tpu_custom_call.1} parent=5 // pred_check
      %p1967 = pneg %p1966
    $region62: #{tpu_custom_call.1} parent=5 // pred_check_branch
      %1969 = sbr.rel (%p1967) target = $region64
    $region63: #{tpu_custom_call.1} parent=5 // pred_region
      %s1970 = ssub.s32 %s17, 2
      // Predicated region
      $region65: #{tpu_custom_call.1} parent=63 // pred_check
        %p1971 = pneg %p240
      $region66: #{tpu_custom_call.1} parent=63 // pred_check_branch
        %1973 = sbr.rel (%p1971) target = $region68
      $region67: #{tpu_custom_call.1} parent=63 // pred_region
        %s1974 = smul.u32 32, %s23
        %p1975 = scmp.lt.s32.totalorder %s1974, 63
        %s1976 = scalar_select %p1975, %s1974, 63
        %s1977 = smul.addr %s1976, 8
        %s1978 = scalar_lea.vmem %s9, %s1977
      $region68: #{tpu_custom_call.1} parent=63 // pred_fallthru
        _
    $region64: #{tpu_custom_call.1} parent=5 // pred_fallthru
      _
  $region6: #{tpu_custom_call.1} parent=0 // loop_footer
    %s21 = sadd.s32 1, %s17
  $region7: #{tpu_custom_call.1} parent=0 // loop_footer_branch
    %16 = sbr.rel target = $region3
  $region8: #{tpu_custom_call.1} parent=0 // loop_exit
    _

// kernel: tpu_custom_call.1
$region0: #{tpu_custom_call.1}
  #allocation0 [shape = 'u32[]', space=smem, size = 0x4, offset = 0x4, fixed_abs, tag = 'smem constant byte address 0x4 - core index']
  #allocation1 [shape = 'u32[72,128]{1,0:T(1,128)}', space=vmem, size = 0x9000, scoped, tag = 'internal scratch']
  #allocation2 [shape = 'f32[1,1]{1,0:T(1,128)S(1)}', space=vmem, size = 0x200, scoped, tag = 'scoped memory for tpu_custom_call.1']
  %s0 = inlined_call_operand.vmem [shape: f32[512,64], index: 0, kind: input, shape index: {}]
  %s1 = inlined_call_operand.vmem [shape: bf16[64,256], index: 1, kind: input, shape index: {}]
  %s2 = inlined_call_operand.vmem [shape: f32[1,256], index: 2, kind: input, shape index: {}]
  %s3 = inlined_call_operand.vmem [shape: bf16[256,256], index: 3, kind: input, shape index: {}]
  %s4 = inlined_call_operand.vmem [shape: f32[1,256], index: 4, kind: input, shape index: {}]
  %s5 = inlined_call_operand.vmem [shape: bf16[256,64], index: 5, kind: input, shape index: {}]
  %s6 = inlined_call_operand.vmem [shape: f32[1,64], index: 6, kind: input, shape index: {}]
  %s7 = inlined_call_operand.vmem [shape: f32[1,64], index: 7, kind: input, shape index: {}]
  %s8 = inlined_call_operand.<no memory space> [shape: f32[1,1], index: 8, kind: input, shape index: {}]
  %s9 = inlined_call_operand.vmem [shape: f32[512,1], index: 9, kind: output, shape index: {}]
  %s10 = sld [smem:[#allocation0]]
  $region69: #{tpu_custom_call.1} parent=0
    _
  %s12 = ssub.s32 1, %s10
  %s13 = scalar_select 0, %s12, %s10
  %v14 = vstv %s8
  %15 = vst [vmem:[#allocation2] sm:$0x1] %v14
  loop: start=0, step=1, limit=4
  $region2: #{tpu_custom_call.1} parent=0 // loop_pre_header
    _
  $region3: #{tpu_custom_call.1} parent=0 // loop_header
    %s17 = sphi 0, %s21
    %p18 = scmp.ge.s32.totalorder %s17, 4
    %s27 = sphi 0, %s29
    %s30 = sphi 0, %s27
    %s31 = sphi 0, %s30
    %s47 = sphi 0, %s31
    %s51 = sphi 0, %s51
    %s53 = sphi 0, %s51
    %s54 = sphi 0, %s53
    %s68 = sphi 0, %s54
    %s72 = sphi 0, %s72
    %s74 = sphi 0, %s72
    %s75 = sphi 0, %s74
    %s89 = sphi 0, %s75
    %s93 = sphi 0, %s93
    %s95 = sphi 0, %s93
    %s96 = sphi 0, %s95
    %s110 = sphi 0, %s96
    %s114 = sphi 0, %s114
    %s116 = sphi 0, %s114
    %s117 = sphi 0, %s116
    %s131 = sphi 0, %s117
    %s135 = sphi 0, %s135
    %s137 = sphi 0, %s135
    %s138 = sphi 0, %s137
    %s152 = sphi 0, %s138
    %s156 = sphi 0, %s156
    %s158 = sphi 0, %s156
    %s159 = sphi 0, %s158
    %s173 = sphi 0, %s159
    %s177 = sphi 0, %s177
    %s179 = sphi 0, %s177
    %s180 = sphi 0, %s179
    %s194 = sphi 0, %s180
    %s198 = sphi 0, %s198
    %s200 = sphi 0, %s198
    %s201 = sphi 0, %s200
    %s215 = sphi 0, %s201
    %s221 = sphi 0, %s223
    %s224 = sphi 0, %s221
    %s225 = sphi 0, %s224
    %s241 = sphi 0, %s225
  $region4: #{tpu_custom_call.1} parent=0 // loop_header_branch
    %20 = sbr.rel (%p18) target = $region8
  $region5: #{tpu_custom_call.1} parent=0 // loop_body
    %s22 = ssub.s32 %s17, 1
    %s23 = ssub.s32 %s17, 2
    %s24 = sadd.s32 %s17, 1
    %s25 = ssub.s32 %s17, %s24
    %p26 = scmp.eq.s32.totalorder %s25, 0
    %s28 = sadd.s32 %s27, 1
    %s29 = scalar_select %p26, %s27, %s28
    %p32 = pneg %p26
    %p33 = scmp.eq.s32.totalorder %s17, 1
    %p34 = por %p32, %p33
    %p35 = scmp.ne.s32.totalorder %s27, %s30
    %p36 = scmp.eq.s32.totalorder %s17, 0
    %p37 = por %p35, %p36
    %p38 = scmp.ne.s32.totalorder %s27, %s30
    %p39 = scmp.eq.s32.totalorder %s22, 1
    %p40 = por %p38, %p39
    %p41 = scmp.ne.s32.totalorder %s30, %s31
    %p42 = scmp.eq.s32.totalorder %s22, 0
    %p43 = por %p41, %p42
    %p44 = scmp.ne.s32.totalorder %s30, %s31
    %p45 = scmp.eq.s32.totalorder %s23, 1
    %p46 = por %p44, %p45
    %p48 = scmp.ne.s32.totalorder %s31, %s47
    %p49 = scmp.eq.s32.totalorder %s23, 0
    %p50 = por %p48, %p49
    %s52 = sadd.s32 %s51, 1
    %p55 = scmp.eq.s32.totalorder %s17, 1
    %p56 = scmp.ne.s32.totalorder %s51, %s53
    %p57 = scmp.eq.s32.totalorder %s17, 0
    %p58 = por %p56, %p57
    %p59 = scmp.ne.s32.totalorder %s51, %s53
    %p60 = scmp.eq.s32.totalorder %s22, 1
    %p61 = por %p59, %p60
    %p62 = scmp.ne.s32.totalorder %s53, %s54
    %p63 = scmp.eq.s32.totalorder %s22, 0
    %p64 = por %p62, %p63
    %p65 = scmp.ne.s32.totalorder %s53, %s54
    %p66 = scmp.eq.s32.totalorder %s23, 1
    %p67 = por %p65, %p66
    %p69 = scmp.ne.s32.totalorder %s54, %s68
    %p70 = scmp.eq.s32.totalorder %s23, 0
    %p71 = por %p69, %p70
    %s73 = sadd.s32 %s72, 1
    %p76 = scmp.eq.s32.totalorder %s17, 1
    %p77 = scmp.ne.s32.totalorder %s72, %s74
    %p78 = scmp.eq.s32.totalorder %s17, 0
    %p79 = por %p77, %p78
    %p80 = scmp.ne.s32.totalorder %s72, %s74
    %p81 = scmp.eq.s32.totalorder %s22, 1
    %p82 = por %p80, %p81
    %p83 = scmp.ne.s32.totalorder %s74, %s75
    %p84 = scmp.eq.s32.totalorder %s22, 0
    %p85 = por %p83, %p84
    %p86 = scmp.ne.s32.totalorder %s74, %s75
    %p87 = scmp.eq.s32.totalorder %s23, 1
    %p88 = por %p86, %p87
    %p90 = scmp.ne.s32.totalorder %s75, %s89
    %p91 = scmp.eq.s32.totalorder %s23, 0
    %p92 = por %p90, %p91
    %s94 = sadd.s32 %s93, 1
    %p97 = scmp.eq.s32.totalorder %s17, 1
    %p98 = scmp.ne.s32.totalorder %s93, %s95
    %p99 = scmp.eq.s32.totalorder %s17, 0
    %p100 = por %p98, %p99
    %p101 = scmp.ne.s32.totalorder %s93, %s95
    %p102 = scmp.eq.s32.totalorder %s22, 1
    %p103 = por %p101, %p102
    %p104 = scmp.ne.s32.totalorder %s95, %s96
    %p105 = scmp.eq.s32.totalorder %s22, 0
    %p106 = por %p104, %p105
    %p107 = scmp.ne.s32.totalorder %s95, %s96
    %p108 = scmp.eq.s32.totalorder %s23, 1
    %p109 = por %p107, %p108
    %p111 = scmp.ne.s32.totalorder %s96, %s110
    %p112 = scmp.eq.s32.totalorder %s23, 0
    %p113 = por %p111, %p112
    %s115 = sadd.s32 %s114, 1
    %p118 = scmp.eq.s32.totalorder %s17, 1
    %p119 = scmp.ne.s32.totalorder %s114, %s116
    %p120 = scmp.eq.s32.totalorder %s17, 0
    %p121 = por %p119, %p120
    %p122 = scmp.ne.s32.totalorder %s114, %s116
    %p123 = scmp.eq.s32.totalorder %s22, 1
    %p124 = por %p122, %p123
    %p125 = scmp.ne.s32.totalorder %s116, %s117
    %p126 = scmp.eq.s32.totalorder %s22, 0
    %p127 = por %p125, %p126
    %p128 = scmp.ne.s32.totalorder %s116, %s117
    %p129 = scmp.eq.s32.totalorder %s23, 1
    %p130 = por %p128, %p129
    %p132 = scmp.ne.s32.totalorder %s117, %s131
    %p133 = scmp.eq.s32.totalorder %s23, 0
    %p134 = por %p132, %p133
    %s136 = sadd.s32 %s135, 1
    %p139 = scmp.eq.s32.totalorder %s17, 1
    %p140 = scmp.ne.s32.totalorder %s135, %s137
    %p141 = scmp.eq.s32.totalorder %s17, 0
    %p142 = por %p140, %p141
    %p143 = scmp.ne.s32.totalorder %s135, %s137
    %p144 = scmp.eq.s32.totalorder %s22, 1
    %p145 = por %p143, %p144
    %p146 = scmp.ne.s32.totalorder %s137, %s138
    %p147 = scmp.eq.s32.totalorder %s22, 0
    %p148 = por %p146, %p147
    %p149 = scmp.ne.s32.totalorder %s137, %s138
    %p150 = scmp.eq.s32.totalorder %s23, 1
    %p151 = por %p149, %p150
    %p153 = scmp.ne.s32.totalorder %s138, %s152
    %p154 = scmp.eq.s32.totalorder %s23, 0
    %p155 = por %p153, %p154
    %s157 = sadd.s32 %s156, 1
    %p160 = scmp.eq.s32.totalorder %s17, 1
    %p161 = scmp.ne.s32.totalorder %s156, %s158
    %p162 = scmp.eq.s32.totalorder %s17, 0
    %p163 = por %p161, %p162
    %p164 = scmp.ne.s32.totalorder %s156, %s158
    %p165 = scmp.eq.s32.totalorder %s22, 1
    %p166 = por %p164, %p165
    %p167 = scmp.ne.s32.totalorder %s158, %s159
    %p168 = scmp.eq.s32.totalorder %s22, 0
    %p169 = por %p167, %p168
    %p170 = scmp.ne.s32.totalorder %s158, %s159
    %p171 = scmp.eq.s32.totalorder %s23, 1
    %p172 = por %p170, %p171
    %p174 = scmp.ne.s32.totalorder %s159, %s173
    %p175 = scmp.eq.s32.totalorder %s23, 0
    %p176 = por %p174, %p175
    %s178 = sadd.s32 %s177, 1
    %p181 = scmp.eq.s32.totalorder %s17, 1
    %p182 = scmp.ne.s32.totalorder %s177, %s179
    %p183 = scmp.eq.s32.totalorder %s17, 0
    %p184 = por %p182, %p183
    %p185 = scmp.ne.s32.totalorder %s177, %s179
    %p186 = scmp.eq.s32.totalorder %s22, 1
    %p187 = por %p185, %p186
    %p188 = scmp.ne.s32.totalorder %s179, %s180
    %p189 = scmp.eq.s32.totalorder %s22, 0
    %p190 = por %p188, %p189
    %p191 = scmp.ne.s32.totalorder %s179, %s180
    %p192 = scmp.eq.s32.totalorder %s23, 1
    %p193 = por %p191, %p192
    %p195 = scmp.ne.s32.totalorder %s180, %s194
    %p196 = scmp.eq.s32.totalorder %s23, 0
    %p197 = por %p195, %p196
    %s199 = sadd.s32 %s198, 1
    %p202 = scmp.eq.s32.totalorder %s17, 1
    %p203 = scmp.ne.s32.totalorder %s198, %s200
    %p204 = scmp.eq.s32.totalorder %s17, 0
    %p205 = por %p203, %p204
    %p206 = scmp.ne.s32.totalorder %s198, %s200
    %p207 = scmp.eq.s32.totalorder %s22, 1
    %p208 = por %p206, %p207
    %p209 = scmp.ne.s32.totalorder %s200, %s201
    %p210 = scmp.eq.s32.totalorder %s22, 0
    %p211 = por %p209, %p210
    %p212 = scmp.ne.s32.totalorder %s200, %s201
    %p213 = scmp.eq.s32.totalorder %s23, 1
    %p214 = por %p212, %p213
    %p216 = scmp.ne.s32.totalorder %s201, %s215
    %p217 = scmp.eq.s32.totalorder %s23, 0
    %p218 = por %p216, %p217
    %s219 = ssub.s32 %s17, %s24
    %p220 = scmp.eq.s32.totalorder %s219, 0
    %s222 = sadd.s32 %s221, 1
    %s223 = scalar_select %p220, %s221, %s222
    %p226 = pneg %p220
    %p227 = scmp.eq.s32.totalorder %s17, 1
    %p228 = por %p226, %p227
    %p229 = scmp.ne.s32.totalorder %s221, %s224
    %p230 = scmp.eq.s32.totalorder %s17, 0
    %p231 = por %p229, %p230
    %p232 = scmp.ne.s32.totalorder %s221, %s224
    %p233 = scmp.eq.s32.totalorder %s22, 1
    %p234 = por %p232, %p233
    %p235 = scmp.ne.s32.totalorder %s224, %s225
    %p236 = scmp.eq.s32.totalorder %s22, 0
    %p237 = por %p235, %p236
    %p238 = scmp.ne.s32.totalorder %s224, %s225
    %p239 = scmp.eq.s32.totalorder %s23, 1
    %p240 = por %p238, %p239
    %p242 = scmp.ne.s32.totalorder %s225, %s241
    %p243 = scmp.eq.s32.totalorder %s23, 0
    %p244 = por %p242, %p243
    %p245 = scmp.le.s32.totalorder 1, %s17
    %p246 = scmp.lt.s32.totalorder %s17, 3
    %p247 = pnand %p245, %p246
    %p248 = pneg %p247
    // Predicated region
    $region9: #{tpu_custom_call.1} parent=5 // pred_check
      _
    $region10: #{tpu_custom_call.1} parent=5 // pred_check_branch
      %250 = sbr.rel (%p247) target = $region12
    $region11: #{tpu_custom_call.1} parent=5 // pred_region
      %s251 = ssub.s32 %s17, 1
      // Predicated region
      $region13: #{tpu_custom_call.1} parent=11 // pred_check
        %p252 = pneg %p64
      $region14: #{tpu_custom_call.1} parent=11 // pred_check_branch
        %254 = sbr.rel (%p252) target = $region16
      $region15: #{tpu_custom_call.1} parent=11 // pred_region
        _
      $region16: #{tpu_custom_call.1} parent=11 // pred_fallthru
        _
      // Predicated region
      $region17: #{tpu_custom_call.1} parent=11 // pred_check
        %p255 = pneg %p85
      $region18: #{tpu_custom_call.1} parent=11 // pred_check_branch
        %257 = sbr.rel (%p255) target = $region20
      $region19: #{tpu_custom_call.1} parent=11 // pred_region
        _
      $region20: #{tpu_custom_call.1} parent=11 // pred_fallthru
        _
      // Predicated region
      $region21: #{tpu_custom_call.1} parent=11 // pred_check
        %p258 = pneg %p106
      $region22: #{tpu_custom_call.1} parent=11 // pred_check_branch
        %260 = sbr.rel (%p258) target = $region24
      $region23: #{tpu_custom_call.1} parent=11 // pred_region
        _
      $region24: #{tpu_custom_call.1} parent=11 // pred_fallthru
        _
      // Predicated region
      $region25: #{tpu_custom_call.1} parent=11 // pred_check
        %p261 = pneg %p127
      $region26: #{tpu_custom_call.1} parent=11 // pred_check_branch
        %263 = sbr.rel (%p261) target = $region28
      $region27: #{tpu_custom_call.1} parent=11 // pred_region
        _
      $region28: #{tpu_custom_call.1} parent=11 // pred_fallthru
        _
      // Predicated region
      $region29: #{tpu_custom_call.1} parent=11 // pred_check
        %p264 = pneg %p148
      $region30: #{tpu_custom_call.1} parent=11 // pred_check_branch
        %266 = sbr.rel (%p264) target = $region32
      $region31: #{tpu_custom_call.1} parent=11 // pred_region
        _
      $region32: #{tpu_custom_call.1} parent=11 // pred_fallthru
        _
      // Predicated region
      $region33: #{tpu_custom_call.1} parent=11 // pred_check
        %p267 = pneg %p169
      $region34: #{tpu_custom_call.1} parent=11 // pred_check_branch
        %269 = sbr.rel (%p267) target = $region36
      $region35: #{tpu_custom_call.1} parent=11 // pred_region
        _
      $region36: #{tpu_custom_call.1} parent=11 // pred_fallthru
        _
      // Predicated region
      $region37: #{tpu_custom_call.1} parent=11 // pred_check
        %p270 = pneg %p190
      $region38: #{tpu_custom_call.1} parent=11 // pred_check_branch
        %272 = sbr.rel (%p270) target = $region40
      $region39: #{tpu_custom_call.1} parent=11 // pred_region
        _
      $region40: #{tpu_custom_call.1} parent=11 // pred_fallthru
        _
      // Predicated region
      $region41: #{tpu_custom_call.1} parent=11 // pred_check
        %p273 = pneg %p211
      $region42: #{tpu_custom_call.1} parent=11 // pred_check_branch
        %275 = sbr.rel (%p273) target = $region44
      $region43: #{tpu_custom_call.1} parent=11 // pred_region
        _
      $region44: #{tpu_custom_call.1} parent=11 // pred_fallthru
        _
    $region12: #{tpu_custom_call.1} parent=5 // pred_fallthru
      _
    %p276 = scmp.lt.s32.totalorder %s17, 2
    // Predicated region
    $region45: #{tpu_custom_call.1} parent=5 // pred_check
      %p277 = pneg %p276
    $region46: #{tpu_custom_call.1} parent=5 // pred_check_branch
      %279 = sbr.rel (%p277) target = $region48
    $region47: #{tpu_custom_call.1} parent=5 // pred_region
      // Predicated region
      $region49: #{tpu_custom_call.1} parent=47 // pred_check
        %p280 = pneg %p37
      $region50: #{tpu_custom_call.1} parent=47 // pred_check_branch
        %282 = sbr.rel (%p280) target = $region52
      $region51: #{tpu_custom_call.1} parent=47 // pred_region
        %s283 = smul.u32 32, %s17
        %p284 = scmp.lt.s32.totalorder %s283, 63
        %s285 = scalar_select %p284, %s283, 63
        %s286 = smul.addr %s285, 8
        %s287 = scalar_lea.vmem %s0, %s286
        %s288 = smul.u32 32, %s17
      $region52: #{tpu_custom_call.1} parent=47 // pred_fallthru
        _
    $region48: #{tpu_custom_call.1} parent=5 // pred_fallthru
      _
    %p289 = scmp.le.s32.totalorder 1, %s17
    %p290 = scmp.lt.s32.totalorder %s17, 3
    %p291 = pnand %p289, %p290
    %p292 = pneg %p291
    // Predicated region
    $region53: #{tpu_custom_call.1} parent=5 // pred_check
      _
    $region54: #{tpu_custom_call.1} parent=5 // pred_check_branch
      %294 = sbr.rel (%p291) target = $region56
    $region55: #{tpu_custom_call.1} parent=5 // pred_region
      %s295 = ssub.s32 %s17, 1
      %s296 = smul.u32 32, %s22
      %p297 = scmp.lt.s32.totalorder %s296, 63
      %s298 = scalar_select %p297, %s296, 63
      %s299 = smul.addr %s298, 8
      %s300 = scalar_lea.vmem %s0, %s299
      %p301 = pneg %p43
      %p302 = pneg %p40
      %p303 = pneg %p64
      %p304 = pneg %p61
      %p305 = pneg %p85
      %p306 = pneg %p82
      %p307 = pneg %p106
      %p308 = pneg %p103
      %p309 = pneg %p127
      %p310 = pneg %p124
      %p311 = pneg %p148
      %p312 = pneg %p145
      %p313 = pneg %p169
      %p314 = pneg %p166
      %p315 = pneg %p190
      %p316 = pneg %p187
      %p317 = pneg %p211
      %p318 = pneg %p208
      %p319 = pneg %p237
      %p320 = pneg %p234
      %s321 = smul.u32 32, %s22
      %p322 = scmp.lt.s32.totalorder %s321, 63
      %s323 = scalar_select %p322, %s321, 63
      %s324 = smul.addr %s323, 8
      %s325 = scalar_lea.vmem %s9, %s324
      %s326 = smul.u32 32, %s22
      %p327 = scmp.lt.s32.totalorder %s326, 63
      %s328 = scalar_select %p327, %s326, 63
      %s329 = smul.addr %s328, 8
      %s330 = scalar_lea.vmem %s0, %s329
      %s331 = smul.u32 32, %s22
      %s332 = smul.u32 32, %s22
      %p333 = scmp.lt.s32.totalorder %s332, 63
      %s334 = scalar_select %p333, %s332, 63
      %s335 = smul.addr %s334, 8
      %s336 = scalar_lea.vmem %s9, %s335
      %s337 = smul.u32 32, %s22
      %v339 = vld [vmem:[%s330] sm:$0xff]
      %v340 = vld [vmem:[%s330 + $0x8] sm:$0xff]
      %v341 = vld [vmem:[%s330 + $0x10] sm:$0xff]
      %v342 = vld [vmem:[%s330 + $0x18] sm:$0xff]
      %v343 = vld [vmem:[%s330 + $0x20] sm:$0xff]
      %v344 = vld [vmem:[%s330 + $0x28] sm:$0xff]
      %v345 = vld [vmem:[%s330 + $0x30] sm:$0xff]
      %v346 = vld [vmem:[%s330 + $0x38] sm:$0xff]
      %v347 = vld [vmem:[%s330 + $0x40] sm:$0xff]
      %v348 = vld [vmem:[%s330 + $0x48] sm:$0xff]
      %v349 = vld [vmem:[%s330 + $0x50] sm:$0xff]
      %v350 = vld [vmem:[%s330 + $0x58] sm:$0xff]
      %v351 = vld [vmem:[%s330 + $0x60] sm:$0xff]
      %v352 = vld [vmem:[%s330 + $0x68] sm:$0xff]
      %v353 = vld [vmem:[%s330 + $0x70] sm:$0xff]
      %v354 = vld [vmem:[%s330 + $0x78] sm:$0xff]
      %v355 = vld [vmem:[%s330 + $0x80] sm:$0xff]
      %v356 = vld [vmem:[%s330 + $0x88] sm:$0xff]
      %v357 = vld [vmem:[%s330 + $0x90] sm:$0xff]
      %v358 = vld [vmem:[%s330 + $0x98] sm:$0xff]
      %v359 = vld [vmem:[%s330 + $0xa0] sm:$0xff]
      %v360 = vld [vmem:[%s330 + $0xa8] sm:$0xff]
      %v361 = vld [vmem:[%s330 + $0xb0] sm:$0xff]
      %v362 = vld [vmem:[%s330 + $0xb8] sm:$0xff]
      %v363 = vld [vmem:[%s330 + $0xc0] sm:$0xff]
      %v364 = vld [vmem:[%s330 + $0xc8] sm:$0xff]
      %v365 = vld [vmem:[%s330 + $0xd0] sm:$0xff]
      %v366 = vld [vmem:[%s330 + $0xd8] sm:$0xff]
      %v367 = vld [vmem:[%s330 + $0xe0] sm:$0xff]
      %v368 = vld [vmem:[%s330 + $0xe8] sm:$0xff]
      %v369 = vld [vmem:[%s330 + $0xf0] sm:$0xff]
      %v370 = vld [vmem:[%s330 + $0xf8] sm:$0xff]
      %v371 = vpack.c.bf16 %v340, %v339
      %v372 = vpack.c.bf16 %v342, %v341
      %v373 = vpack.c.bf16 %v344, %v343
      %v374 = vpack.c.bf16 %v346, %v345
      %v375 = vpack.c.bf16 %v348, %v347
      %v376 = vpack.c.bf16 %v350, %v349
      %v377 = vpack.c.bf16 %v352, %v351
      %v378 = vpack.c.bf16 %v354, %v353
      %v379 = vpack.c.bf16 %v356, %v355
      %v380 = vpack.c.bf16 %v358, %v357
      %v381 = vpack.c.bf16 %v360, %v359
      %v382 = vpack.c.bf16 %v362, %v361
      %v383 = vpack.c.bf16 %v364, %v363
      %v384 = vpack.c.bf16 %v366, %v365
      %v385 = vpack.c.bf16 %v368, %v367
      %v386 = vpack.c.bf16 %v370, %v369
      %v387 = vld [vmem:[%s1] sm:$0xff]
      %v388 = vld [vmem:[%s1 + $0x8] sm:$0xff]
      %v389 = vld [vmem:[%s1 + $0x10] sm:$0xff]
      %v390 = vld [vmem:[%s1 + $0x18] sm:$0xff]
      %v391 = vld [vmem:[%s1 + $0x20] sm:$0xff]
      %v392 = vld [vmem:[%s1 + $0x28] sm:$0xff]
      %v393 = vld [vmem:[%s1 + $0x30] sm:$0xff]
      %v394 = vld [vmem:[%s1 + $0x38] sm:$0xff]
      %v395 = vld [vmem:[%s2] sm:$0x3]
      %v397 = vperm.slane %v395, 0
      %v398 = vperm.slane %v395, 1
      %v409 = vunpack.c.l.b16 %v387
      %v410 = vunpack.c.h.b16 %v387
      %v411 = vunpack.c.l.b16 %v388
      %v412 = vunpack.c.h.b16 %v388
      %v413 = vunpack.c.l.b16 %v389
      %v414 = vunpack.c.h.b16 %v389
      %v415 = vunpack.c.l.b16 %v390
      %v416 = vunpack.c.h.b16 %v390
      %v417 = vunpack.c.l.b16 %v391
      %v418 = vunpack.c.h.b16 %v391
      %v419 = vunpack.c.l.b16 %v392
      %v420 = vunpack.c.h.b16 %v392
      %v421 = vunpack.c.l.b16 %v393
      %v422 = vunpack.c.h.b16 %v393
      %v423 = vunpack.c.l.b16 %v394
      %v424 = vunpack.c.h.b16 %v394
      %v425 = vpack.c.b16 %v411, %v409
      %v426 = vpack.c.b16 %v412, %v410
      %v427 = vpack.c.b16 %v415, %v413
      %v428 = vpack.c.b16 %v416, %v414
      %v429 = vpack.c.b16 %v419, %v417
      %v430 = vpack.c.b16 %v420, %v418
      %v431 = vpack.c.b16 %v423, %v421
      %v432 = vpack.c.b16 %v424, %v422
      %vm441 = vcmask 523264
      %v443 = vsel %vm441, %v371, 0
      %v446 = vsel %vm441, %v372, 0
      %v449 = vsel %vm441, %v373, 0
      %v452 = vsel %vm441, %v374, 0
      %v455 = vsel %vm441, %v375, 0
      %v458 = vsel %vm441, %v376, 0
      %v461 = vsel %vm441, %v377, 0
      %v464 = vsel %vm441, %v378, 0
      %v467 = vsel %vm441, %v379, 0
      %v470 = vsel %vm441, %v380, 0
      %v473 = vsel %vm441, %v381, 0
      %v476 = vsel %vm441, %v382, 0
      %v479 = vsel %vm441, %v383, 0
      %v482 = vsel %vm441, %v384, 0
      %v485 = vsel %vm441, %v385, 0
      %v488 = vsel %vm441, %v386, 0
      %490 = vmatpush.bf16.msra.mxu0 0
      %491 = vmatpush.bf16.msra.mxu0 0
      %492 = vmatpush.bf16.msra.mxu0 0
      %493 = vmatpush.bf16.msra.mxu0 0
      %494 = vmatpush.bf16.msra.mxu0 %v431
      %495 = vmatpush.bf16.msra.mxu0 %v429
      %496 = vmatpush.bf16.msra.mxu0 %v427
      %497 = vmatpush.bf16.msra.mxu0 %v425
      %498 = vmatmul.bf16.gmra.mxu0 %v443
      %v499 = vpop.f32.mrf.mxu0
      %v500 = vadd.f32 %v397, %v499
      %v501 = vpop.f32.mrf.mxu0
      %v502 = vadd.f32 %v397, %v501
      %503 = vmatmul.bf16.gmra.mxu0 %v446
      %v504 = vpop.f32.mrf.mxu0
      %v505 = vadd.f32 %v397, %v504
      %v506 = vpop.f32.mrf.mxu0
      %v507 = vadd.f32 %v397, %v506
      %508 = vmatmul.bf16.gmra.mxu0 %v449
      %v509 = vpop.f32.mrf.mxu0
      %v510 = vadd.f32 %v397, %v509
      %v511 = vpop.f32.mrf.mxu0
      %v512 = vadd.f32 %v397, %v511
      %513 = vmatmul.bf16.gmra.mxu0 %v452
      %v514 = vpop.f32.mrf.mxu0
      %v515 = vadd.f32 %v397, %v514
      %v516 = vpop.f32.mrf.mxu0
      %v517 = vadd.f32 %v397, %v516
      %518 = vmatmul.bf16.gmra.mxu0 %v455
      %v519 = vpop.f32.mrf.mxu0
      %v520 = vadd.f32 %v397, %v519
      %v521 = vpop.f32.mrf.mxu0
      %v522 = vadd.f32 %v397, %v521
      %523 = vmatmul.bf16.gmra.mxu0 %v458
      %v524 = vpop.f32.mrf.mxu0
      %v525 = vadd.f32 %v397, %v524
      %v526 = vpop.f32.mrf.mxu0
      %v527 = vadd.f32 %v397, %v526
      %528 = vmatmul.bf16.gmra.mxu0 %v461
      %v529 = vpop.f32.mrf.mxu0
      %v530 = vadd.f32 %v397, %v529
      %v531 = vpop.f32.mrf.mxu0
      %v532 = vadd.f32 %v397, %v531
      %533 = vmatmul.bf16.gmra.mxu0 %v464
      %v534 = vpop.f32.mrf.mxu0
      %v535 = vadd.f32 %v397, %v534
      %v536 = vpop.f32.mrf.mxu0
      %v537 = vadd.f32 %v397, %v536
      %538 = vmatmul.bf16.gmra.mxu0 %v467
      %v539 = vpop.f32.mrf.mxu0
      %v540 = vadd.f32 %v397, %v539
      %v541 = vpop.f32.mrf.mxu0
      %v542 = vadd.f32 %v397, %v541
      %543 = vmatmul.bf16.gmra.mxu0 %v470
      %v544 = vpop.f32.mrf.mxu0
      %v545 = vadd.f32 %v397, %v544
      %v546 = vpop.f32.mrf.mxu0
      %v547 = vadd.f32 %v397, %v546
      %548 = vmatmul.bf16.gmra.mxu0 %v473
      %v549 = vpop.f32.mrf.mxu0
      %v550 = vadd.f32 %v397, %v549
      %v551 = vpop.f32.mrf.mxu0
      %v552 = vadd.f32 %v397, %v551
      %553 = vmatmul.bf16.gmra.mxu0 %v476
      %v554 = vpop.f32.mrf.mxu0
      %v555 = vadd.f32 %v397, %v554
      %v556 = vpop.f32.mrf.mxu0
      %v557 = vadd.f32 %v397, %v556
      %558 = vmatmul.bf16.gmra.mxu0 %v479
      %v559 = vpop.f32.mrf.mxu0
      %v560 = vadd.f32 %v397, %v559
      %v561 = vpop.f32.mrf.mxu0
      %v562 = vadd.f32 %v397, %v561
      %563 = vmatmul.bf16.gmra.mxu0 %v482
      %v564 = vpop.f32.mrf.mxu0
      %v565 = vadd.f32 %v397, %v564
      %v566 = vpop.f32.mrf.mxu0
      %v567 = vadd.f32 %v397, %v566
      %568 = vmatmul.bf16.gmra.mxu0 %v485
      %v569 = vpop.f32.mrf.mxu0
      %v570 = vadd.f32 %v397, %v569
      %v571 = vpop.f32.mrf.mxu0
      %v572 = vadd.f32 %v397, %v571
      %573 = vmatmul.bf16.gmra.mxu0 %v488
      %v574 = vpop.f32.mrf.mxu0
      %v575 = vadd.f32 %v397, %v574
      %v576 = vpop.f32.mrf.mxu0
      %v577 = vadd.f32 %v397, %v576
      %578 = vdwg.mxu0
      %579 = vmatpush.bf16.msra.mxu0 0
      %580 = vmatpush.bf16.msra.mxu0 0
      %581 = vmatpush.bf16.msra.mxu0 0
      %582 = vmatpush.bf16.msra.mxu0 0
      %583 = vmatpush.bf16.msra.mxu0 %v432
      %584 = vmatpush.bf16.msra.mxu0 %v430
      %585 = vmatpush.bf16.msra.mxu0 %v428
      %586 = vmatpush.bf16.msra.mxu0 %v426
      %587 = vmatmul.bf16.gmra.mxu0 %v443
      %v588 = vpop.f32.mrf.mxu0
      %v589 = vadd.f32 %v398, %v588
      %v590 = vpop.f32.mrf.mxu0
      %v591 = vadd.f32 %v398, %v590
      %592 = vmatmul.bf16.gmra.mxu0 %v446
      %v593 = vpop.f32.mrf.mxu0
      %v594 = vadd.f32 %v398, %v593
      %v595 = vpop.f32.mrf.mxu0
      %v596 = vadd.f32 %v398, %v595
      %597 = vmatmul.bf16.gmra.mxu0 %v449
      %v598 = vpop.f32.mrf.mxu0
      %v599 = vadd.f32 %v398, %v598
      %v600 = vpop.f32.mrf.mxu0
      %v601 = vadd.f32 %v398, %v600
      %602 = vmatmul.bf16.gmra.mxu0 %v452
      %v603 = vpop.f32.mrf.mxu0
      %v604 = vadd.f32 %v398, %v603
      %v605 = vpop.f32.mrf.mxu0
      %v606 = vadd.f32 %v398, %v605
      %607 = vmatmul.bf16.gmra.mxu0 %v455
      %v608 = vpop.f32.mrf.mxu0
      %v609 = vadd.f32 %v398, %v608
      %v610 = vpop.f32.mrf.mxu0
      %v611 = vadd.f32 %v398, %v610
      %612 = vmatmul.bf16.gmra.mxu0 %v458
      %v613 = vpop.f32.mrf.mxu0
      %v614 = vadd.f32 %v398, %v613
      %v615 = vpop.f32.mrf.mxu0
      %v616 = vadd.f32 %v398, %v615
      %617 = vmatmul.bf16.gmra.mxu0 %v461
      %v618 = vpop.f32.mrf.mxu0
      %v619 = vadd.f32 %v398, %v618
      %v620 = vpop.f32.mrf.mxu0
      %v621 = vadd.f32 %v398, %v620
      %622 = vmatmul.bf16.gmra.mxu0 %v464
      %v623 = vpop.f32.mrf.mxu0
      %v624 = vadd.f32 %v398, %v623
      %v625 = vpop.f32.mrf.mxu0
      %v626 = vadd.f32 %v398, %v625
      %627 = vmatmul.bf16.gmra.mxu0 %v467
      %v628 = vpop.f32.mrf.mxu0
      %v629 = vadd.f32 %v398, %v628
      %v630 = vpop.f32.mrf.mxu0
      %v631 = vadd.f32 %v398, %v630
      %632 = vmatmul.bf16.gmra.mxu0 %v470
      %v633 = vpop.f32.mrf.mxu0
      %v634 = vadd.f32 %v398, %v633
      %v635 = vpop.f32.mrf.mxu0
      %v636 = vadd.f32 %v398, %v635
      %637 = vmatmul.bf16.gmra.mxu0 %v473
      %v638 = vpop.f32.mrf.mxu0
      %v639 = vadd.f32 %v398, %v638
      %v640 = vpop.f32.mrf.mxu0
      %v641 = vadd.f32 %v398, %v640
      %642 = vmatmul.bf16.gmra.mxu0 %v476
      %v643 = vpop.f32.mrf.mxu0
      %v644 = vadd.f32 %v398, %v643
      %v645 = vpop.f32.mrf.mxu0
      %v646 = vadd.f32 %v398, %v645
      %647 = vmatmul.bf16.gmra.mxu0 %v479
      %v648 = vpop.f32.mrf.mxu0
      %v649 = vadd.f32 %v398, %v648
      %v650 = vpop.f32.mrf.mxu0
      %v651 = vadd.f32 %v398, %v650
      %652 = vmatmul.bf16.gmra.mxu0 %v482
      %v653 = vpop.f32.mrf.mxu0
      %v654 = vadd.f32 %v398, %v653
      %v655 = vpop.f32.mrf.mxu0
      %v656 = vadd.f32 %v398, %v655
      %657 = vmatmul.bf16.gmra.mxu0 %v485
      %v658 = vpop.f32.mrf.mxu0
      %v659 = vadd.f32 %v398, %v658
      %v660 = vpop.f32.mrf.mxu0
      %v661 = vadd.f32 %v398, %v660
      %662 = vmatmul.bf16.gmra.mxu0 %v488
      %v663 = vpop.f32.mrf.mxu0
      %v664 = vadd.f32 %v398, %v663
      %v665 = vpop.f32.mrf.mxu0
      %v666 = vadd.f32 %v398, %v665
      %667 = vdwg.mxu0
      %v668 = vmax.f32 %v500, 0.0
      %v669 = vmax.f32 %v589, 0.0
      %v670 = vmax.f32 %v502, 0.0
      %v671 = vmax.f32 %v591, 0.0
      %v672 = vmax.f32 %v505, 0.0
      %v673 = vmax.f32 %v594, 0.0
      %v674 = vmax.f32 %v507, 0.0
      %v675 = vmax.f32 %v596, 0.0
      %v676 = vmax.f32 %v510, 0.0
      %v677 = vmax.f32 %v599, 0.0
      %v678 = vmax.f32 %v512, 0.0
      %v679 = vmax.f32 %v601, 0.0
      %v680 = vmax.f32 %v515, 0.0
      %v681 = vmax.f32 %v604, 0.0
      %v682 = vmax.f32 %v517, 0.0
      %v683 = vmax.f32 %v606, 0.0
      %v684 = vmax.f32 %v520, 0.0
      %v685 = vmax.f32 %v609, 0.0
      %v686 = vmax.f32 %v522, 0.0
      %v687 = vmax.f32 %v611, 0.0
      %v688 = vmax.f32 %v525, 0.0
      %v689 = vmax.f32 %v614, 0.0
      %v690 = vmax.f32 %v527, 0.0
      %v691 = vmax.f32 %v616, 0.0
      %v692 = vmax.f32 %v530, 0.0
      %v693 = vmax.f32 %v619, 0.0
      %v694 = vmax.f32 %v532, 0.0
      %v695 = vmax.f32 %v621, 0.0
      %v696 = vmax.f32 %v535, 0.0
      %v697 = vmax.f32 %v624, 0.0
      %v698 = vmax.f32 %v537, 0.0
      %v699 = vmax.f32 %v626, 0.0
      %v700 = vmax.f32 %v540, 0.0
      %v701 = vmax.f32 %v629, 0.0
      %v702 = vmax.f32 %v542, 0.0
      %v703 = vmax.f32 %v631, 0.0
      %v704 = vmax.f32 %v545, 0.0
      %v705 = vmax.f32 %v634, 0.0
      %v706 = vmax.f32 %v547, 0.0
      %v707 = vmax.f32 %v636, 0.0
      %v708 = vmax.f32 %v550, 0.0
      %v709 = vmax.f32 %v639, 0.0
      %v710 = vmax.f32 %v552, 0.0
      %v711 = vmax.f32 %v641, 0.0
      %v712 = vmax.f32 %v555, 0.0
      %v713 = vmax.f32 %v644, 0.0
      %v714 = vmax.f32 %v557, 0.0
      %v715 = vmax.f32 %v646, 0.0
      %v716 = vmax.f32 %v560, 0.0
      %v717 = vmax.f32 %v649, 0.0
      %v718 = vmax.f32 %v562, 0.0
      %v719 = vmax.f32 %v651, 0.0
      %v720 = vmax.f32 %v565, 0.0
      %v721 = vmax.f32 %v654, 0.0
      %v722 = vmax.f32 %v567, 0.0
      %v723 = vmax.f32 %v656, 0.0
      %v724 = vmax.f32 %v570, 0.0
      %v725 = vmax.f32 %v659, 0.0
      %v726 = vmax.f32 %v572, 0.0
      %v727 = vmax.f32 %v661, 0.0
      %v728 = vmax.f32 %v575, 0.0
      %v729 = vmax.f32 %v664, 0.0
      %v730 = vmax.f32 %v577, 0.0
      %v731 = vmax.f32 %v666, 0.0
      %v732 = vpack.c.bf16 %v670, %v668
      %v733 = vpack.c.bf16 %v671, %v669
      %v734 = vpack.c.bf16 %v674, %v672
      %v735 = vpack.c.bf16 %v675, %v673
      %v736 = vpack.c.bf16 %v678, %v676
      %v737 = vpack.c.bf16 %v679, %v677
      %v738 = vpack.c.bf16 %v682, %v680
      %v739 = vpack.c.bf16 %v683, %v681
      %v740 = vpack.c.bf16 %v686, %v684
      %v741 = vpack.c.bf16 %v687, %v685
      %v742 = vpack.c.bf16 %v690, %v688
      %v743 = vpack.c.bf16 %v691, %v689
      %v744 = vpack.c.bf16 %v694, %v692
      %v745 = vpack.c.bf16 %v695, %v693
      %v746 = vpack.c.bf16 %v698, %v696
      %v747 = vpack.c.bf16 %v699, %v697
      %v748 = vpack.c.bf16 %v702, %v700
      %v749 = vpack.c.bf16 %v703, %v701
      %v750 = vpack.c.bf16 %v706, %v704
      %v751 = vpack.c.bf16 %v707, %v705
      %v752 = vpack.c.bf16 %v710, %v708
      %v753 = vpack.c.bf16 %v711, %v709
      %v754 = vpack.c.bf16 %v714, %v712
      %v755 = vpack.c.bf16 %v715, %v713
      %v756 = vpack.c.bf16 %v718, %v716
      %v757 = vpack.c.bf16 %v719, %v717
      %v758 = vpack.c.bf16 %v722, %v720
      %v759 = vpack.c.bf16 %v723, %v721
      %v760 = vpack.c.bf16 %v726, %v724
      %v761 = vpack.c.bf16 %v727, %v725
      %v762 = vpack.c.bf16 %v730, %v728
      %v763 = vpack.c.bf16 %v731, %v729
      %v764 = vld [vmem:[%s3] sm:$0xff]
      %v765 = vld [vmem:[%s3 + $0x8] sm:$0xff]
      %v766 = vld [vmem:[%s3 + $0x10] sm:$0xff]
      %v767 = vld [vmem:[%s3 + $0x18] sm:$0xff]
      %v768 = vld [vmem:[%s3 + $0x20] sm:$0xff]
      %v769 = vld [vmem:[%s3 + $0x28] sm:$0xff]
      %v770 = vld [vmem:[%s3 + $0x30] sm:$0xff]
      %v771 = vld [vmem:[%s3 + $0x38] sm:$0xff]
      %v772 = vld [vmem:[%s3 + $0x40] sm:$0xff]
      %v773 = vld [vmem:[%s3 + $0x48] sm:$0xff]
      %v774 = vld [vmem:[%s3 + $0x50] sm:$0xff]
      %v775 = vld [vmem:[%s3 + $0x58] sm:$0xff]
      %v776 = vld [vmem:[%s3 + $0x60] sm:$0xff]
      %v777 = vld [vmem:[%s3 + $0x68] sm:$0xff]
      %v778 = vld [vmem:[%s3 + $0x70] sm:$0xff]
      %v779 = vld [vmem:[%s3 + $0x78] sm:$0xff]
      %v780 = vld [vmem:[%s3 + $0x80] sm:$0xff]
      %v781 = vld [vmem:[%s3 + $0x88] sm:$0xff]
      %v782 = vld [vmem:[%s3 + $0x90] sm:$0xff]
      %v783 = vld [vmem:[%s3 + $0x98] sm:$0xff]
      %v784 = vld [vmem:[%s3 + $0xa0] sm:$0xff]
      %v785 = vld [vmem:[%s3 + $0xa8] sm:$0xff]
      %v786 = vld [vmem:[%s3 + $0xb0] sm:$0xff]
      %v787 = vld [vmem:[%s3 + $0xb8] sm:$0xff]
      %v788 = vld [vmem:[%s3 + $0xc0] sm:$0xff]
      %v789 = vld [vmem:[%s3 + $0xc8] sm:$0xff]
      %v790 = vld [vmem:[%s3 + $0xd0] sm:$0xff]
      %v791 = vld [vmem:[%s3 + $0xd8] sm:$0xff]
      %v792 = vld [vmem:[%s3 + $0xe0] sm:$0xff]
      %v793 = vld [vmem:[%s3 + $0xe8] sm:$0xff]
      %v794 = vld [vmem:[%s3 + $0xf0] sm:$0xff]
      %v795 = vld [vmem:[%s3 + $0xf8] sm:$0xff]
      %v796 = vld [vmem:[%s4] sm:$0x3]
      %v798 = vperm.slane %v796, 0
      %v799 = vperm.slane %v796, 1
      %v834 = vunpack.c.l.b16 %v764
      %v835 = vunpack.c.h.b16 %v764
      %v836 = vunpack.c.l.b16 %v765
      %v837 = vunpack.c.h.b16 %v765
      %v838 = vunpack.c.l.b16 %v766
      %v839 = vunpack.c.h.b16 %v766
      %v840 = vunpack.c.l.b16 %v767
      %v841 = vunpack.c.h.b16 %v767
      %v842 = vunpack.c.l.b16 %v768
      %v843 = vunpack.c.h.b16 %v768
      %v844 = vunpack.c.l.b16 %v769
      %v845 = vunpack.c.h.b16 %v769
      %v846 = vunpack.c.l.b16 %v770
      %v847 = vunpack.c.h.b16 %v770
      %v848 = vunpack.c.l.b16 %v771
      %v849 = vunpack.c.h.b16 %v771
      %v850 = vunpack.c.l.b16 %v772
      %v851 = vunpack.c.h.b16 %v772
      %v852 = vunpack.c.l.b16 %v773
      %v853 = vunpack.c.h.b16 %v773
      %v854 = vunpack.c.l.b16 %v774
      %v855 = vunpack.c.h.b16 %v774
      %v856 = vunpack.c.l.b16 %v775
      %v857 = vunpack.c.h.b16 %v775
      %v858 = vunpack.c.l.b16 %v776
      %v859 = vunpack.c.h.b16 %v776
      %v860 = vunpack.c.l.b16 %v777
      %v861 = vunpack.c.h.b16 %v777
      %v862 = vunpack.c.l.b16 %v778
      %v863 = vunpack.c.h.b16 %v778
      %v864 = vunpack.c.l.b16 %v779
      %v865 = vunpack.c.h.b16 %v779
      %v866 = vunpack.c.l.b16 %v780
      %v867 = vunpack.c.h.b16 %v780
      %v868 = vunpack.c.l.b16 %v781
      %v869 = vunpack.c.h.b16 %v781
      %v870 = vunpack.c.l.b16 %v782
      %v871 = vunpack.c.h.b16 %v782
      %v872 = vunpack.c.l.b16 %v783
      %v873 = vunpack.c.h.b16 %v783
      %v874 = vunpack.c.l.b16 %v784
      %v875 = vunpack.c.h.b16 %v784
      %v876 = vunpack.c.l.b16 %v785
      %v877 = vunpack.c.h.b16 %v785
      %v878 = vunpack.c.l.b16 %v786
      %v879 = vunpack.c.h.b16 %v786
      %v880 = vunpack.c.l.b16 %v787
      %v881 = vunpack.c.h.b16 %v787
      %v882 = vunpack.c.l.b16 %v788
      %v883 = vunpack.c.h.b16 %v788
      %v884 = vunpack.c.l.b16 %v789
      %v885 = vunpack.c.h.b16 %v789
      %v886 = vunpack.c.l.b16 %v790
      %v887 = vunpack.c.h.b16 %v790
      %v888 = vunpack.c.l.b16 %v791
      %v889 = vunpack.c.h.b16 %v791
      %v890 = vunpack.c.l.b16 %v792
      %v891 = vunpack.c.h.b16 %v792
      %v892 = vunpack.c.l.b16 %v793
      %v893 = vunpack.c.h.b16 %v793
      %v894 = vunpack.c.l.b16 %v794
      %v895 = vunpack.c.h.b16 %v794
      %v896 = vunpack.c.l.b16 %v795
      %v897 = vunpack.c.h.b16 %v795
      %v898 = vpack.c.b16 %v836, %v834
      %v899 = vpack.c.b16 %v837, %v835
      %v900 = vpack.c.b16 %v840, %v838
      %v901 = vpack.c.b16 %v841, %v839
      %v902 = vpack.c.b16 %v844, %v842
      %v903 = vpack.c.b16 %v845, %v843
      %v904 = vpack.c.b16 %v848, %v846
      %v905 = vpack.c.b16 %v849, %v847
      %v906 = vpack.c.b16 %v852, %v850
      %v907 = vpack.c.b16 %v853, %v851
      %v908 = vpack.c.b16 %v856, %v854
      %v909 = vpack.c.b16 %v857, %v855
      %v910 = vpack.c.b16 %v860, %v858
      %v911 = vpack.c.b16 %v861, %v859
      %v912 = vpack.c.b16 %v864, %v862
      %v913 = vpack.c.b16 %v865, %v863
      %v914 = vpack.c.b16 %v868, %v866
      %v915 = vpack.c.b16 %v869, %v867
      %v916 = vpack.c.b16 %v872, %v870
      %v917 = vpack.c.b16 %v873, %v871
      %v918 = vpack.c.b16 %v876, %v874
      %v919 = vpack.c.b16 %v877, %v875
      %v920 = vpack.c.b16 %v880, %v878
      %v921 = vpack.c.b16 %v881, %v879
      %v922 = vpack.c.b16 %v884, %v882
      %v923 = vpack.c.b16 %v885, %v883
      %v924 = vpack.c.b16 %v888, %v886
      %v925 = vpack.c.b16 %v889, %v887
      %v926 = vpack.c.b16 %v892, %v890
      %v927 = vpack.c.b16 %v893, %v891
      %v928 = vpack.c.b16 %v896, %v894
      %v929 = vpack.c.b16 %v897, %v895
      %962 = vmatpush.bf16.msra.mxu0 %v912
      %963 = vmatpush.bf16.msra.mxu0 %v910
      %964 = vmatpush.bf16.msra.mxu0 %v908
      %965 = vmatpush.bf16.msra.mxu0 %v906
      %966 = vmatpush.bf16.msra.mxu0 %v904
      %967 = vmatpush.bf16.msra.mxu0 %v902
      %968 = vmatpush.bf16.msra.mxu0 %v900
      %969 = vmatpush.bf16.msra.mxu0 %v898
      %970 = vmatmul.bf16.gmra.mxu0 %v732
      %v971 = vpop.f32.mrf.mxu0
      %v972 = vadd.f32 %v798, %v971
      %v973 = vpop.f32.mrf.mxu0
      %v974 = vadd.f32 %v798, %v973
      %975 = vmatmul.bf16.gmra.mxu0 %v734
      %v976 = vpop.f32.mrf.mxu0
      %v977 = vadd.f32 %v798, %v976
      %v978 = vpop.f32.mrf.mxu0
      %v979 = vadd.f32 %v798, %v978
      %980 = vmatmul.bf16.gmra.mxu0 %v736
      %v981 = vpop.f32.mrf.mxu0
      %v982 = vadd.f32 %v798, %v981
      %v983 = vpop.f32.mrf.mxu0
      %v984 = vadd.f32 %v798, %v983
      %985 = vmatmul.bf16.gmra.mxu0 %v738
      %v986 = vpop.f32.mrf.mxu0
      %v987 = vadd.f32 %v798, %v986
      %v988 = vpop.f32.mrf.mxu0
      %v989 = vadd.f32 %v798, %v988
      %990 = vmatmul.bf16.gmra.mxu0 %v740
      %v991 = vpop.f32.mrf.mxu0
      %v992 = vadd.f32 %v798, %v991
      %v993 = vpop.f32.mrf.mxu0
      %v994 = vadd.f32 %v798, %v993
      %995 = vmatmul.bf16.gmra.mxu0 %v742
      %v996 = vpop.f32.mrf.mxu0
      %v997 = vadd.f32 %v798, %v996
      %v998 = vpop.f32.mrf.mxu0
      %v999 = vadd.f32 %v798, %v998
      %1000 = vmatmul.bf16.gmra.mxu0 %v744
      %v1001 = vpop.f32.mrf.mxu0
      %v1002 = vadd.f32 %v798, %v1001
      %v1003 = vpop.f32.mrf.mxu0
      %v1004 = vadd.f32 %v798, %v1003
      %1005 = vmatmul.bf16.gmra.mxu0 %v746
      %v1006 = vpop.f32.mrf.mxu0
      %v1007 = vadd.f32 %v798, %v1006
      %v1008 = vpop.f32.mrf.mxu0
      %v1009 = vadd.f32 %v798, %v1008
      %1010 = vmatmul.bf16.gmra.mxu0 %v748
      %v1011 = vpop.f32.mrf.mxu0
      %v1012 = vadd.f32 %v798, %v1011
      %v1013 = vpop.f32.mrf.mxu0
      %v1014 = vadd.f32 %v798, %v1013
      %1015 = vmatmul.bf16.gmra.mxu0 %v750
      %v1016 = vpop.f32.mrf.mxu0
      %v1017 = vadd.f32 %v798, %v1016
      %v1018 = vpop.f32.mrf.mxu0
      %v1019 = vadd.f32 %v798, %v1018
      %1020 = vmatmul.bf16.gmra.mxu0 %v752
      %v1021 = vpop.f32.mrf.mxu0
      %v1022 = vadd.f32 %v798, %v1021
      %v1023 = vpop.f32.mrf.mxu0
      %v1024 = vadd.f32 %v798, %v1023
      %1025 = vmatmul.bf16.gmra.mxu0 %v754
      %v1026 = vpop.f32.mrf.mxu0
      %v1027 = vadd.f32 %v798, %v1026
      %v1028 = vpop.f32.mrf.mxu0
      %v1029 = vadd.f32 %v798, %v1028
      %1030 = vmatmul.bf16.gmra.mxu0 %v756
      %v1031 = vpop.f32.mrf.mxu0
      %v1032 = vadd.f32 %v798, %v1031
      %v1033 = vpop.f32.mrf.mxu0
      %v1034 = vadd.f32 %v798, %v1033
      %1035 = vmatmul.bf16.gmra.mxu0 %v758
      %v1036 = vpop.f32.mrf.mxu0
      %v1037 = vadd.f32 %v798, %v1036
      %v1038 = vpop.f32.mrf.mxu0
      %v1039 = vadd.f32 %v798, %v1038
      %1040 = vmatmul.bf16.gmra.mxu0 %v760
      %v1041 = vpop.f32.mrf.mxu0
      %v1042 = vadd.f32 %v798, %v1041
      %v1043 = vpop.f32.mrf.mxu0
      %v1044 = vadd.f32 %v798, %v1043
      %1045 = vmatmul.bf16.gmra.mxu0 %v762
      %v1046 = vpop.f32.mrf.mxu0
      %v1047 = vadd.f32 %v798, %v1046
      %v1048 = vpop.f32.mrf.mxu0
      %v1049 = vadd.f32 %v798, %v1048
      %1050 = vdwg.mxu0
      %1051 = vmatpush.bf16.msra.mxu0 %v928
      %1052 = vmatpush.bf16.msra.mxu0 %v926
      %1053 = vmatpush.bf16.msra.mxu0 %v924
      %1054 = vmatpush.bf16.msra.mxu0 %v922
      %1055 = vmatpush.bf16.msra.mxu0 %v920
      %1056 = vmatpush.bf16.msra.mxu0 %v918
      %1057 = vmatpush.bf16.msra.mxu0 %v916
      %1058 = vmatpush.bf16.msra.mxu0 %v914
      %1059 = vmatmul.bf16.gmra.mxu0 %v733
      %v1060 = vpop.f32.mrf.mxu0
      %v1061 = vadd.f32 %v972, %v1060
      %v1062 = vpop.f32.mrf.mxu0
      %v1063 = vadd.f32 %v974, %v1062
      %1064 = vmatmul.bf16.gmra.mxu0 %v735
      %v1065 = vpop.f32.mrf.mxu0
      %v1066 = vadd.f32 %v977, %v1065
      %v1067 = vpop.f32.mrf.mxu0
      %v1068 = vadd.f32 %v979, %v1067
      %1069 = vmatmul.bf16.gmra.mxu0 %v737
      %v1070 = vpop.f32.mrf.mxu0
      %v1071 = vadd.f32 %v982, %v1070
      %v1072 = vpop.f32.mrf.mxu0
      %v1073 = vadd.f32 %v984, %v1072
      %1074 = vmatmul.bf16.gmra.mxu0 %v739
      %v1075 = vpop.f32.mrf.mxu0
      %v1076 = vadd.f32 %v987, %v1075
      %v1077 = vpop.f32.mrf.mxu0
      %v1078 = vadd.f32 %v989, %v1077
      %1079 = vmatmul.bf16.gmra.mxu0 %v741
      %v1080 = vpop.f32.mrf.mxu0
      %v1081 = vadd.f32 %v992, %v1080
      %v1082 = vpop.f32.mrf.mxu0
      %v1083 = vadd.f32 %v994, %v1082
      %1084 = vmatmul.bf16.gmra.mxu0 %v743
      %v1085 = vpop.f32.mrf.mxu0
      %v1086 = vadd.f32 %v997, %v1085
      %v1087 = vpop.f32.mrf.mxu0
      %v1088 = vadd.f32 %v999, %v1087
      %1089 = vmatmul.bf16.gmra.mxu0 %v745
      %v1090 = vpop.f32.mrf.mxu0
      %v1091 = vadd.f32 %v1002, %v1090
      %v1092 = vpop.f32.mrf.mxu0
      %v1093 = vadd.f32 %v1004, %v1092
      %1094 = vmatmul.bf16.gmra.mxu0 %v747
      %v1095 = vpop.f32.mrf.mxu0
      %v1096 = vadd.f32 %v1007, %v1095
      %v1097 = vpop.f32.mrf.mxu0
      %v1098 = vadd.f32 %v1009, %v1097
      %1099 = vmatmul.bf16.gmra.mxu0 %v749
      %v1100 = vpop.f32.mrf.mxu0
      %v1101 = vadd.f32 %v1012, %v1100
      %v1102 = vpop.f32.mrf.mxu0
      %v1103 = vadd.f32 %v1014, %v1102
      %1104 = vmatmul.bf16.gmra.mxu0 %v751
      %v1105 = vpop.f32.mrf.mxu0
      %v1106 = vadd.f32 %v1017, %v1105
      %v1107 = vpop.f32.mrf.mxu0
      %v1108 = vadd.f32 %v1019, %v1107
      %1109 = vmatmul.bf16.gmra.mxu0 %v753
      %v1110 = vpop.f32.mrf.mxu0
      %v1111 = vadd.f32 %v1022, %v1110
      %v1112 = vpop.f32.mrf.mxu0
      %v1113 = vadd.f32 %v1024, %v1112
      %1114 = vmatmul.bf16.gmra.mxu0 %v755
      %v1115 = vpop.f32.mrf.mxu0
      %v1116 = vadd.f32 %v1027, %v1115
      %v1117 = vpop.f32.mrf.mxu0
      %v1118 = vadd.f32 %v1029, %v1117
      %1119 = vmatmul.bf16.gmra.mxu0 %v757
      %v1120 = vpop.f32.mrf.mxu0
      %v1121 = vadd.f32 %v1032, %v1120
      %v1122 = vpop.f32.mrf.mxu0
      %v1123 = vadd.f32 %v1034, %v1122
      %1124 = vmatmul.bf16.gmra.mxu0 %v759
      %v1125 = vpop.f32.mrf.mxu0
      %v1126 = vadd.f32 %v1037, %v1125
      %v1127 = vpop.f32.mrf.mxu0
      %v1128 = vadd.f32 %v1039, %v1127
      %1129 = vmatmul.bf16.gmra.mxu0 %v761
      %v1130 = vpop.f32.mrf.mxu0
      %v1131 = vadd.f32 %v1042, %v1130
      %v1132 = vpop.f32.mrf.mxu0
      %v1133 = vadd.f32 %v1044, %v1132
      %1134 = vmatmul.bf16.gmra.mxu0 %v763
      %v1135 = vpop.f32.mrf.mxu0
      %v1136 = vadd.f32 %v1047, %v1135
      %v1137 = vpop.f32.mrf.mxu0
      %v1138 = vadd.f32 %v1049, %v1137
      %1139 = vdwg.mxu0
      %1140 = vmatpush.bf16.msra.mxu0 %v913
      %1141 = vmatpush.bf16.msra.mxu0 %v911
      %1142 = vmatpush.bf16.msra.mxu0 %v909
      %1143 = vmatpush.bf16.msra.mxu0 %v907
      %1144 = vmatpush.bf16.msra.mxu0 %v905
      %1145 = vmatpush.bf16.msra.mxu0 %v903
      %1146 = vmatpush.bf16.msra.mxu0 %v901
      %1147 = vmatpush.bf16.msra.mxu0 %v899
      %1148 = vmatmul.bf16.gmra.mxu0 %v732
      %v1149 = vpop.f32.mrf.mxu0
      %v1150 = vadd.f32 %v799, %v1149
      %v1151 = vpop.f32.mrf.mxu0
      %v1152 = vadd.f32 %v799, %v1151
      %1153 = vmatmul.bf16.gmra.mxu0 %v734
      %v1154 = vpop.f32.mrf.mxu0
      %v1155 = vadd.f32 %v799, %v1154
      %v1156 = vpop.f32.mrf.mxu0
      %v1157 = vadd.f32 %v799, %v1156
      %1158 = vmatmul.bf16.gmra.mxu0 %v736
      %v1159 = vpop.f32.mrf.mxu0
      %v1160 = vadd.f32 %v799, %v1159
      %v1161 = vpop.f32.mrf.mxu0
      %v1162 = vadd.f32 %v799, %v1161
      %1163 = vmatmul.bf16.gmra.mxu0 %v738
      %v1164 = vpop.f32.mrf.mxu0
      %v1165 = vadd.f32 %v799, %v1164
      %v1166 = vpop.f32.mrf.mxu0
      %v1167 = vadd.f32 %v799, %v1166
      %1168 = vmatmul.bf16.gmra.mxu0 %v740
      %v1169 = vpop.f32.mrf.mxu0
      %v1170 = vadd.f32 %v799, %v1169
      %v1171 = vpop.f32.mrf.mxu0
      %v1172 = vadd.f32 %v799, %v1171
      %1173 = vmatmul.bf16.gmra.mxu0 %v742
      %v1174 = vpop.f32.mrf.mxu0
      %v1175 = vadd.f32 %v799, %v1174
      %v1176 = vpop.f32.mrf.mxu0
      %v1177 = vadd.f32 %v799, %v1176
      %1178 = vmatmul.bf16.gmra.mxu0 %v744
      %v1179 = vpop.f32.mrf.mxu0
      %v1180 = vadd.f32 %v799, %v1179
      %v1181 = vpop.f32.mrf.mxu0
      %v1182 = vadd.f32 %v799, %v1181
      %1183 = vmatmul.bf16.gmra.mxu0 %v746
      %v1184 = vpop.f32.mrf.mxu0
      %v1185 = vadd.f32 %v799, %v1184
      %v1186 = vpop.f32.mrf.mxu0
      %v1187 = vadd.f32 %v799, %v1186
      %1188 = vmatmul.bf16.gmra.mxu0 %v748
      %v1189 = vpop.f32.mrf.mxu0
      %v1190 = vadd.f32 %v799, %v1189
      %v1191 = vpop.f32.mrf.mxu0
      %v1192 = vadd.f32 %v799, %v1191
      %1193 = vmatmul.bf16.gmra.mxu0 %v750
      %v1194 = vpop.f32.mrf.mxu0
      %v1195 = vadd.f32 %v799, %v1194
      %v1196 = vpop.f32.mrf.mxu0
      %v1197 = vadd.f32 %v799, %v1196
      %1198 = vmatmul.bf16.gmra.mxu0 %v752
      %v1199 = vpop.f32.mrf.mxu0
      %v1200 = vadd.f32 %v799, %v1199
      %v1201 = vpop.f32.mrf.mxu0
      %v1202 = vadd.f32 %v799, %v1201
      %1203 = vmatmul.bf16.gmra.mxu0 %v754
      %v1204 = vpop.f32.mrf.mxu0
      %v1205 = vadd.f32 %v799, %v1204
      %v1206 = vpop.f32.mrf.mxu0
      %v1207 = vadd.f32 %v799, %v1206
      %1208 = vmatmul.bf16.gmra.mxu0 %v756
      %v1209 = vpop.f32.mrf.mxu0
      %v1210 = vadd.f32 %v799, %v1209
      %v1211 = vpop.f32.mrf.mxu0
      %v1212 = vadd.f32 %v799, %v1211
      %1213 = vmatmul.bf16.gmra.mxu0 %v758
      %v1214 = vpop.f32.mrf.mxu0
      %v1215 = vadd.f32 %v799, %v1214
      %v1216 = vpop.f32.mrf.mxu0
      %v1217 = vadd.f32 %v799, %v1216
      %1218 = vmatmul.bf16.gmra.mxu0 %v760
      %v1219 = vpop.f32.mrf.mxu0
      %v1220 = vadd.f32 %v799, %v1219
      %v1221 = vpop.f32.mrf.mxu0
      %v1222 = vadd.f32 %v799, %v1221
      %1223 = vmatmul.bf16.gmra.mxu0 %v762
      %v1224 = vpop.f32.mrf.mxu0
      %v1225 = vadd.f32 %v799, %v1224
      %v1226 = vpop.f32.mrf.mxu0
      %v1227 = vadd.f32 %v799, %v1226
      %1228 = vdwg.mxu0
      %1229 = vmatpush.bf16.msra.mxu0 %v929
      %1230 = vmatpush.bf16.msra.mxu0 %v927
      %1231 = vmatpush.bf16.msra.mxu0 %v925
      %1232 = vmatpush.bf16.msra.mxu0 %v923
      %1233 = vmatpush.bf16.msra.mxu0 %v921
      %1234 = vmatpush.bf16.msra.mxu0 %v919
      %1235 = vmatpush.bf16.msra.mxu0 %v917
      %1236 = vmatpush.bf16.msra.mxu0 %v915
      %1237 = vmatmul.bf16.gmra.mxu0 %v733
      %v1238 = vpop.f32.mrf.mxu0
      %v1239 = vadd.f32 %v1150, %v1238
      %v1240 = vpop.f32.mrf.mxu0
      %v1241 = vadd.f32 %v1152, %v1240
      %1242 = vmatmul.bf16.gmra.mxu0 %v735
      %v1243 = vpop.f32.mrf.mxu0
      %v1244 = vadd.f32 %v1155, %v1243
      %v1245 = vpop.f32.mrf.mxu0
      %v1246 = vadd.f32 %v1157, %v1245
      %1247 = vmatmul.bf16.gmra.mxu0 %v737
      %v1248 = vpop.f32.mrf.mxu0
      %v1249 = vadd.f32 %v1160, %v1248
      %v1250 = vpop.f32.mrf.mxu0
      %v1251 = vadd.f32 %v1162, %v1250
      %1252 = vmatmul.bf16.gmra.mxu0 %v739
      %v1253 = vpop.f32.mrf.mxu0
      %v1254 = vadd.f32 %v1165, %v1253
      %v1255 = vpop.f32.mrf.mxu0
      %v1256 = vadd.f32 %v1167, %v1255
      %1257 = vmatmul.bf16.gmra.mxu0 %v741
      %v1258 = vpop.f32.mrf.mxu0
      %v1259 = vadd.f32 %v1170, %v1258
      %v1260 = vpop.f32.mrf.mxu0
      %v1261 = vadd.f32 %v1172, %v1260
      %1262 = vmatmul.bf16.gmra.mxu0 %v743
      %v1263 = vpop.f32.mrf.mxu0
      %v1264 = vadd.f32 %v1175, %v1263
      %v1265 = vpop.f32.mrf.mxu0
      %v1266 = vadd.f32 %v1177, %v1265
      %1267 = vmatmul.bf16.gmra.mxu0 %v745
      %v1268 = vpop.f32.mrf.mxu0
      %v1269 = vadd.f32 %v1180, %v1268
      %v1270 = vpop.f32.mrf.mxu0
      %v1271 = vadd.f32 %v1182, %v1270
      %1272 = vmatmul.bf16.gmra.mxu0 %v747
      %v1273 = vpop.f32.mrf.mxu0
      %v1274 = vadd.f32 %v1185, %v1273
      %v1275 = vpop.f32.mrf.mxu0
      %v1276 = vadd.f32 %v1187, %v1275
      %1277 = vmatmul.bf16.gmra.mxu0 %v749
      %v1278 = vpop.f32.mrf.mxu0
      %v1279 = vadd.f32 %v1190, %v1278
      %v1280 = vpop.f32.mrf.mxu0
      %v1281 = vadd.f32 %v1192, %v1280
      %1282 = vmatmul.bf16.gmra.mxu0 %v751
      %v1283 = vpop.f32.mrf.mxu0
      %v1284 = vadd.f32 %v1195, %v1283
      %v1285 = vpop.f32.mrf.mxu0
      %v1286 = vadd.f32 %v1197, %v1285
      %1287 = vmatmul.bf16.gmra.mxu0 %v753
      %v1288 = vpop.f32.mrf.mxu0
      %v1289 = vadd.f32 %v1200, %v1288
      %v1290 = vpop.f32.mrf.mxu0
      %v1291 = vadd.f32 %v1202, %v1290
      %1292 = vmatmul.bf16.gmra.mxu0 %v755
      %v1293 = vpop.f32.mrf.mxu0
      %v1294 = vadd.f32 %v1205, %v1293
      %v1295 = vpop.f32.mrf.mxu0
      %v1296 = vadd.f32 %v1207, %v1295
      %1297 = vmatmul.bf16.gmra.mxu0 %v757
      %v1298 = vpop.f32.mrf.mxu0
      %v1299 = vadd.f32 %v1210, %v1298
      %v1300 = vpop.f32.mrf.mxu0
      %v1301 = vadd.f32 %v1212, %v1300
      %1302 = vmatmul.bf16.gmra.mxu0 %v759
      %v1303 = vpop.f32.mrf.mxu0
      %v1304 = vadd.f32 %v1215, %v1303
      %v1305 = vpop.f32.mrf.mxu0
      %v1306 = vadd.f32 %v1217, %v1305
      %1307 = vmatmul.bf16.gmra.mxu0 %v761
      %v1308 = vpop.f32.mrf.mxu0
      %v1309 = vadd.f32 %v1220, %v1308
      %v1310 = vpop.f32.mrf.mxu0
      %v1311 = vadd.f32 %v1222, %v1310
      %1312 = vmatmul.bf16.gmra.mxu0 %v763
      %v1313 = vpop.f32.mrf.mxu0
      %v1314 = vadd.f32 %v1225, %v1313
      %v1315 = vpop.f32.mrf.mxu0
      %v1316 = vadd.f32 %v1227, %v1315
      %1317 = vdwg.mxu0
      %v1318 = vmax.f32 %v1061, 0.0
      %v1319 = vmax.f32 %v1239, 0.0
      %v1320 = vmax.f32 %v1063, 0.0
      %v1321 = vmax.f32 %v1241, 0.0
      %v1322 = vmax.f32 %v1066, 0.0
      %v1323 = vmax.f32 %v1244, 0.0
      %v1324 = vmax.f32 %v1068, 0.0
      %v1325 = vmax.f32 %v1246, 0.0
      %v1326 = vmax.f32 %v1071, 0.0
      %v1327 = vmax.f32 %v1249, 0.0
      %v1328 = vmax.f32 %v1073, 0.0
      %v1329 = vmax.f32 %v1251, 0.0
      %v1330 = vmax.f32 %v1076, 0.0
      %v1331 = vmax.f32 %v1254, 0.0
      %v1332 = vmax.f32 %v1078, 0.0
      %v1333 = vmax.f32 %v1256, 0.0
      %v1334 = vmax.f32 %v1081, 0.0
      %v1335 = vmax.f32 %v1259, 0.0
      %v1336 = vmax.f32 %v1083, 0.0
      %v1337 = vmax.f32 %v1261, 0.0
      %v1338 = vmax.f32 %v1086, 0.0
      %v1339 = vmax.f32 %v1264, 0.0
      %v1340 = vmax.f32 %v1088, 0.0
      %v1341 = vmax.f32 %v1266, 0.0
      %v1342 = vmax.f32 %v1091, 0.0
      %v1343 = vmax.f32 %v1269, 0.0
      %v1344 = vmax.f32 %v1093, 0.0
      %v1345 = vmax.f32 %v1271, 0.0
      %v1346 = vmax.f32 %v1096, 0.0
      %v1347 = vmax.f32 %v1274, 0.0
      %v1348 = vmax.f32 %v1098, 0.0
      %v1349 = vmax.f32 %v1276, 0.0
      %v1350 = vmax.f32 %v1101, 0.0
      %v1351 = vmax.f32 %v1279, 0.0
      %v1352 = vmax.f32 %v1103, 0.0
      %v1353 = vmax.f32 %v1281, 0.0
      %v1354 = vmax.f32 %v1106, 0.0
      %v1355 = vmax.f32 %v1284, 0.0
      %v1356 = vmax.f32 %v1108, 0.0
      %v1357 = vmax.f32 %v1286, 0.0
      %v1358 = vmax.f32 %v1111, 0.0
      %v1359 = vmax.f32 %v1289, 0.0
      %v1360 = vmax.f32 %v1113, 0.0
      %v1361 = vmax.f32 %v1291, 0.0
      %v1362 = vmax.f32 %v1116, 0.0
      %v1363 = vmax.f32 %v1294, 0.0
      %v1364 = vmax.f32 %v1118, 0.0
      %v1365 = vmax.f32 %v1296, 0.0
      %v1366 = vmax.f32 %v1121, 0.0
      %v1367 = vmax.f32 %v1299, 0.0
      %v1368 = vmax.f32 %v1123, 0.0
      %v1369 = vmax.f32 %v1301, 0.0
      %v1370 = vmax.f32 %v1126, 0.0
      %v1371 = vmax.f32 %v1304, 0.0
      %v1372 = vmax.f32 %v1128, 0.0
      %v1373 = vmax.f32 %v1306, 0.0
      %v1374 = vmax.f32 %v1131, 0.0
      %v1375 = vmax.f32 %v1309, 0.0
      %v1376 = vmax.f32 %v1133, 0.0
      %v1377 = vmax.f32 %v1311, 0.0
      %v1378 = vmax.f32 %v1136, 0.0
      %v1379 = vmax.f32 %v1314, 0.0
      %v1380 = vmax.f32 %v1138, 0.0
      %v1381 = vmax.f32 %v1316, 0.0
      %v1382 = vpack.c.bf16 %v1320, %v1318
      %v1383 = vpack.c.bf16 %v1321, %v1319
      %v1384 = vpack.c.bf16 %v1324, %v1322
      %v1385 = vpack.c.bf16 %v1325, %v1323
      %v1386 = vpack.c.bf16 %v1328, %v1326
      %v1387 = vpack.c.bf16 %v1329, %v1327
      %v1388 = vpack.c.bf16 %v1332, %v1330
      %v1389 = vpack.c.bf16 %v1333, %v1331
      %v1390 = vpack.c.bf16 %v1336, %v1334
      %v1391 = vpack.c.bf16 %v1337, %v1335
      %v1392 = vpack.c.bf16 %v1340, %v1338
      %v1393 = vpack.c.bf16 %v1341, %v1339
      %v1394 = vpack.c.bf16 %v1344, %v1342
      %v1395 = vpack.c.bf16 %v1345, %v1343
      %v1396 = vpack.c.bf16 %v1348, %v1346
      %v1397 = vpack.c.bf16 %v1349, %v1347
      %v1398 = vpack.c.bf16 %v1352, %v1350
      %v1399 = vpack.c.bf16 %v1353, %v1351
      %v1400 = vpack.c.bf16 %v1356, %v1354
      %v1401 = vpack.c.bf16 %v1357, %v1355
      %v1402 = vpack.c.bf16 %v1360, %v1358
      %v1403 = vpack.c.bf16 %v1361, %v1359
      %v1404 = vpack.c.bf16 %v1364, %v1362
      %v1405 = vpack.c.bf16 %v1365, %v1363
      %v1406 = vpack.c.bf16 %v1368, %v1366
      %v1407 = vpack.c.bf16 %v1369, %v1367
      %v1408 = vpack.c.bf16 %v1372, %v1370
      %v1409 = vpack.c.bf16 %v1373, %v1371
      %v1410 = vpack.c.bf16 %v1376, %v1374
      %v1411 = vpack.c.bf16 %v1377, %v1375
      %v1412 = vpack.c.bf16 %v1380, %v1378
      %v1413 = vpack.c.bf16 %v1381, %v1379
      %v1414 = vld [vmem:[%s5] sm:$0xf]
      %v1415 = vld [vmem:[%s5 + $0x4] sm:$0xf]
      %v1416 = vld [vmem:[%s5 + $0x8] sm:$0xf]
      %v1417 = vld [vmem:[%s5 + $0xc] sm:$0xf]
      %v1418 = vld [vmem:[%s5 + $0x10] sm:$0xf]
      %v1419 = vld [vmem:[%s5 + $0x14] sm:$0xf]
      %v1420 = vld [vmem:[%s5 + $0x18] sm:$0xf]
      %v1421 = vld [vmem:[%s5 + $0x1c] sm:$0xf]
      %v1422 = vld [vmem:[%s5 + $0x20] sm:$0xf]
      %v1423 = vld [vmem:[%s5 + $0x24] sm:$0xf]
      %v1424 = vld [vmem:[%s5 + $0x28] sm:$0xf]
      %v1425 = vld [vmem:[%s5 + $0x2c] sm:$0xf]
      %v1426 = vld [vmem:[%s5 + $0x30] sm:$0xf]
      %v1427 = vld [vmem:[%s5 + $0x34] sm:$0xf]
      %v1428 = vld [vmem:[%s5 + $0x38] sm:$0xf]
      %v1429 = vld [vmem:[%s5 + $0x3c] sm:$0xf]
      %v1430 = vld [vmem:[%s5 + $0x40] sm:$0xf]
      %v1431 = vld [vmem:[%s5 + $0x44] sm:$0xf]
      %v1432 = vld [vmem:[%s5 + $0x48] sm:$0xf]
      %v1433 = vld [vmem:[%s5 + $0x4c] sm:$0xf]
      %v1434 = vld [vmem:[%s5 + $0x50] sm:$0xf]
      %v1435 = vld [vmem:[%s5 + $0x54] sm:$0xf]
      %v1436 = vld [vmem:[%s5 + $0x58] sm:$0xf]
      %v1437 = vld [vmem:[%s5 + $0x5c] sm:$0xf]
      %v1438 = vld [vmem:[%s5 + $0x60] sm:$0xf]
      %v1439 = vld [vmem:[%s5 + $0x64] sm:$0xf]
      %v1440 = vld [vmem:[%s5 + $0x68] sm:$0xf]
      %v1441 = vld [vmem:[%s5 + $0x6c] sm:$0xf]
      %v1442 = vld [vmem:[%s5 + $0x70] sm:$0xf]
      %v1443 = vld [vmem:[%s5 + $0x74] sm:$0xf]
      %v1444 = vld [vmem:[%s5 + $0x78] sm:$0xf]
      %v1445 = vld [vmem:[%s5 + $0x7c] sm:$0xf]
      %v1446 = vld [vmem:[%s6] sm:$0x1]
      %v1448 = vperm.slane %v1446, 0
      %v1482 = vunpack.c.l.b16 %v1414
      %v1483 = vunpack.c.l.b16 %v1415
      %v1484 = vunpack.c.l.b16 %v1416
      %v1485 = vunpack.c.l.b16 %v1417
      %v1486 = vunpack.c.l.b16 %v1418
      %v1487 = vunpack.c.l.b16 %v1419
      %v1488 = vunpack.c.l.b16 %v1420
      %v1489 = vunpack.c.l.b16 %v1421
      %v1490 = vunpack.c.l.b16 %v1422
      %v1491 = vunpack.c.l.b16 %v1423
      %v1492 = vunpack.c.l.b16 %v1424
      %v1493 = vunpack.c.l.b16 %v1425
      %v1494 = vunpack.c.l.b16 %v1426
      %v1495 = vunpack.c.l.b16 %v1427
      %v1496 = vunpack.c.l.b16 %v1428
      %v1497 = vunpack.c.l.b16 %v1429
      %v1498 = vunpack.c.l.b16 %v1430
      %v1499 = vunpack.c.l.b16 %v1431
      %v1500 = vunpack.c.l.b16 %v1432
      %v1501 = vunpack.c.l.b16 %v1433
      %v1502 = vunpack.c.l.b16 %v1434
      %v1503 = vunpack.c.l.b16 %v1435
      %v1504 = vunpack.c.l.b16 %v1436
      %v1505 = vunpack.c.l.b16 %v1437
      %v1506 = vunpack.c.l.b16 %v1438
      %v1507 = vunpack.c.l.b16 %v1439
      %v1508 = vunpack.c.l.b16 %v1440
      %v1509 = vunpack.c.l.b16 %v1441
      %v1510 = vunpack.c.l.b16 %v1442
      %v1511 = vunpack.c.l.b16 %v1443
      %v1512 = vunpack.c.l.b16 %v1444
      %v1513 = vunpack.c.l.b16 %v1445
      %v1514 = vpack.c.b16 %v1483, %v1482
      %v1515 = vpack.c.b16 %v1485, %v1484
      %v1516 = vpack.c.b16 %v1487, %v1486
      %v1517 = vpack.c.b16 %v1489, %v1488
      %v1518 = vpack.c.b16 %v1491, %v1490
      %v1519 = vpack.c.b16 %v1493, %v1492
      %v1520 = vpack.c.b16 %v1495, %v1494
      %v1521 = vpack.c.b16 %v1497, %v1496
      %v1522 = vpack.c.b16 %v1499, %v1498
      %v1523 = vpack.c.b16 %v1501, %v1500
      %v1524 = vpack.c.b16 %v1503, %v1502
      %v1525 = vpack.c.b16 %v1505, %v1504
      %v1526 = vpack.c.b16 %v1507, %v1506
      %v1527 = vpack.c.b16 %v1509, %v1508
      %v1528 = vpack.c.b16 %v1511, %v1510
      %v1529 = vpack.c.b16 %v1513, %v1512
      %1546 = vmatpush.bf16.msra.mxu0 %v1521
      %1547 = vmatpush.bf16.msra.mxu0 %v1520
      %1548 = vmatpush.bf16.msra.mxu0 %v1519
      %1549 = vmatpush.bf16.msra.mxu0 %v1518
      %1550 = vmatpush.bf16.msra.mxu0 %v1517
      %1551 = vmatpush.bf16.msra.mxu0 %v1516
      %1552 = vmatpush.bf16.msra.mxu0 %v1515
      %1553 = vmatpush.bf16.msra.mxu0 %v1514
      %1554 = vmatmul.bf16.gmra.mxu0 %v1382
      %v1555 = vpop.f32.mrf.mxu0
      %v1556 = vadd.f32 %v1448, %v1555
      %v1557 = vpop.f32.mrf.mxu0
      %v1558 = vadd.f32 %v1448, %v1557
      %1559 = vmatmul.bf16.gmra.mxu0 %v1384
      %v1560 = vpop.f32.mrf.mxu0
      %v1561 = vadd.f32 %v1448, %v1560
      %v1562 = vpop.f32.mrf.mxu0
      %v1563 = vadd.f32 %v1448, %v1562
      %1564 = vmatmul.bf16.gmra.mxu0 %v1386
      %v1565 = vpop.f32.mrf.mxu0
      %v1566 = vadd.f32 %v1448, %v1565
      %v1567 = vpop.f32.mrf.mxu0
      %v1568 = vadd.f32 %v1448, %v1567
      %1569 = vmatmul.bf16.gmra.mxu0 %v1388
      %v1570 = vpop.f32.mrf.mxu0
      %v1571 = vadd.f32 %v1448, %v1570
      %v1572 = vpop.f32.mrf.mxu0
      %v1573 = vadd.f32 %v1448, %v1572
      %1574 = vmatmul.bf16.gmra.mxu0 %v1390
      %v1575 = vpop.f32.mrf.mxu0
      %v1576 = vadd.f32 %v1448, %v1575
      %v1577 = vpop.f32.mrf.mxu0
      %v1578 = vadd.f32 %v1448, %v1577
      %1579 = vmatmul.bf16.gmra.mxu0 %v1392
      %v1580 = vpop.f32.mrf.mxu0
      %v1581 = vadd.f32 %v1448, %v1580
      %v1582 = vpop.f32.mrf.mxu0
      %v1583 = vadd.f32 %v1448, %v1582
      %1584 = vmatmul.bf16.gmra.mxu0 %v1394
      %v1585 = vpop.f32.mrf.mxu0
      %v1586 = vadd.f32 %v1448, %v1585
      %v1587 = vpop.f32.mrf.mxu0
      %v1588 = vadd.f32 %v1448, %v1587
      %1589 = vmatmul.bf16.gmra.mxu0 %v1396
      %v1590 = vpop.f32.mrf.mxu0
      %v1591 = vadd.f32 %v1448, %v1590
      %v1592 = vpop.f32.mrf.mxu0
      %v1593 = vadd.f32 %v1448, %v1592
      %1594 = vmatmul.bf16.gmra.mxu0 %v1398
      %v1595 = vpop.f32.mrf.mxu0
      %v1596 = vadd.f32 %v1448, %v1595
      %v1597 = vpop.f32.mrf.mxu0
      %v1598 = vadd.f32 %v1448, %v1597
      %1599 = vmatmul.bf16.gmra.mxu0 %v1400
      %v1600 = vpop.f32.mrf.mxu0
      %v1601 = vadd.f32 %v1448, %v1600
      %v1602 = vpop.f32.mrf.mxu0
      %v1603 = vadd.f32 %v1448, %v1602
      %1604 = vmatmul.bf16.gmra.mxu0 %v1402
      %v1605 = vpop.f32.mrf.mxu0
      %v1606 = vadd.f32 %v1448, %v1605
      %v1607 = vpop.f32.mrf.mxu0
      %v1608 = vadd.f32 %v1448, %v1607
      %1609 = vmatmul.bf16.gmra.mxu0 %v1404
      %v1610 = vpop.f32.mrf.mxu0
      %v1611 = vadd.f32 %v1448, %v1610
      %v1612 = vpop.f32.mrf.mxu0
      %v1613 = vadd.f32 %v1448, %v1612
      %1614 = vmatmul.bf16.gmra.mxu0 %v1406
      %v1615 = vpop.f32.mrf.mxu0
      %v1616 = vadd.f32 %v1448, %v1615
      %v1617 = vpop.f32.mrf.mxu0
      %v1618 = vadd.f32 %v1448, %v1617
      %1619 = vmatmul.bf16.gmra.mxu0 %v1408
      %v1620 = vpop.f32.mrf.mxu0
      %v1621 = vadd.f32 %v1448, %v1620
      %v1622 = vpop.f32.mrf.mxu0
      %v1623 = vadd.f32 %v1448, %v1622
      %1624 = vmatmul.bf16.gmra.mxu0 %v1410
      %v1625 = vpop.f32.mrf.mxu0
      %v1626 = vadd.f32 %v1448, %v1625
      %v1627 = vpop.f32.mrf.mxu0
      %v1628 = vadd.f32 %v1448, %v1627
      %1629 = vmatmul.bf16.gmra.mxu0 %v1412
      %v1630 = vpop.f32.mrf.mxu0
      %v1631 = vadd.f32 %v1448, %v1630
      %v1632 = vpop.f32.mrf.mxu0
      %v1633 = vadd.f32 %v1448, %v1632
      %1634 = vdwg.mxu0
      %1635 = vmatpush.bf16.msra.mxu0 %v1529
      %1636 = vmatpush.bf16.msra.mxu0 %v1528
      %1637 = vmatpush.bf16.msra.mxu0 %v1527
      %1638 = vmatpush.bf16.msra.mxu0 %v1526
      %1639 = vmatpush.bf16.msra.mxu0 %v1525
      %1640 = vmatpush.bf16.msra.mxu0 %v1524
      %1641 = vmatpush.bf16.msra.mxu0 %v1523
      %1642 = vmatpush.bf16.msra.mxu0 %v1522
      %1643 = vmatmul.bf16.gmra.mxu0 %v1383
      %v1644 = vpop.f32.mrf.mxu0
      %v1645 = vadd.f32 %v1556, %v1644
      %v1646 = vpop.f32.mrf.mxu0
      %v1647 = vadd.f32 %v1558, %v1646
      %1648 = vmatmul.bf16.gmra.mxu0 %v1385
      %v1649 = vpop.f32.mrf.mxu0
      %v1650 = vadd.f32 %v1561, %v1649
      %v1651 = vpop.f32.mrf.mxu0
      %v1652 = vadd.f32 %v1563, %v1651
      %1653 = vmatmul.bf16.gmra.mxu0 %v1387
      %v1654 = vpop.f32.mrf.mxu0
      %v1655 = vadd.f32 %v1566, %v1654
      %v1656 = vpop.f32.mrf.mxu0
      %v1657 = vadd.f32 %v1568, %v1656
      %1658 = vmatmul.bf16.gmra.mxu0 %v1389
      %v1659 = vpop.f32.mrf.mxu0
      %v1660 = vadd.f32 %v1571, %v1659
      %v1661 = vpop.f32.mrf.mxu0
      %v1662 = vadd.f32 %v1573, %v1661
      %1663 = vmatmul.bf16.gmra.mxu0 %v1391
      %v1664 = vpop.f32.mrf.mxu0
      %v1665 = vadd.f32 %v1576, %v1664
      %v1666 = vpop.f32.mrf.mxu0
      %v1667 = vadd.f32 %v1578, %v1666
      %1668 = vmatmul.bf16.gmra.mxu0 %v1393
      %v1669 = vpop.f32.mrf.mxu0
      %v1670 = vadd.f32 %v1581, %v1669
      %v1671 = vpop.f32.mrf.mxu0
      %v1672 = vadd.f32 %v1583, %v1671
      %1673 = vmatmul.bf16.gmra.mxu0 %v1395
      %v1674 = vpop.f32.mrf.mxu0
      %v1675 = vadd.f32 %v1586, %v1674
      %v1676 = vpop.f32.mrf.mxu0
      %v1677 = vadd.f32 %v1588, %v1676
      %1678 = vmatmul.bf16.gmra.mxu0 %v1397
      %v1679 = vpop.f32.mrf.mxu0
      %v1680 = vadd.f32 %v1591, %v1679
      %v1681 = vpop.f32.mrf.mxu0
      %v1682 = vadd.f32 %v1593, %v1681
      %1683 = vmatmul.bf16.gmra.mxu0 %v1399
      %v1684 = vpop.f32.mrf.mxu0
      %v1685 = vadd.f32 %v1596, %v1684
      %v1686 = vpop.f32.mrf.mxu0
      %v1687 = vadd.f32 %v1598, %v1686
      %1688 = vmatmul.bf16.gmra.mxu0 %v1401
      %v1689 = vpop.f32.mrf.mxu0
      %v1690 = vadd.f32 %v1601, %v1689
      %v1691 = vpop.f32.mrf.mxu0
      %v1692 = vadd.f32 %v1603, %v1691
      %1693 = vmatmul.bf16.gmra.mxu0 %v1403
      %v1694 = vpop.f32.mrf.mxu0
      %v1695 = vadd.f32 %v1606, %v1694
      %v1696 = vpop.f32.mrf.mxu0
      %v1697 = vadd.f32 %v1608, %v1696
      %1698 = vmatmul.bf16.gmra.mxu0 %v1405
      %v1699 = vpop.f32.mrf.mxu0
      %v1700 = vadd.f32 %v1611, %v1699
      %v1701 = vpop.f32.mrf.mxu0
      %v1702 = vadd.f32 %v1613, %v1701
      %1703 = vmatmul.bf16.gmra.mxu0 %v1407
      %v1704 = vpop.f32.mrf.mxu0
      %v1705 = vadd.f32 %v1616, %v1704
      %v1706 = vpop.f32.mrf.mxu0
      %v1707 = vadd.f32 %v1618, %v1706
      %1708 = vmatmul.bf16.gmra.mxu0 %v1409
      %v1709 = vpop.f32.mrf.mxu0
      %v1710 = vadd.f32 %v1621, %v1709
      %v1711 = vpop.f32.mrf.mxu0
      %v1712 = vadd.f32 %v1623, %v1711
      %1713 = vmatmul.bf16.gmra.mxu0 %v1411
      %v1714 = vpop.f32.mrf.mxu0
      %v1715 = vadd.f32 %v1626, %v1714
      %v1716 = vpop.f32.mrf.mxu0
      %v1717 = vadd.f32 %v1628, %v1716
      %1718 = vmatmul.bf16.gmra.mxu0 %v1413
      %v1719 = vpop.f32.mrf.mxu0
      %v1720 = vadd.f32 %v1631, %v1719
      %v1721 = vpop.f32.mrf.mxu0
      %v1722 = vadd.f32 %v1633, %v1721
      %1723 = vdwg.mxu0
      %v1724 = vmax.f32 %v1645, 0.0
      %v1725 = vmax.f32 %v1647, 0.0
      %v1726 = vmax.f32 %v1650, 0.0
      %v1727 = vmax.f32 %v1652, 0.0
      %v1728 = vmax.f32 %v1655, 0.0
      %v1729 = vmax.f32 %v1657, 0.0
      %v1730 = vmax.f32 %v1660, 0.0
      %v1731 = vmax.f32 %v1662, 0.0
      %v1732 = vmax.f32 %v1665, 0.0
      %v1733 = vmax.f32 %v1667, 0.0
      %v1734 = vmax.f32 %v1670, 0.0
      %v1735 = vmax.f32 %v1672, 0.0
      %v1736 = vmax.f32 %v1675, 0.0
      %v1737 = vmax.f32 %v1677, 0.0
      %v1738 = vmax.f32 %v1680, 0.0
      %v1739 = vmax.f32 %v1682, 0.0
      %v1740 = vmax.f32 %v1685, 0.0
      %v1741 = vmax.f32 %v1687, 0.0
      %v1742 = vmax.f32 %v1690, 0.0
      %v1743 = vmax.f32 %v1692, 0.0
      %v1744 = vmax.f32 %v1695, 0.0
      %v1745 = vmax.f32 %v1697, 0.0
      %v1746 = vmax.f32 %v1700, 0.0
      %v1747 = vmax.f32 %v1702, 0.0
      %v1748 = vmax.f32 %v1705, 0.0
      %v1749 = vmax.f32 %v1707, 0.0
      %v1750 = vmax.f32 %v1710, 0.0
      %v1751 = vmax.f32 %v1712, 0.0
      %v1752 = vmax.f32 %v1715, 0.0
      %v1753 = vmax.f32 %v1717, 0.0
      %v1754 = vmax.f32 %v1720, 0.0
      %v1755 = vmax.f32 %v1722, 0.0
      %v1756 = vld [vmem:[%s7] sm:$0x1]
      %v1758 = vperm.slane %v1756, 0
      %v1760 = vmul.f32 %v1724, %v1758
      %v1761 = vmul.f32 %v1725, %v1758
      %v1762 = vmul.f32 %v1726, %v1758
      %v1763 = vmul.f32 %v1727, %v1758
      %v1764 = vmul.f32 %v1728, %v1758
      %v1765 = vmul.f32 %v1729, %v1758
      %v1766 = vmul.f32 %v1730, %v1758
      %v1767 = vmul.f32 %v1731, %v1758
      %v1768 = vmul.f32 %v1732, %v1758
      %v1769 = vmul.f32 %v1733, %v1758
      %v1770 = vmul.f32 %v1734, %v1758
      %v1771 = vmul.f32 %v1735, %v1758
      %v1772 = vmul.f32 %v1736, %v1758
      %v1773 = vmul.f32 %v1737, %v1758
      %v1774 = vmul.f32 %v1738, %v1758
      %v1775 = vmul.f32 %v1739, %v1758
      %v1776 = vmul.f32 %v1740, %v1758
      %v1777 = vmul.f32 %v1741, %v1758
      %v1778 = vmul.f32 %v1742, %v1758
      %v1779 = vmul.f32 %v1743, %v1758
      %v1780 = vmul.f32 %v1744, %v1758
      %v1781 = vmul.f32 %v1745, %v1758
      %v1782 = vmul.f32 %v1746, %v1758
      %v1783 = vmul.f32 %v1747, %v1758
      %v1784 = vmul.f32 %v1748, %v1758
      %v1785 = vmul.f32 %v1749, %v1758
      %v1786 = vmul.f32 %v1750, %v1758
      %v1787 = vmul.f32 %v1751, %v1758
      %v1788 = vmul.f32 %v1752, %v1758
      %v1789 = vmul.f32 %v1753, %v1758
      %v1790 = vmul.f32 %v1754, %v1758
      %v1791 = vmul.f32 %v1755, %v1758
      %v1792 = vsel %vm441, %v1760, 0.0
      %1793 = vadd.xlane.f32.xlu0 %v1792
      %v1794 = vpop.xlane.xlu0 %1793
      %v1795 = vsel %vm441, %v1761, 0.0
      %1796 = vadd.xlane.f32.xlu0 %v1795
      %v1797 = vpop.xlane.xlu0 %1796
      %v1798 = vsel %vm441, %v1762, 0.0
      %1799 = vadd.xlane.f32.xlu0 %v1798
      %v1800 = vpop.xlane.xlu0 %1799
      %v1801 = vsel %vm441, %v1763, 0.0
      %1802 = vadd.xlane.f32.xlu0 %v1801
      %v1803 = vpop.xlane.xlu0 %1802
      %v1804 = vsel %vm441, %v1764, 0.0
      %1805 = vadd.xlane.f32.xlu0 %v1804
      %v1806 = vpop.xlane.xlu0 %1805
      %v1807 = vsel %vm441, %v1765, 0.0
      %1808 = vadd.xlane.f32.xlu0 %v1807
      %v1809 = vpop.xlane.xlu0 %1808
      %v1810 = vsel %vm441, %v1766, 0.0
      %1811 = vadd.xlane.f32.xlu0 %v1810
      %v1812 = vpop.xlane.xlu0 %1811
      %v1813 = vsel %vm441, %v1767, 0.0
      %1814 = vadd.xlane.f32.xlu0 %v1813
      %v1815 = vpop.xlane.xlu0 %1814
      %v1816 = vsel %vm441, %v1768, 0.0
      %1817 = vadd.xlane.f32.xlu0 %v1816
      %v1818 = vpop.xlane.xlu0 %1817
      %v1819 = vsel %vm441, %v1769, 0.0
      %1820 = vadd.xlane.f32.xlu0 %v1819
      %v1821 = vpop.xlane.xlu0 %1820
      %v1822 = vsel %vm441, %v1770, 0.0
      %1823 = vadd.xlane.f32.xlu0 %v1822
      %v1824 = vpop.xlane.xlu0 %1823
      %v1825 = vsel %vm441, %v1771, 0.0
      %1826 = vadd.xlane.f32.xlu0 %v1825
      %v1827 = vpop.xlane.xlu0 %1826
      %v1828 = vsel %vm441, %v1772, 0.0
      %1829 = vadd.xlane.f32.xlu0 %v1828
      %v1830 = vpop.xlane.xlu0 %1829
      %v1831 = vsel %vm441, %v1773, 0.0
      %1832 = vadd.xlane.f32.xlu0 %v1831
      %v1833 = vpop.xlane.xlu0 %1832
      %v1834 = vsel %vm441, %v1774, 0.0
      %1835 = vadd.xlane.f32.xlu0 %v1834
      %v1836 = vpop.xlane.xlu0 %1835
      %v1837 = vsel %vm441, %v1775, 0.0
      %1838 = vadd.xlane.f32.xlu0 %v1837
      %v1839 = vpop.xlane.xlu0 %1838
      %v1840 = vsel %vm441, %v1776, 0.0
      %1841 = vadd.xlane.f32.xlu0 %v1840
      %v1842 = vpop.xlane.xlu0 %1841
      %v1843 = vsel %vm441, %v1777, 0.0
      %1844 = vadd.xlane.f32.xlu0 %v1843
      %v1845 = vpop.xlane.xlu0 %1844
      %v1846 = vsel %vm441, %v1778, 0.0
      %1847 = vadd.xlane.f32.xlu0 %v1846
      %v1848 = vpop.xlane.xlu0 %1847
      %v1849 = vsel %vm441, %v1779, 0.0
      %1850 = vadd.xlane.f32.xlu0 %v1849
      %v1851 = vpop.xlane.xlu0 %1850
      %v1852 = vsel %vm441, %v1780, 0.0
      %1853 = vadd.xlane.f32.xlu0 %v1852
      %v1854 = vpop.xlane.xlu0 %1853
      %v1855 = vsel %vm441, %v1781, 0.0
      %1856 = vadd.xlane.f32.xlu0 %v1855
      %v1857 = vpop.xlane.xlu0 %1856
      %v1858 = vsel %vm441, %v1782, 0.0
      %1859 = vadd.xlane.f32.xlu0 %v1858
      %v1860 = vpop.xlane.xlu0 %1859
      %v1861 = vsel %vm441, %v1783, 0.0
      %1862 = vadd.xlane.f32.xlu0 %v1861
      %v1863 = vpop.xlane.xlu0 %1862
      %v1864 = vsel %vm441, %v1784, 0.0
      %1865 = vadd.xlane.f32.xlu0 %v1864
      %v1866 = vpop.xlane.xlu0 %1865
      %v1867 = vsel %vm441, %v1785, 0.0
      %1868 = vadd.xlane.f32.xlu0 %v1867
      %v1869 = vpop.xlane.xlu0 %1868
      %v1870 = vsel %vm441, %v1786, 0.0
      %1871 = vadd.xlane.f32.xlu0 %v1870
      %v1872 = vpop.xlane.xlu0 %1871
      %v1873 = vsel %vm441, %v1787, 0.0
      %1874 = vadd.xlane.f32.xlu0 %v1873
      %v1875 = vpop.xlane.xlu0 %1874
      %v1876 = vsel %vm441, %v1788, 0.0
      %1877 = vadd.xlane.f32.xlu0 %v1876
      %v1878 = vpop.xlane.xlu0 %1877
      %v1879 = vsel %vm441, %v1789, 0.0
      %1880 = vadd.xlane.f32.xlu0 %v1879
      %v1881 = vpop.xlane.xlu0 %1880
      %v1882 = vsel %vm441, %v1790, 0.0
      %1883 = vadd.xlane.f32.xlu0 %v1882
      %v1884 = vpop.xlane.xlu0 %1883
      %v1885 = vsel %vm441, %v1791, 0.0
      %1886 = vadd.xlane.f32.xlu0 %v1885
      %v1887 = vpop.xlane.xlu0 %1886
      %v1888 = vld [vmem:[#allocation2] sm:$0x1]
      %v1890 = vperm.slane %v1888, 0
      %v1892 = vadd.f32 %v1794, %v1890
      %v1893 = vadd.f32 %v1797, %v1890
      %v1894 = vadd.f32 %v1800, %v1890
      %v1895 = vadd.f32 %v1803, %v1890
      %v1896 = vadd.f32 %v1806, %v1890
      %v1897 = vadd.f32 %v1809, %v1890
      %v1898 = vadd.f32 %v1812, %v1890
      %v1899 = vadd.f32 %v1815, %v1890
      %v1900 = vadd.f32 %v1818, %v1890
      %v1901 = vadd.f32 %v1821, %v1890
      %v1902 = vadd.f32 %v1824, %v1890
      %v1903 = vadd.f32 %v1827, %v1890
      %v1904 = vadd.f32 %v1830, %v1890
      %v1905 = vadd.f32 %v1833, %v1890
      %v1906 = vadd.f32 %v1836, %v1890
      %v1907 = vadd.f32 %v1839, %v1890
      %v1908 = vadd.f32 %v1842, %v1890
      %v1909 = vadd.f32 %v1845, %v1890
      %v1910 = vadd.f32 %v1848, %v1890
      %v1911 = vadd.f32 %v1851, %v1890
      %v1912 = vadd.f32 %v1854, %v1890
      %v1913 = vadd.f32 %v1857, %v1890
      %v1914 = vadd.f32 %v1860, %v1890
      %v1915 = vadd.f32 %v1863, %v1890
      %v1916 = vadd.f32 %v1866, %v1890
      %v1917 = vadd.f32 %v1869, %v1890
      %v1918 = vadd.f32 %v1872, %v1890
      %v1919 = vadd.f32 %v1875, %v1890
      %v1920 = vadd.f32 %v1878, %v1890
      %v1921 = vadd.f32 %v1881, %v1890
      %v1922 = vadd.f32 %v1884, %v1890
      %v1923 = vadd.f32 %v1887, %v1890
      %vm1924 = vcmask 7168
      %1925 = vst.msk [vmem:[%s336] sm:$0xff] %vm1924, %v1892
      %1926 = vst.msk [vmem:[%s336 + $0x8] sm:$0xff] %vm1924, %v1893
      %1927 = vst.msk [vmem:[%s336 + $0x10] sm:$0xff] %vm1924, %v1894
      %1928 = vst.msk [vmem:[%s336 + $0x18] sm:$0xff] %vm1924, %v1895
      %1929 = vst.msk [vmem:[%s336 + $0x20] sm:$0xff] %vm1924, %v1896
      %1930 = vst.msk [vmem:[%s336 + $0x28] sm:$0xff] %vm1924, %v1897
      %1931 = vst.msk [vmem:[%s336 + $0x30] sm:$0xff] %vm1924, %v1898
      %1932 = vst.msk [vmem:[%s336 + $0x38] sm:$0xff] %vm1924, %v1899
      %1933 = vst.msk [vmem:[%s336 + $0x40] sm:$0xff] %vm1924, %v1900
      %1934 = vst.msk [vmem:[%s336 + $0x48] sm:$0xff] %vm1924, %v1901
      %1935 = vst.msk [vmem:[%s336 + $0x50] sm:$0xff] %vm1924, %v1902
      %1936 = vst.msk [vmem:[%s336 + $0x58] sm:$0xff] %vm1924, %v1903
      %1937 = vst.msk [vmem:[%s336 + $0x60] sm:$0xff] %vm1924, %v1904
      %1938 = vst.msk [vmem:[%s336 + $0x68] sm:$0xff] %vm1924, %v1905
      %1939 = vst.msk [vmem:[%s336 + $0x70] sm:$0xff] %vm1924, %v1906
      %1940 = vst.msk [vmem:[%s336 + $0x78] sm:$0xff] %vm1924, %v1907
      %1941 = vst.msk [vmem:[%s336 + $0x80] sm:$0xff] %vm1924, %v1908
      %1942 = vst.msk [vmem:[%s336 + $0x88] sm:$0xff] %vm1924, %v1909
      %1943 = vst.msk [vmem:[%s336 + $0x90] sm:$0xff] %vm1924, %v1910
      %1944 = vst.msk [vmem:[%s336 + $0x98] sm:$0xff] %vm1924, %v1911
      %1945 = vst.msk [vmem:[%s336 + $0xa0] sm:$0xff] %vm1924, %v1912
      %1946 = vst.msk [vmem:[%s336 + $0xa8] sm:$0xff] %vm1924, %v1913
      %1947 = vst.msk [vmem:[%s336 + $0xb0] sm:$0xff] %vm1924, %v1914
      %1948 = vst.msk [vmem:[%s336 + $0xb8] sm:$0xff] %vm1924, %v1915
      %1949 = vst.msk [vmem:[%s336 + $0xc0] sm:$0xff] %vm1924, %v1916
      %1950 = vst.msk [vmem:[%s336 + $0xc8] sm:$0xff] %vm1924, %v1917
      %1951 = vst.msk [vmem:[%s336 + $0xd0] sm:$0xff] %vm1924, %v1918
      %1952 = vst.msk [vmem:[%s336 + $0xd8] sm:$0xff] %vm1924, %v1919
      %1953 = vst.msk [vmem:[%s336 + $0xe0] sm:$0xff] %vm1924, %v1920
      %1954 = vst.msk [vmem:[%s336 + $0xe8] sm:$0xff] %vm1924, %v1921
      %1955 = vst.msk [vmem:[%s336 + $0xf0] sm:$0xff] %vm1924, %v1922
      %1956 = vst.msk [vmem:[%s336 + $0xf8] sm:$0xff] %vm1924, %v1923
      %s1957 = smul.u32 32, %s22
      %p1958 = scmp.lt.s32.totalorder %s1957, 63
      %s1959 = scalar_select %p1958, %s1957, 63
      %s1960 = smul.addr %s1959, 8
      %s1961 = scalar_lea.vmem %s9, %s1960
      // Predicated region
      $region57: #{tpu_custom_call.1} parent=55 // pred_check
        %p1962 = pneg %p234
      $region58: #{tpu_custom_call.1} parent=55 // pred_check_branch
        %1964 = sbr.rel (%p1962) target = $region60
      $region59: #{tpu_custom_call.1} parent=55 // pred_region
        %s1965 = smul.u32 32, %s22
      $region60: #{tpu_custom_call.1} parent=55 // pred_fallthru
        _
    $region56: #{tpu_custom_call.1} parent=5 // pred_fallthru
      _
    %p1966 = scmp.le.s32.totalorder 2, %s17
    // Predicated region
    $region61: #{tpu_custom_call.1} parent=5 // pred_check
      %p1967 = pneg %p1966
    $region62: #{tpu_custom_call.1} parent=5 // pred_check_branch
      %1969 = sbr.rel (%p1967) target = $region64
    $region63: #{tpu_custom_call.1} parent=5 // pred_region
      %s1970 = ssub.s32 %s17, 2
      // Predicated region
      $region65: #{tpu_custom_call.1} parent=63 // pred_check
        %p1971 = pneg %p240
      $region66: #{tpu_custom_call.1} parent=63 // pred_check_branch
        %1973 = sbr.rel (%p1971) target = $region68
      $region67: #{tpu_custom_call.1} parent=63 // pred_region
        %s1974 = smul.u32 32, %s23
        %p1975 = scmp.lt.s32.totalorder %s1974, 63
        %s1976 = scalar_select %p1975, %s1974, 63
        %s1977 = smul.addr %s1976, 8
        %s1978 = scalar_lea.vmem %s9, %s1977
      $region68: #{tpu_custom_call.1} parent=63 // pred_fallthru
        _
    $region64: #{tpu_custom_call.1} parent=5 // pred_fallthru
      _
  $region6: #{tpu_custom_call.1} parent=0 // loop_footer
    %s21 = sadd.s32 1, %s17
  $region7: #{tpu_custom_call.1} parent=0 // loop_footer_branch
    %16 = sbr.rel target = $region3
  $region8: #{tpu_custom_call.1} parent=0 // loop_exit
    _

</llo_original>
